<compile_context>
chip_gen: v7x
topology: tpu7x:2x2x1
jax: 0.10.0
libtpu: 0.0.40
codegen_flags: <defaults>
</compile_context>

<pallas_src>
import math
import functools

import jax
import jax.numpy as jnp
from jax.experimental import pallas as pl
from jax.experimental.pallas import tpu as pltpu


def _sdpa_kernel(q_ref, k_ref, v_ref, o_ref, *, scale):
    # One grid step: a block of G independent (b, h, l1) slabs, each [T, d_k].
    q = q_ref[...]                              # [G, T, d]
    k = k_ref[...]                              # [G, T, d]
    v = v_ref[...]                              # [G, T, d]

    # scores[g, t, s] = sum_d q[g, t, d] * k[g, s, d]   (batched MXU matmul)
    s = jnp.einsum('gtd,gsd->gts', q, k, preferred_element_type=jnp.float32)

    # Numerically stable softmax over the last axis, all in f32.
    # softmax(scale * s) == exp(scale * (s - max(s))) / sum(...), so the
    # 1/sqrt(d_k) scale is folded into the exponent (no [G,T,D] prescale).
    m = jnp.max(s, axis=-1, keepdims=True)
    p = jnp.exp((s - m) * scale)
    denom = jnp.sum(p, axis=-1, keepdims=True)
    p = p * pl.reciprocal(denom, approx=False)  # exact; EUP-resident either way

    # context[g, t, d] = sum_s p[g, t, s] * v[g, s, d]  (batched MXU matmul)
    ctx = jnp.einsum('gts,gsd->gtd', p.astype(v.dtype), v,
                     preferred_element_type=jnp.float32)
    o_ref[...] = ctx.astype(o_ref.dtype)


def _choose_group_size(num_slabs, seq_len, d_k, itemsize):
    """Slabs per grid step, budgeted against real (lane-padded) VMEM use."""
    LANE, SUB = 128, 8
    rup = lambda x, m: -(-x // m) * m

    # Lane-padded VMEM bytes of one (T, d_k) slab block (input dtype).
    slab_block = rup(seq_len, SUB) * rup(d_k, LANE) * itemsize
    # f32 in-kernel intermediates per slab: scores + probs ([T, T] lane-padded)
    # and the q/k/v/ctx vector values ([T, d_k] lane-padded).
    inter = (2 * rup(seq_len, SUB) * rup(seq_len, LANE)
             + 4 * rup(seq_len, SUB) * rup(d_k, LANE)) * 4

    # 2x double-buffered (3 inputs + 1 output) blocks + intermediates under
    # ~24 MiB: sized for v7x's 32 MiB scoped-default VMEM (the binding case);
    # v5e/v6e have more headroom.
    budget = 24 * 1024 * 1024
    g_vmem = max(1, budget // (2 * 4 * slab_block + inter))

    # HBM-bound kernel: aim for ~2 MiB per-operand blocks.
    g_bytes = max(1, (2 * 1024 * 1024) // slab_block)

    # Keep >= 4 grid steps when there is enough work (pipeline overlap and
    # both v7x TensorCores on the "parallel" axis); never fewer than 2 if the
    # problem allows it.
    if num_slabs >= 4:
        g_steps = max(1, num_slabs // 4)
    elif num_slabs >= 2:
        g_steps = max(1, num_slabs // 2)
    else:
        g_steps = 1

    g = max(1, min(num_slabs, g_vmem, g_bytes, g_steps))
    # Round to a multiple of 8 when possible (friendlier sublane tiling for
    # the leading block dim); rounding down only increases the step count.
    if g > 8:
        g = (g // 8) * 8
    return g


def scaled_dot_product_attention(Q, K, V):
    """Pallas implementation of ScaledDotProductAttention.forward.

    Q, K, V: [B, n_heads, len1, len2, d_k] (float32)
    returns: [B, n_heads, len1, len2, d_k]
    """
    B, H, L1, T, D = Q.shape
    M = B * H * L1

    # The three leading axes are pure batch axes: flatten to M independent
    # [T, d_k] slabs.
    q = Q.reshape(M, T, D)
    k = K.reshape(M, T, D)
    v = V.reshape(M, T, D)

    G = _choose_group_size(M, T, D, q.dtype.itemsize)
    grid = (pl.cdiv(M, G),)   # G need not divide M; tail block is padded and
                              # its (independent, per-slab) outputs discarded.

    kernel = functools.partial(_sdpa_kernel, scale=1.0 / math.sqrt(D))

    # Block = G whole slabs; trailing (T, D) equal the full array dims, so the
    # (8, 128) tiling constraint is satisfied for any T, D.
    slab_spec = pl.BlockSpec((G, T, D), lambda i: (i, 0, 0))

    flops = 4 * M * T * T * D                     # QK^T + PV, 2*T*T*D each
    transcendentals = M * T * T                   # one exp per score
    bytes_accessed = 4 * M * T * D * q.dtype.itemsize

    out = pl.pallas_call(
        kernel,
        out_shape=jax.ShapeDtypeStruct((M, T, D), Q.dtype),
        grid=grid,
        in_specs=[slab_spec, slab_spec, slab_spec],
        out_specs=slab_spec,
        compiler_params=pltpu.CompilerParams(
            dimension_semantics=("parallel",),
            vmem_limit_bytes=32 * 1024 * 1024,    # raise v5e's 16 MiB default
        ),
        cost_estimate=pl.CostEstimate(
            flops=flops,
            transcendentals=transcendentals,
            bytes_accessed=bytes_accessed,
        ),
    )(q, k, v)

    return out.reshape(B, H, L1, T, D)


def _reference(Q, K, V):
    """Pure-JAX reference mirroring the PyTorch module exactly."""
    d_k = Q.shape[-1]
    scores = jnp.matmul(Q, jnp.swapaxes(K, -1, -2)) / math.sqrt(d_k)
    attn = jax.nn.softmax(scores, axis=-1)
    return jnp.matmul(attn, V)


if __name__ == "__main__":
    # Q/K/V: [batch, n_heads, len1, len2, d_k] -- small shapes per the module.
    B, H, L1, L2, Dk = 2, 4, 16, 8, 32

    key = jax.random.PRNGKey(0)
    kq, kk, kv = jax.random.split(key, 3)
    Q = jax.random.normal(kq, (B, H, L1, L2, Dk), dtype=jnp.float32)
    K = jax.random.normal(kk, (B, H, L1, L2, Dk), dtype=jnp.float32)
    V = jax.random.normal(kv, (B, H, L1, L2, Dk), dtype=jnp.float32)

    out = scaled_dot_product_attention(Q, K, V)
    out = jax.block_until_ready(out)

    ref = _reference(Q, K, V)
    assert out.shape == ref.shape
    # Tolerance covers XLA's default (bf16-pass) matmul precision in the
    # pure-JAX reference; the Pallas kernel accumulates in f32.
    assert jnp.allclose(out, ref, atol=1e-2, rtol=1e-2), \
        float(jnp.max(jnp.abs(out - ref)))

    print("KERNEL_OK")
</pallas_src>

<mosaic_0001>
module attributes {stable_mosaic.version = 11 : i64} {
  func.func @_sdpa_kernel(%arg0: i32, %arg1: memref<32x8x32xf32, #tpu.memory_space<vmem>>, %arg2: memref<32x8x32xf32, #tpu.memory_space<vmem>>, %arg3: memref<32x8x32xf32, #tpu.memory_space<vmem>>, %arg4: memref<32x8x32xf32, #tpu.memory_space<vmem>>) attributes {dimension_semantics = [#tpu.dimension_semantics<parallel>], iteration_bounds = array<i64: 4>, scalar_prefetch = 0 : i64, scratch_operands = 0 : i64, tpu.core_type = #tpu.core_type<tc>, window_params = [{transform_indices = @transform_0, window_bounds = array<i64: 32, 8, 32>}, {transform_indices = @transform_1, window_bounds = array<i64: 32, 8, 32>}, {transform_indices = @transform_2, window_bounds = array<i64: 32, 8, 32>}, {transform_indices = @transform_3, window_bounds = array<i64: 32, 8, 32>}]} {
    %c0 = arith.constant 0 : index
    %c0_0 = arith.constant 0 : index
    %c0_1 = arith.constant 0 : index
    %0 = vector.load %arg1[%c0, %c0_0, %c0_1] : memref<32x8x32xf32, #tpu.memory_space<vmem>>, vector<32x8x32xf32>
    %c0_2 = arith.constant 0 : index
    %c0_3 = arith.constant 0 : index
    %c0_4 = arith.constant 0 : index
    %1 = vector.load %arg2[%c0_2, %c0_3, %c0_4] : memref<32x8x32xf32, #tpu.memory_space<vmem>>, vector<32x8x32xf32>
    %c0_5 = arith.constant 0 : index
    %c0_6 = arith.constant 0 : index
    %c0_7 = arith.constant 0 : index
    %2 = vector.load %arg3[%c0_5, %c0_6, %c0_7] : memref<32x8x32xf32, #tpu.memory_space<vmem>>, vector<32x8x32xf32>
    "tpu.trace_start"() <{level = 10 : i32, message = "gtd,gsd->gts"}> : () -> ()
    %cst = arith.constant dense<0.000000e+00> : vector<32x8x8xf32>
    %3 = tpu.matmul %0, %1, %cst {dimension_numbers = #tpu.dot_dimension_numbers<[2], [2], [1], [1], [0, 0, 0, 1, 1, 1], [0], [0]>} : vector<32x8x32xf32>, vector<32x8x32xf32>, vector<32x8x8xf32> -> vector<32x8x8xf32>
    "tpu.trace_stop"() : () -> ()
    %cst_8 = arith.constant dense<0xFF800000> : vector<32x8xf32>
    %4 = vector.multi_reduction <maximumf>, %3, %cst_8 [2] : vector<32x8x8xf32> to vector<32x8xf32>
    %5 = vector.shape_cast %4 : vector<32x8xf32> to vector<32x8x1xf32>
    %6 = vector.broadcast %5 : vector<32x8x1xf32> to vector<32x8x8xf32>
    %7 = arith.subf %3, %6 : vector<32x8x8xf32>
    %cst_9 = arith.constant 0.176776692 : f32
    %8 = vector.broadcast %cst_9 : f32 to vector<32x8x8xf32>
    %9 = arith.mulf %7, %8 : vector<32x8x8xf32>
    %10 = math.exp %9 : vector<32x8x8xf32>
    %cst_10 = arith.constant dense<0.000000e+00> : vector<32x8xf32>
    %11 = vector.multi_reduction <add>, %10, %cst_10 [2] : vector<32x8x8xf32> to vector<32x8xf32>
    %12 = vector.shape_cast %11 : vector<32x8xf32> to vector<32x8x1xf32>
    %13 = tpu.reciprocal %12 : vector<32x8x1xf32> -> vector<32x8x1xf32>
    %14 = vector.broadcast %13 : vector<32x8x1xf32> to vector<32x8x8xf32>
    %15 = arith.mulf %10, %14 : vector<32x8x8xf32>
    "tpu.trace_start"() <{level = 10 : i32, message = "gts,gsd->gtd"}> : () -> ()
    %cst_11 = arith.constant dense<0.000000e+00> : vector<32x8x32xf32>
    %16 = tpu.matmul %15, %2, %cst_11 {dimension_numbers = #tpu.dot_dimension_numbers<[2], [1], [1], [2], [0, 0, 0, 1, 1, 2], [0], [0]>} : vector<32x8x8xf32>, vector<32x8x32xf32>, vector<32x8x32xf32> -> vector<32x8x32xf32>
    "tpu.trace_stop"() : () -> ()
    %c0_12 = arith.constant 0 : index
    %c0_13 = arith.constant 0 : index
    %c0_14 = arith.constant 0 : index
    %17 = vector.load %arg4[%c0_12, %c0_13, %c0_14] : memref<32x8x32xf32, #tpu.memory_space<vmem>>, vector<32x8x32xf32>
    tpu.vector_store %arg4[%c0_12, %c0_13, %c0_14], %16 {strides = array<i32>} : memref<32x8x32xf32, #tpu.memory_space<vmem>>, vector<32x8x32xf32>,
    return
  }
  func.func @transform_0(%arg0: i32) -> (i32, i32, i32) {
    %c0_i32 = arith.constant 0 : i32
    %c0_i32_0 = arith.constant 0 : i32
    %c0_i32_1 = arith.constant 0 : i32
    return %arg0, %c0_i32, %c0_i32_0 : i32, i32, i32
  }
  func.func @transform_1(%arg0: i32) -> (i32, i32, i32) {
    %c0_i32 = arith.constant 0 : i32
    %c0_i32_0 = arith.constant 0 : i32
    %c0_i32_1 = arith.constant 0 : i32
    return %arg0, %c0_i32, %c0_i32_0 : i32, i32, i32
  }
  func.func @transform_2(%arg0: i32) -> (i32, i32, i32) {
    %c0_i32 = arith.constant 0 : i32
    %c0_i32_0 = arith.constant 0 : i32
    %c0_i32_1 = arith.constant 0 : i32
    return %arg0, %c0_i32, %c0_i32_0 : i32, i32, i32
  }
  func.func @transform_3(%arg0: i32) -> (i32, i32, i32) {
    %c0_i32 = arith.constant 0 : i32
    %c0_i32_0 = arith.constant 0 : i32
    %c0_i32_1 = arith.constant 0 : i32
    return %arg0, %c0_i32, %c0_i32_0 : i32, i32, i32
  }
}

</mosaic_0001>

<llo_original>
// kernel: tpu_custom_call.1
$region0: #{tpu_custom_call.1}
  #allocation0 [shape = 'u32[]', space=smem, size = 0x4, offset = 0x4, fixed_abs, tag = 'smem constant byte address 0x4 - core index']
  #allocation1 [shape = 'u32[144,128]{1,0:T(1,128)}', space=vmem, size = 0x12000, scoped, tag = 'internal scratch']
  %s0 = inlined_call_operand.vmem [shape: f32[128,8,32], index: 0, kind: input, shape index: {}]
  %s1 = inlined_call_operand.vmem [shape: f32[128,8,32], index: 1, kind: input, shape index: {}]
  %s2 = inlined_call_operand.vmem [shape: f32[128,8,32], index: 2, kind: input, shape index: {}]
  %s3 = inlined_call_operand.vmem [shape: f32[128,8,32], index: 3, kind: output, shape index: {}]
  %s4 = sld [smem:[#allocation0]]
  $region45: #{tpu_custom_call.1} parent=0
    _
  %s6 = ssub.s32 1, %s4
  %s7 = scalar_select 0, %s6, %s4
  loop: start=0, step=1, limit=6
  $region2: #{tpu_custom_call.1} parent=0 // loop_pre_header
    _
  $region3: #{tpu_custom_call.1} parent=0 // loop_header
    %s9 = sphi 0, %s13
    %p10 = scmp.ge.s32.totalorder %s9, 6
    %s19 = sphi 0, %s21
    %s22 = sphi 0, %s19
    %s23 = sphi 0, %s22
    %s39 = sphi 0, %s23
    %s45 = sphi 0, %s47
    %s48 = sphi 0, %s45
    %s49 = sphi 0, %s48
    %s65 = sphi 0, %s49
    %s71 = sphi 0, %s73
    %s74 = sphi 0, %s71
    %s75 = sphi 0, %s74
    %s91 = sphi 0, %s75
    %s97 = sphi 0, %s99
    %s100 = sphi 0, %s97
    %s101 = sphi 0, %s100
    %s117 = sphi 0, %s101
  $region4: #{tpu_custom_call.1} parent=0 // loop_header_branch
    %12 = sbr.rel (%p10) target = $region8
  $region5: #{tpu_custom_call.1} parent=0 // loop_body
    %s14 = ssub.s32 %s9, 1
    %s15 = ssub.s32 %s9, 2
    %s16 = sadd.s32 %s9, 1
    %s17 = ssub.s32 %s9, %s16
    %p18 = scmp.eq.s32.totalorder %s17, 0
    %s20 = sadd.s32 %s19, 1
    %s21 = scalar_select %p18, %s19, %s20
    %p24 = pneg %p18
    %p25 = scmp.eq.s32.totalorder %s9, 3
    %p26 = por %p24, %p25
    %p27 = scmp.ne.s32.totalorder %s19, %s22
    %p28 = scmp.eq.s32.totalorder %s9, 0
    %p29 = por %p27, %p28
    %p30 = scmp.ne.s32.totalorder %s19, %s22
    %p31 = scmp.eq.s32.totalorder %s14, 3
    %p32 = por %p30, %p31
    %p33 = scmp.ne.s32.totalorder %s22, %s23
    %p34 = scmp.eq.s32.totalorder %s14, 0
    %p35 = por %p33, %p34
    %p36 = scmp.ne.s32.totalorder %s22, %s23
    %p37 = scmp.eq.s32.totalorder %s15, 3
    %p38 = por %p36, %p37
    %p40 = scmp.ne.s32.totalorder %s23, %s39
    %p41 = scmp.eq.s32.totalorder %s15, 0
    %p42 = por %p40, %p41
    %s43 = ssub.s32 %s9, %s16
    %p44 = scmp.eq.s32.totalorder %s43, 0
    %s46 = sadd.s32 %s45, 1
    %s47 = scalar_select %p44, %s45, %s46
    %p50 = pneg %p44
    %p51 = scmp.eq.s32.totalorder %s9, 3
    %p52 = por %p50, %p51
    %p53 = scmp.ne.s32.totalorder %s45, %s48
    %p54 = scmp.eq.s32.totalorder %s9, 0
    %p55 = por %p53, %p54
    %p56 = scmp.ne.s32.totalorder %s45, %s48
    %p57 = scmp.eq.s32.totalorder %s14, 3
    %p58 = por %p56, %p57
    %p59 = scmp.ne.s32.totalorder %s48, %s49
    %p60 = scmp.eq.s32.totalorder %s14, 0
    %p61 = por %p59, %p60
    %p62 = scmp.ne.s32.totalorder %s48, %s49
    %p63 = scmp.eq.s32.totalorder %s15, 3
    %p64 = por %p62, %p63
    %p66 = scmp.ne.s32.totalorder %s49, %s65
    %p67 = scmp.eq.s32.totalorder %s15, 0
    %p68 = por %p66, %p67
    %s69 = ssub.s32 %s9, %s16
    %p70 = scmp.eq.s32.totalorder %s69, 0
    %s72 = sadd.s32 %s71, 1
    %s73 = scalar_select %p70, %s71, %s72
    %p76 = pneg %p70
    %p77 = scmp.eq.s32.totalorder %s9, 3
    %p78 = por %p76, %p77
    %p79 = scmp.ne.s32.totalorder %s71, %s74
    %p80 = scmp.eq.s32.totalorder %s9, 0
    %p81 = por %p79, %p80
    %p82 = scmp.ne.s32.totalorder %s71, %s74
    %p83 = scmp.eq.s32.totalorder %s14, 3
    %p84 = por %p82, %p83
    %p85 = scmp.ne.s32.totalorder %s74, %s75
    %p86 = scmp.eq.s32.totalorder %s14, 0
    %p87 = por %p85, %p86
    %p88 = scmp.ne.s32.totalorder %s74, %s75
    %p89 = scmp.eq.s32.totalorder %s15, 3
    %p90 = por %p88, %p89
    %p92 = scmp.ne.s32.totalorder %s75, %s91
    %p93 = scmp.eq.s32.totalorder %s15, 0
    %p94 = por %p92, %p93
    %s95 = ssub.s32 %s9, %s16
    %p96 = scmp.eq.s32.totalorder %s95, 0
    %s98 = sadd.s32 %s97, 1
    %s99 = scalar_select %p96, %s97, %s98
    %p102 = pneg %p96
    %p103 = scmp.eq.s32.totalorder %s9, 3
    %p104 = por %p102, %p103
    %p105 = scmp.ne.s32.totalorder %s97, %s100
    %p106 = scmp.eq.s32.totalorder %s9, 0
    %p107 = por %p105, %p106
    %p108 = scmp.ne.s32.totalorder %s97, %s100
    %p109 = scmp.eq.s32.totalorder %s14, 3
    %p110 = por %p108, %p109
    %p111 = scmp.ne.s32.totalorder %s100, %s101
    %p112 = scmp.eq.s32.totalorder %s14, 0
    %p113 = por %p111, %p112
    %p114 = scmp.ne.s32.totalorder %s100, %s101
    %p115 = scmp.eq.s32.totalorder %s15, 3
    %p116 = por %p114, %p115
    %p118 = scmp.ne.s32.totalorder %s101, %s117
    %p119 = scmp.eq.s32.totalorder %s15, 0
    %p120 = por %p118, %p119
    %p121 = scmp.le.s32.totalorder 1, %s9
    %p122 = scmp.lt.s32.totalorder %s9, 5
    %p123 = pnand %p121, %p122
    %p124 = pneg %p123
    // Predicated region
    $region9: #{tpu_custom_call.1} parent=5 // pred_check
      _
    $region10: #{tpu_custom_call.1} parent=5 // pred_check_branch
      %126 = sbr.rel (%p123) target = $region12
    $region11: #{tpu_custom_call.1} parent=5 // pred_region
      %s127 = ssub.s32 %s9, 1
    $region12: #{tpu_custom_call.1} parent=5 // pred_fallthru
      _
    %p128 = scmp.lt.s32.totalorder %s9, 4
    // Predicated region
    $region13: #{tpu_custom_call.1} parent=5 // pred_check
      %p129 = pneg %p128
    $region14: #{tpu_custom_call.1} parent=5 // pred_check_branch
      %131 = sbr.rel (%p129) target = $region16
    $region15: #{tpu_custom_call.1} parent=5 // pred_region
      // Predicated region
      $region17: #{tpu_custom_call.1} parent=15 // pred_check
        %p132 = pneg %p29
      $region18: #{tpu_custom_call.1} parent=15 // pred_check_branch
        %134 = sbr.rel (%p132) target = $region20
      $region19: #{tpu_custom_call.1} parent=15 // pred_region
        %s135 = smul.u32 32, %s9
        %p136 = scmp.lt.s32.totalorder %s135, 127
        %s137 = scalar_select %p136, %s135, 127
        %s138 = smul.addr %s137, 8
        %s139 = scalar_lea.vmem %s0, %s138
        %s140 = smul.u32 32, %s9
      $region20: #{tpu_custom_call.1} parent=15 // pred_fallthru
        _
      // Predicated region
      $region21: #{tpu_custom_call.1} parent=15 // pred_check
        %p141 = pneg %p55
      $region22: #{tpu_custom_call.1} parent=15 // pred_check_branch
        %143 = sbr.rel (%p141) target = $region24
      $region23: #{tpu_custom_call.1} parent=15 // pred_region
        %s144 = smul.u32 32, %s9
        %p145 = scmp.lt.s32.totalorder %s144, 127
        %s146 = scalar_select %p145, %s144, 127
        %s147 = smul.addr %s146, 8
        %s148 = scalar_lea.vmem %s1, %s147
        %s149 = smul.u32 32, %s9
      $region24: #{tpu_custom_call.1} parent=15 // pred_fallthru
        _
      // Predicated region
      $region25: #{tpu_custom_call.1} parent=15 // pred_check
        %p150 = pneg %p81
      $region26: #{tpu_custom_call.1} parent=15 // pred_check_branch
        %152 = sbr.rel (%p150) target = $region28
      $region27: #{tpu_custom_call.1} parent=15 // pred_region
        %s153 = smul.u32 32, %s9
        %p154 = scmp.lt.s32.totalorder %s153, 127
        %s155 = scalar_select %p154, %s153, 127
        %s156 = smul.addr %s155, 8
        %s157 = scalar_lea.vmem %s2, %s156
        %s158 = smul.u32 32, %s9
      $region28: #{tpu_custom_call.1} parent=15 // pred_fallthru
        _
    $region16: #{tpu_custom_call.1} parent=5 // pred_fallthru
      _
    %p159 = scmp.le.s32.totalorder 1, %s9
    %p160 = scmp.lt.s32.totalorder %s9, 5
    %p161 = pnand %p159, %p160
    %p162 = pneg %p161
    // Predicated region
    $region29: #{tpu_custom_call.1} parent=5 // pred_check
      _
    $region30: #{tpu_custom_call.1} parent=5 // pred_check_branch
      %164 = sbr.rel (%p161) target = $region32
    $region31: #{tpu_custom_call.1} parent=5 // pred_region
      %s165 = ssub.s32 %s9, 1
      %s166 = smul.u32 32, %s14
      %p167 = scmp.lt.s32.totalorder %s166, 127
      %s168 = scalar_select %p167, %s166, 127
      %s169 = smul.addr %s168, 8
      %s170 = scalar_lea.vmem %s0, %s169
      %p171 = pneg %p35
      %p172 = pneg %p32
      %s173 = smul.u32 32, %s14
      %p174 = scmp.lt.s32.totalorder %s173, 127
      %s175 = scalar_select %p174, %s173, 127
      %s176 = smul.addr %s175, 8
      %s177 = scalar_lea.vmem %s1, %s176
      %p178 = pneg %p61
      %p179 = pneg %p58
      %s180 = smul.u32 32, %s14
      %p181 = scmp.lt.s32.totalorder %s180, 127
      %s182 = scalar_select %p181, %s180, 127
      %s183 = smul.addr %s182, 8
      %s184 = scalar_lea.vmem %s2, %s183
      %p185 = pneg %p87
      %p186 = pneg %p84
      %p187 = pneg %p113
      %p188 = pneg %p110
      %s189 = smul.u32 32, %s14
      %p190 = scmp.lt.s32.totalorder %s189, 127
      %s191 = scalar_select %p190, %s189, 127
      %s192 = smul.addr %s191, 8
      %s193 = scalar_lea.vmem %s3, %s192
      %s194 = smul.u32 32, %s14
      %p195 = scmp.lt.s32.totalorder %s194, 127
      %s196 = scalar_select %p195, %s194, 127
      %s197 = smul.addr %s196, 8
      %s198 = scalar_lea.vmem %s0, %s197
      %s199 = smul.u32 32, %s14
      %s200 = smul.u32 32, %s14
      %p201 = scmp.lt.s32.totalorder %s200, 127
      %s202 = scalar_select %p201, %s200, 127
      %s203 = smul.addr %s202, 8
      %s204 = scalar_lea.vmem %s1, %s203
      %s205 = smul.u32 32, %s14
      %s206 = smul.u32 32, %s14
      %p207 = scmp.lt.s32.totalorder %s206, 127
      %s208 = scalar_select %p207, %s206, 127
      %s209 = smul.addr %s208, 8
      %s210 = scalar_lea.vmem %s2, %s209
      %s211 = smul.u32 32, %s14
      %s212 = smul.u32 32, %s14
      %p213 = scmp.lt.s32.totalorder %s212, 127
      %s214 = scalar_select %p213, %s212, 127
      %s215 = smul.addr %s214, 8
      %s216 = scalar_lea.vmem %s3, %s215
      %s217 = smul.u32 32, %s14
      %v218 = vld [vmem:[%s198] sm:$0xff]
      %v219 = vld [vmem:[%s198 + $0x8] sm:$0xff]
      %v220 = vld [vmem:[%s198 + $0x10] sm:$0xff]
      %v221 = vld [vmem:[%s198 + $0x18] sm:$0xff]
      %v222 = vld [vmem:[%s198 + $0x20] sm:$0xff]
      %v223 = vld [vmem:[%s198 + $0x28] sm:$0xff]
      %v224 = vld [vmem:[%s198 + $0x30] sm:$0xff]
      %v225 = vld [vmem:[%s198 + $0x38] sm:$0xff]
      %v226 = vld [vmem:[%s198 + $0x40] sm:$0xff]
      %v227 = vld [vmem:[%s198 + $0x48] sm:$0xff]
      %v228 = vld [vmem:[%s198 + $0x50] sm:$0xff]
      %v229 = vld [vmem:[%s198 + $0x58] sm:$0xff]
      %v230 = vld [vmem:[%s198 + $0x60] sm:$0xff]
      %v231 = vld [vmem:[%s198 + $0x68] sm:$0xff]
      %v232 = vld [vmem:[%s198 + $0x70] sm:$0xff]
      %v233 = vld [vmem:[%s198 + $0x78] sm:$0xff]
      %v234 = vld [vmem:[%s198 + $0x80] sm:$0xff]
      %v235 = vld [vmem:[%s198 + $0x88] sm:$0xff]
      %v236 = vld [vmem:[%s198 + $0x90] sm:$0xff]
      %v237 = vld [vmem:[%s198 + $0x98] sm:$0xff]
      %v238 = vld [vmem:[%s198 + $0xa0] sm:$0xff]
      %v239 = vld [vmem:[%s198 + $0xa8] sm:$0xff]
      %v240 = vld [vmem:[%s198 + $0xb0] sm:$0xff]
      %v241 = vld [vmem:[%s198 + $0xb8] sm:$0xff]
      %v242 = vld [vmem:[%s198 + $0xc0] sm:$0xff]
      %v243 = vld [vmem:[%s198 + $0xc8] sm:$0xff]
      %v244 = vld [vmem:[%s198 + $0xd0] sm:$0xff]
      %v245 = vld [vmem:[%s198 + $0xd8] sm:$0xff]
      %v246 = vld [vmem:[%s198 + $0xe0] sm:$0xff]
      %v247 = vld [vmem:[%s198 + $0xe8] sm:$0xff]
      %v248 = vld [vmem:[%s198 + $0xf0] sm:$0xff]
      %v249 = vld [vmem:[%s198 + $0xf8] sm:$0xff]
      %v250 = vld [vmem:[%s204] sm:$0xff]
      %v251 = vld [vmem:[%s204 + $0x8] sm:$0xff]
      %v252 = vld [vmem:[%s204 + $0x10] sm:$0xff]
      %v253 = vld [vmem:[%s204 + $0x18] sm:$0xff]
      %v254 = vld [vmem:[%s204 + $0x20] sm:$0xff]
      %v255 = vld [vmem:[%s204 + $0x28] sm:$0xff]
      %v256 = vld [vmem:[%s204 + $0x30] sm:$0xff]
      %v257 = vld [vmem:[%s204 + $0x38] sm:$0xff]
      %v258 = vld [vmem:[%s204 + $0x40] sm:$0xff]
      %v259 = vld [vmem:[%s204 + $0x48] sm:$0xff]
      %v260 = vld [vmem:[%s204 + $0x50] sm:$0xff]
      %v261 = vld [vmem:[%s204 + $0x58] sm:$0xff]
      %v262 = vld [vmem:[%s204 + $0x60] sm:$0xff]
      %v263 = vld [vmem:[%s204 + $0x68] sm:$0xff]
      %v264 = vld [vmem:[%s204 + $0x70] sm:$0xff]
      %v265 = vld [vmem:[%s204 + $0x78] sm:$0xff]
      %v266 = vld [vmem:[%s204 + $0x80] sm:$0xff]
      %v267 = vld [vmem:[%s204 + $0x88] sm:$0xff]
      %v268 = vld [vmem:[%s204 + $0x90] sm:$0xff]
      %v269 = vld [vmem:[%s204 + $0x98] sm:$0xff]
      %v270 = vld [vmem:[%s204 + $0xa0] sm:$0xff]
      %v271 = vld [vmem:[%s204 + $0xa8] sm:$0xff]
      %v272 = vld [vmem:[%s204 + $0xb0] sm:$0xff]
      %v273 = vld [vmem:[%s204 + $0xb8] sm:$0xff]
      %v274 = vld [vmem:[%s204 + $0xc0] sm:$0xff]
      %v275 = vld [vmem:[%s204 + $0xc8] sm:$0xff]
      %v276 = vld [vmem:[%s204 + $0xd0] sm:$0xff]
      %v277 = vld [vmem:[%s204 + $0xd8] sm:$0xff]
      %v278 = vld [vmem:[%s204 + $0xe0] sm:$0xff]
      %v279 = vld [vmem:[%s204 + $0xe8] sm:$0xff]
      %v280 = vld [vmem:[%s204 + $0xf0] sm:$0xff]
      %v281 = vld [vmem:[%s204 + $0xf8] sm:$0xff]
      %v282 = vld [vmem:[%s210] sm:$0xff]
      %v283 = vld [vmem:[%s210 + $0x8] sm:$0xff]
      %v284 = vld [vmem:[%s210 + $0x10] sm:$0xff]
      %v285 = vld [vmem:[%s210 + $0x18] sm:$0xff]
      %v286 = vld [vmem:[%s210 + $0x20] sm:$0xff]
      %v287 = vld [vmem:[%s210 + $0x28] sm:$0xff]
      %v288 = vld [vmem:[%s210 + $0x30] sm:$0xff]
      %v289 = vld [vmem:[%s210 + $0x38] sm:$0xff]
      %v290 = vld [vmem:[%s210 + $0x40] sm:$0xff]
      %v291 = vld [vmem:[%s210 + $0x48] sm:$0xff]
      %v292 = vld [vmem:[%s210 + $0x50] sm:$0xff]
      %v293 = vld [vmem:[%s210 + $0x58] sm:$0xff]
      %v294 = vld [vmem:[%s210 + $0x60] sm:$0xff]
      %v295 = vld [vmem:[%s210 + $0x68] sm:$0xff]
      %v296 = vld [vmem:[%s210 + $0x70] sm:$0xff]
      %v297 = vld [vmem:[%s210 + $0x78] sm:$0xff]
      %v298 = vld [vmem:[%s210 + $0x80] sm:$0xff]
      %v299 = vld [vmem:[%s210 + $0x88] sm:$0xff]
      %v300 = vld [vmem:[%s210 + $0x90] sm:$0xff]
      %v301 = vld [vmem:[%s210 + $0x98] sm:$0xff]
      %v302 = vld [vmem:[%s210 + $0xa0] sm:$0xff]
      %v303 = vld [vmem:[%s210 + $0xa8] sm:$0xff]
      %v304 = vld [vmem:[%s210 + $0xb0] sm:$0xff]
      %v305 = vld [vmem:[%s210 + $0xb8] sm:$0xff]
      %v306 = vld [vmem:[%s210 + $0xc0] sm:$0xff]
      %v307 = vld [vmem:[%s210 + $0xc8] sm:$0xff]
      %v308 = vld [vmem:[%s210 + $0xd0] sm:$0xff]
      %v309 = vld [vmem:[%s210 + $0xd8] sm:$0xff]
      %v310 = vld [vmem:[%s210 + $0xe0] sm:$0xff]
      %v311 = vld [vmem:[%s210 + $0xe8] sm:$0xff]
      %v312 = vld [vmem:[%s210 + $0xf0] sm:$0xff]
      %v313 = vld [vmem:[%s210 + $0xf8] sm:$0xff]
      %vm314 = vcmask 261120
      %v316 = vsel %vm314, %v218, 0
      %v319 = vsel %vm314, %v250, 0
      %321 = vmatprep.subr.mxu0 0.0
      %322 = vmatpush1.xpose.msra.mxu0 %v319
      %323 = vmatprep.subr.mxu0 0.0
      %324 = vmatpush1.xpose.msra.mxu0 0.0
      %325 = vmatprep.subr.mxu0 0.0
      %326 = vmatpush1.xpose.msra.mxu0 0.0
      %327 = vmatprep.subr.mxu0 0.0
      %328 = vmatpush1.xpose.msra.mxu0 0.0
      %329 = vmatprep.subr.mxu0 0.0
      %330 = vmatpush1.xpose.msra.mxu0 0.0
      %331 = vmatprep.subr.mxu0 0.0
      %332 = vmatpush1.xpose.msra.mxu0 0.0
      %333 = vmatprep.subr.mxu0 0.0
      %334 = vmatpush1.xpose.msra.mxu0 0.0
      %335 = vmatprep.subr.mxu0 0.0
      %336 = vmatpush1.xpose.msra.mxu0 0.0
      %337 = vmatprep.subr.mxu0 0.0
      %338 = vmatpush1.xpose.msra.mxu0 0.0
      %339 = vmatprep.subr.mxu0 0.0
      %340 = vmatpush1.xpose.msra.mxu0 0.0
      %341 = vmatprep.subr.mxu0 0.0
      %342 = vmatpush1.xpose.msra.mxu0 0.0
      %343 = vmatprep.subr.mxu0 0.0
      %344 = vmatpush1.xpose.msra.mxu0 0.0
      %345 = vmatprep.subr.mxu0 0.0
      %346 = vmatpush1.xpose.msra.mxu0 0.0
      %347 = vmatprep.subr.mxu0 0.0
      %348 = vmatpush1.xpose.msra.mxu0 0.0
      %349 = vmatprep.subr.mxu0 0.0
      %350 = vmatpush1.xpose.msra.mxu0 0.0
      %351 = vmatprep.subr.mxu0 0.0
      %352 = vmatpush1.xpose.msra.mxu0 0.0
      %353 = vmatprep.subr.mxu0 0.0
      %354 = vmatpush1.xpose.msra.mxu0 0.0
      %355 = vmatprep.subr.mxu0 0.0
      %356 = vmatpush1.xpose.msra.mxu0 0.0
      %357 = vmatprep.subr.mxu0 0.0
      %358 = vmatpush1.xpose.msra.mxu0 0.0
      %359 = vmatprep.subr.mxu0 0.0
      %360 = vmatpush1.xpose.msra.mxu0 0.0
      %361 = vmatprep.subr.mxu0 0.0
      %362 = vmatpush1.xpose.msra.mxu0 0.0
      %363 = vmatprep.subr.mxu0 0.0
      %364 = vmatpush1.xpose.msra.mxu0 0.0
      %365 = vmatprep.subr.mxu0 0.0
      %366 = vmatpush1.xpose.msra.mxu0 0.0
      %367 = vmatprep.subr.mxu0 0.0
      %368 = vmatpush1.xpose.msra.mxu0 0.0
      %369 = vmatprep.subr.mxu0 0.0
      %370 = vmatpush1.xpose.msra.mxu0 0.0
      %371 = vmatprep.subr.mxu0 0.0
      %372 = vmatpush1.xpose.msra.mxu0 0.0
      %373 = vmatprep.subr.mxu0 0.0
      %374 = vmatpush1.xpose.msra.mxu0 0.0
      %375 = vmatprep.subr.mxu0 0.0
      %376 = vmatpush1.xpose.msra.mxu0 0.0
      %377 = vmatprep.subr.mxu0 0.0
      %378 = vmatpush1.xpose.msra.mxu0 0.0
      %379 = vmatprep.subr.mxu0 0.0
      %380 = vmatpush1.xpose.msra.mxu0 0.0
      %381 = vmatprep.subr.mxu0 0.0
      %382 = vmatpush1.xpose.msra.mxu0 0.0
      %383 = vmatprep.subr.mxu0 0.0
      %384 = vmatpush1.xpose.msra.mxu0 0.0
      %385 = vmatprep.mubr.f32.mxu0 0.0
      %386 = vmatmul.mubr.f32.gmra.mrb[0].mxu0 %v316
      %v387 = vpop.f32.mrb[0].mxu0
      %v388 = vadd.f32 0.0, %v387
      %v389 = vpop.f32.mrb[0].mxu0
      %390 = vdwg.mxu0
      %v392 = vsel %vm314, %v219, 0
      %v395 = vsel %vm314, %v251, 0
      %397 = vmatprep.subr.mxu0 0.0
      %398 = vmatpush1.xpose.msra.mxu0 %v395
      %399 = vmatprep.subr.mxu0 0.0
      %400 = vmatpush1.xpose.msra.mxu0 0.0
      %401 = vmatprep.subr.mxu0 0.0
      %402 = vmatpush1.xpose.msra.mxu0 0.0
      %403 = vmatprep.subr.mxu0 0.0
      %404 = vmatpush1.xpose.msra.mxu0 0.0
      %405 = vmatprep.subr.mxu0 0.0
      %406 = vmatpush1.xpose.msra.mxu0 0.0
      %407 = vmatprep.subr.mxu0 0.0
      %408 = vmatpush1.xpose.msra.mxu0 0.0
      %409 = vmatprep.subr.mxu0 0.0
      %410 = vmatpush1.xpose.msra.mxu0 0.0
      %411 = vmatprep.subr.mxu0 0.0
      %412 = vmatpush1.xpose.msra.mxu0 0.0
      %413 = vmatprep.subr.mxu0 0.0
      %414 = vmatpush1.xpose.msra.mxu0 0.0
      %415 = vmatprep.subr.mxu0 0.0
      %416 = vmatpush1.xpose.msra.mxu0 0.0
      %417 = vmatprep.subr.mxu0 0.0
      %418 = vmatpush1.xpose.msra.mxu0 0.0
      %419 = vmatprep.subr.mxu0 0.0
      %420 = vmatpush1.xpose.msra.mxu0 0.0
      %421 = vmatprep.subr.mxu0 0.0
      %422 = vmatpush1.xpose.msra.mxu0 0.0
      %423 = vmatprep.subr.mxu0 0.0
      %424 = vmatpush1.xpose.msra.mxu0 0.0
      %425 = vmatprep.subr.mxu0 0.0
      %426 = vmatpush1.xpose.msra.mxu0 0.0
      %427 = vmatprep.subr.mxu0 0.0
      %428 = vmatpush1.xpose.msra.mxu0 0.0
      %429 = vmatprep.subr.mxu0 0.0
      %430 = vmatpush1.xpose.msra.mxu0 0.0
      %431 = vmatprep.subr.mxu0 0.0
      %432 = vmatpush1.xpose.msra.mxu0 0.0
      %433 = vmatprep.subr.mxu0 0.0
      %434 = vmatpush1.xpose.msra.mxu0 0.0
      %435 = vmatprep.subr.mxu0 0.0
      %436 = vmatpush1.xpose.msra.mxu0 0.0
      %437 = vmatprep.subr.mxu0 0.0
      %438 = vmatpush1.xpose.msra.mxu0 0.0
      %439 = vmatprep.subr.mxu0 0.0
      %440 = vmatpush1.xpose.msra.mxu0 0.0
      %441 = vmatprep.subr.mxu0 0.0
      %442 = vmatpush1.xpose.msra.mxu0 0.0
      %443 = vmatprep.subr.mxu0 0.0
      %444 = vmatpush1.xpose.msra.mxu0 0.0
      %445 = vmatprep.subr.mxu0 0.0
      %446 = vmatpush1.xpose.msra.mxu0 0.0
      %447 = vmatprep.subr.mxu0 0.0
      %448 = vmatpush1.xpose.msra.mxu0 0.0
      %449 = vmatprep.subr.mxu0 0.0
      %450 = vmatpush1.xpose.msra.mxu0 0.0
      %451 = vmatprep.subr.mxu0 0.0
      %452 = vmatpush1.xpose.msra.mxu0 0.0
      %453 = vmatprep.subr.mxu0 0.0
      %454 = vmatpush1.xpose.msra.mxu0 0.0
      %455 = vmatprep.subr.mxu0 0.0
      %456 = vmatpush1.xpose.msra.mxu0 0.0
      %457 = vmatprep.subr.mxu0 0.0
      %458 = vmatpush1.xpose.msra.mxu0 0.0
      %459 = vmatprep.subr.mxu0 0.0
      %460 = vmatpush1.xpose.msra.mxu0 0.0
      %461 = vmatprep.mubr.f32.mxu0 0.0
      %462 = vmatmul.mubr.f32.gmra.mrb[0].mxu0 %v392
      %v463 = vpop.f32.mrb[0].mxu0
      %v464 = vadd.f32 0.0, %v463
      %v465 = vpop.f32.mrb[0].mxu0
      %466 = vdwg.mxu0
      %v468 = vsel %vm314, %v220, 0
      %v471 = vsel %vm314, %v252, 0
      %473 = vmatprep.subr.mxu0 0.0
      %474 = vmatpush1.xpose.msra.mxu0 %v471
      %475 = vmatprep.subr.mxu0 0.0
      %476 = vmatpush1.xpose.msra.mxu0 0.0
      %477 = vmatprep.subr.mxu0 0.0
      %478 = vmatpush1.xpose.msra.mxu0 0.0
      %479 = vmatprep.subr.mxu0 0.0
      %480 = vmatpush1.xpose.msra.mxu0 0.0
      %481 = vmatprep.subr.mxu0 0.0
      %482 = vmatpush1.xpose.msra.mxu0 0.0
      %483 = vmatprep.subr.mxu0 0.0
      %484 = vmatpush1.xpose.msra.mxu0 0.0
      %485 = vmatprep.subr.mxu0 0.0
      %486 = vmatpush1.xpose.msra.mxu0 0.0
      %487 = vmatprep.subr.mxu0 0.0
      %488 = vmatpush1.xpose.msra.mxu0 0.0
      %489 = vmatprep.subr.mxu0 0.0
      %490 = vmatpush1.xpose.msra.mxu0 0.0
      %491 = vmatprep.subr.mxu0 0.0
      %492 = vmatpush1.xpose.msra.mxu0 0.0
      %493 = vmatprep.subr.mxu0 0.0
      %494 = vmatpush1.xpose.msra.mxu0 0.0
      %495 = vmatprep.subr.mxu0 0.0
      %496 = vmatpush1.xpose.msra.mxu0 0.0
      %497 = vmatprep.subr.mxu0 0.0
      %498 = vmatpush1.xpose.msra.mxu0 0.0
      %499 = vmatprep.subr.mxu0 0.0
      %500 = vmatpush1.xpose.msra.mxu0 0.0
      %501 = vmatprep.subr.mxu0 0.0
      %502 = vmatpush1.xpose.msra.mxu0 0.0
      %503 = vmatprep.subr.mxu0 0.0
      %504 = vmatpush1.xpose.msra.mxu0 0.0
      %505 = vmatprep.subr.mxu0 0.0
      %506 = vmatpush1.xpose.msra.mxu0 0.0
      %507 = vmatprep.subr.mxu0 0.0
      %508 = vmatpush1.xpose.msra.mxu0 0.0
      %509 = vmatprep.subr.mxu0 0.0
      %510 = vmatpush1.xpose.msra.mxu0 0.0
      %511 = vmatprep.subr.mxu0 0.0
      %512 = vmatpush1.xpose.msra.mxu0 0.0
      %513 = vmatprep.subr.mxu0 0.0
      %514 = vmatpush1.xpose.msra.mxu0 0.0
      %515 = vmatprep.subr.mxu0 0.0
      %516 = vmatpush1.xpose.msra.mxu0 0.0
      %517 = vmatprep.subr.mxu0 0.0
      %518 = vmatpush1.xpose.msra.mxu0 0.0
      %519 = vmatprep.subr.mxu0 0.0
      %520 = vmatpush1.xpose.msra.mxu0 0.0
      %521 = vmatprep.subr.mxu0 0.0
      %522 = vmatpush1.xpose.msra.mxu0 0.0
      %523 = vmatprep.subr.mxu0 0.0
      %524 = vmatpush1.xpose.msra.mxu0 0.0
      %525 = vmatprep.subr.mxu0 0.0
      %526 = vmatpush1.xpose.msra.mxu0 0.0
      %527 = vmatprep.subr.mxu0 0.0
      %528 = vmatpush1.xpose.msra.mxu0 0.0
      %529 = vmatprep.subr.mxu0 0.0
      %530 = vmatpush1.xpose.msra.mxu0 0.0
      %531 = vmatprep.subr.mxu0 0.0
      %532 = vmatpush1.xpose.msra.mxu0 0.0
      %533 = vmatprep.subr.mxu0 0.0
      %534 = vmatpush1.xpose.msra.mxu0 0.0
      %535 = vmatprep.subr.mxu0 0.0
      %536 = vmatpush1.xpose.msra.mxu0 0.0
      %537 = vmatprep.mubr.f32.mxu0 0.0
      %538 = vmatmul.mubr.f32.gmra.mrb[0].mxu0 %v468
      %v539 = vpop.f32.mrb[0].mxu0
      %v540 = vadd.f32 0.0, %v539
      %v541 = vpop.f32.mrb[0].mxu0
      %542 = vdwg.mxu0
      %v544 = vsel %vm314, %v221, 0
      %v547 = vsel %vm314, %v253, 0
      %549 = vmatprep.subr.mxu0 0.0
      %550 = vmatpush1.xpose.msra.mxu0 %v547
      %551 = vmatprep.subr.mxu0 0.0
      %552 = vmatpush1.xpose.msra.mxu0 0.0
      %553 = vmatprep.subr.mxu0 0.0
      %554 = vmatpush1.xpose.msra.mxu0 0.0
      %555 = vmatprep.subr.mxu0 0.0
      %556 = vmatpush1.xpose.msra.mxu0 0.0
      %557 = vmatprep.subr.mxu0 0.0
      %558 = vmatpush1.xpose.msra.mxu0 0.0
      %559 = vmatprep.subr.mxu0 0.0
      %560 = vmatpush1.xpose.msra.mxu0 0.0
      %561 = vmatprep.subr.mxu0 0.0
      %562 = vmatpush1.xpose.msra.mxu0 0.0
      %563 = vmatprep.subr.mxu0 0.0
      %564 = vmatpush1.xpose.msra.mxu0 0.0
      %565 = vmatprep.subr.mxu0 0.0
      %566 = vmatpush1.xpose.msra.mxu0 0.0
      %567 = vmatprep.subr.mxu0 0.0
      %568 = vmatpush1.xpose.msra.mxu0 0.0
      %569 = vmatprep.subr.mxu0 0.0
      %570 = vmatpush1.xpose.msra.mxu0 0.0
      %571 = vmatprep.subr.mxu0 0.0
      %572 = vmatpush1.xpose.msra.mxu0 0.0
      %573 = vmatprep.subr.mxu0 0.0
      %574 = vmatpush1.xpose.msra.mxu0 0.0
      %575 = vmatprep.subr.mxu0 0.0
      %576 = vmatpush1.xpose.msra.mxu0 0.0
      %577 = vmatprep.subr.mxu0 0.0
      %578 = vmatpush1.xpose.msra.mxu0 0.0
      %579 = vmatprep.subr.mxu0 0.0
      %580 = vmatpush1.xpose.msra.mxu0 0.0
      %581 = vmatprep.subr.mxu0 0.0
      %582 = vmatpush1.xpose.msra.mxu0 0.0
      %583 = vmatprep.subr.mxu0 0.0
      %584 = vmatpush1.xpose.msra.mxu0 0.0
      %585 = vmatprep.subr.mxu0 0.0
      %586 = vmatpush1.xpose.msra.mxu0 0.0
      %587 = vmatprep.subr.mxu0 0.0
      %588 = vmatpush1.xpose.msra.mxu0 0.0
      %589 = vmatprep.subr.mxu0 0.0
      %590 = vmatpush1.xpose.msra.mxu0 0.0
      %591 = vmatprep.subr.mxu0 0.0
      %592 = vmatpush1.xpose.msra.mxu0 0.0
      %593 = vmatprep.subr.mxu0 0.0
      %594 = vmatpush1.xpose.msra.mxu0 0.0
      %595 = vmatprep.subr.mxu0 0.0
      %596 = vmatpush1.xpose.msra.mxu0 0.0
      %597 = vmatprep.subr.mxu0 0.0
      %598 = vmatpush1.xpose.msra.mxu0 0.0
      %599 = vmatprep.subr.mxu0 0.0
      %600 = vmatpush1.xpose.msra.mxu0 0.0
      %601 = vmatprep.subr.mxu0 0.0
      %602 = vmatpush1.xpose.msra.mxu0 0.0
      %603 = vmatprep.subr.mxu0 0.0
      %604 = vmatpush1.xpose.msra.mxu0 0.0
      %605 = vmatprep.subr.mxu0 0.0
      %606 = vmatpush1.xpose.msra.mxu0 0.0
      %607 = vmatprep.subr.mxu0 0.0
      %608 = vmatpush1.xpose.msra.mxu0 0.0
      %609 = vmatprep.subr.mxu0 0.0
      %610 = vmatpush1.xpose.msra.mxu0 0.0
      %611 = vmatprep.subr.mxu0 0.0
      %612 = vmatpush1.xpose.msra.mxu0 0.0
      %613 = vmatprep.mubr.f32.mxu0 0.0
      %614 = vmatmul.mubr.f32.gmra.mrb[0].mxu0 %v544
      %v615 = vpop.f32.mrb[0].mxu0
      %v616 = vadd.f32 0.0, %v615
      %v617 = vpop.f32.mrb[0].mxu0
      %618 = vdwg.mxu0
      %v620 = vsel %vm314, %v222, 0
      %v623 = vsel %vm314, %v254, 0
      %625 = vmatprep.subr.mxu0 0.0
      %626 = vmatpush1.xpose.msra.mxu0 %v623
      %627 = vmatprep.subr.mxu0 0.0
      %628 = vmatpush1.xpose.msra.mxu0 0.0
      %629 = vmatprep.subr.mxu0 0.0
      %630 = vmatpush1.xpose.msra.mxu0 0.0
      %631 = vmatprep.subr.mxu0 0.0
      %632 = vmatpush1.xpose.msra.mxu0 0.0
      %633 = vmatprep.subr.mxu0 0.0
      %634 = vmatpush1.xpose.msra.mxu0 0.0
      %635 = vmatprep.subr.mxu0 0.0
      %636 = vmatpush1.xpose.msra.mxu0 0.0
      %637 = vmatprep.subr.mxu0 0.0
      %638 = vmatpush1.xpose.msra.mxu0 0.0
      %639 = vmatprep.subr.mxu0 0.0
      %640 = vmatpush1.xpose.msra.mxu0 0.0
      %641 = vmatprep.subr.mxu0 0.0
      %642 = vmatpush1.xpose.msra.mxu0 0.0
      %643 = vmatprep.subr.mxu0 0.0
      %644 = vmatpush1.xpose.msra.mxu0 0.0
      %645 = vmatprep.subr.mxu0 0.0
      %646 = vmatpush1.xpose.msra.mxu0 0.0
      %647 = vmatprep.subr.mxu0 0.0
      %648 = vmatpush1.xpose.msra.mxu0 0.0
      %649 = vmatprep.subr.mxu0 0.0
      %650 = vmatpush1.xpose.msra.mxu0 0.0
      %651 = vmatprep.subr.mxu0 0.0
      %652 = vmatpush1.xpose.msra.mxu0 0.0
      %653 = vmatprep.subr.mxu0 0.0
      %654 = vmatpush1.xpose.msra.mxu0 0.0
      %655 = vmatprep.subr.mxu0 0.0
      %656 = vmatpush1.xpose.msra.mxu0 0.0
      %657 = vmatprep.subr.mxu0 0.0
      %658 = vmatpush1.xpose.msra.mxu0 0.0
      %659 = vmatprep.subr.mxu0 0.0
      %660 = vmatpush1.xpose.msra.mxu0 0.0
      %661 = vmatprep.subr.mxu0 0.0
      %662 = vmatpush1.xpose.msra.mxu0 0.0
      %663 = vmatprep.subr.mxu0 0.0
      %664 = vmatpush1.xpose.msra.mxu0 0.0
      %665 = vmatprep.subr.mxu0 0.0
      %666 = vmatpush1.xpose.msra.mxu0 0.0
      %667 = vmatprep.subr.mxu0 0.0
      %668 = vmatpush1.xpose.msra.mxu0 0.0
      %669 = vmatprep.subr.mxu0 0.0
      %670 = vmatpush1.xpose.msra.mxu0 0.0
      %671 = vmatprep.subr.mxu0 0.0
      %672 = vmatpush1.xpose.msra.mxu0 0.0
      %673 = vmatprep.subr.mxu0 0.0
      %674 = vmatpush1.xpose.msra.mxu0 0.0
      %675 = vmatprep.subr.mxu0 0.0
      %676 = vmatpush1.xpose.msra.mxu0 0.0
      %677 = vmatprep.subr.mxu0 0.0
      %678 = vmatpush1.xpose.msra.mxu0 0.0
      %679 = vmatprep.subr.mxu0 0.0
      %680 = vmatpush1.xpose.msra.mxu0 0.0
      %681 = vmatprep.subr.mxu0 0.0
      %682 = vmatpush1.xpose.msra.mxu0 0.0
      %683 = vmatprep.subr.mxu0 0.0
      %684 = vmatpush1.xpose.msra.mxu0 0.0
      %685 = vmatprep.subr.mxu0 0.0
      %686 = vmatpush1.xpose.msra.mxu0 0.0
      %687 = vmatprep.subr.mxu0 0.0
      %688 = vmatpush1.xpose.msra.mxu0 0.0
      %689 = vmatprep.mubr.f32.mxu0 0.0
      %690 = vmatmul.mubr.f32.gmra.mrb[0].mxu0 %v620
      %v691 = vpop.f32.mrb[0].mxu0
      %v692 = vadd.f32 0.0, %v691
      %v693 = vpop.f32.mrb[0].mxu0
      %694 = vdwg.mxu0
      %v696 = vsel %vm314, %v223, 0
      %v699 = vsel %vm314, %v255, 0
      %701 = vmatprep.subr.mxu0 0.0
      %702 = vmatpush1.xpose.msra.mxu0 %v699
      %703 = vmatprep.subr.mxu0 0.0
      %704 = vmatpush1.xpose.msra.mxu0 0.0
      %705 = vmatprep.subr.mxu0 0.0
      %706 = vmatpush1.xpose.msra.mxu0 0.0
      %707 = vmatprep.subr.mxu0 0.0
      %708 = vmatpush1.xpose.msra.mxu0 0.0
      %709 = vmatprep.subr.mxu0 0.0
      %710 = vmatpush1.xpose.msra.mxu0 0.0
      %711 = vmatprep.subr.mxu0 0.0
      %712 = vmatpush1.xpose.msra.mxu0 0.0
      %713 = vmatprep.subr.mxu0 0.0
      %714 = vmatpush1.xpose.msra.mxu0 0.0
      %715 = vmatprep.subr.mxu0 0.0
      %716 = vmatpush1.xpose.msra.mxu0 0.0
      %717 = vmatprep.subr.mxu0 0.0
      %718 = vmatpush1.xpose.msra.mxu0 0.0
      %719 = vmatprep.subr.mxu0 0.0
      %720 = vmatpush1.xpose.msra.mxu0 0.0
      %721 = vmatprep.subr.mxu0 0.0
      %722 = vmatpush1.xpose.msra.mxu0 0.0
      %723 = vmatprep.subr.mxu0 0.0
      %724 = vmatpush1.xpose.msra.mxu0 0.0
      %725 = vmatprep.subr.mxu0 0.0
      %726 = vmatpush1.xpose.msra.mxu0 0.0
      %727 = vmatprep.subr.mxu0 0.0
      %728 = vmatpush1.xpose.msra.mxu0 0.0
      %729 = vmatprep.subr.mxu0 0.0
      %730 = vmatpush1.xpose.msra.mxu0 0.0
      %731 = vmatprep.subr.mxu0 0.0
      %732 = vmatpush1.xpose.msra.mxu0 0.0
      %733 = vmatprep.subr.mxu0 0.0
      %734 = vmatpush1.xpose.msra.mxu0 0.0
      %735 = vmatprep.subr.mxu0 0.0
      %736 = vmatpush1.xpose.msra.mxu0 0.0
      %737 = vmatprep.subr.mxu0 0.0
      %738 = vmatpush1.xpose.msra.mxu0 0.0
      %739 = vmatprep.subr.mxu0 0.0
      %740 = vmatpush1.xpose.msra.mxu0 0.0
      %741 = vmatprep.subr.mxu0 0.0
      %742 = vmatpush1.xpose.msra.mxu0 0.0
      %743 = vmatprep.subr.mxu0 0.0
      %744 = vmatpush1.xpose.msra.mxu0 0.0
      %745 = vmatprep.subr.mxu0 0.0
      %746 = vmatpush1.xpose.msra.mxu0 0.0
      %747 = vmatprep.subr.mxu0 0.0
      %748 = vmatpush1.xpose.msra.mxu0 0.0
      %749 = vmatprep.subr.mxu0 0.0
      %750 = vmatpush1.xpose.msra.mxu0 0.0
      %751 = vmatprep.subr.mxu0 0.0
      %752 = vmatpush1.xpose.msra.mxu0 0.0
      %753 = vmatprep.subr.mxu0 0.0
      %754 = vmatpush1.xpose.msra.mxu0 0.0
      %755 = vmatprep.subr.mxu0 0.0
      %756 = vmatpush1.xpose.msra.mxu0 0.0
      %757 = vmatprep.subr.mxu0 0.0
      %758 = vmatpush1.xpose.msra.mxu0 0.0
      %759 = vmatprep.subr.mxu0 0.0
      %760 = vmatpush1.xpose.msra.mxu0 0.0
      %761 = vmatprep.subr.mxu0 0.0
      %762 = vmatpush1.xpose.msra.mxu0 0.0
      %763 = vmatprep.subr.mxu0 0.0
      %764 = vmatpush1.xpose.msra.mxu0 0.0
      %765 = vmatprep.mubr.f32.mxu0 0.0
      %766 = vmatmul.mubr.f32.gmra.mrb[0].mxu0 %v696
      %v767 = vpop.f32.mrb[0].mxu0
      %v768 = vadd.f32 0.0, %v767
      %v769 = vpop.f32.mrb[0].mxu0
      %770 = vdwg.mxu0
      %v772 = vsel %vm314, %v224, 0
      %v775 = vsel %vm314, %v256, 0
      %777 = vmatprep.subr.mxu0 0.0
      %778 = vmatpush1.xpose.msra.mxu0 %v775
      %779 = vmatprep.subr.mxu0 0.0
      %780 = vmatpush1.xpose.msra.mxu0 0.0
      %781 = vmatprep.subr.mxu0 0.0
      %782 = vmatpush1.xpose.msra.mxu0 0.0
      %783 = vmatprep.subr.mxu0 0.0
      %784 = vmatpush1.xpose.msra.mxu0 0.0
      %785 = vmatprep.subr.mxu0 0.0
      %786 = vmatpush1.xpose.msra.mxu0 0.0
      %787 = vmatprep.subr.mxu0 0.0
      %788 = vmatpush1.xpose.msra.mxu0 0.0
      %789 = vmatprep.subr.mxu0 0.0
      %790 = vmatpush1.xpose.msra.mxu0 0.0
      %791 = vmatprep.subr.mxu0 0.0
      %792 = vmatpush1.xpose.msra.mxu0 0.0
      %793 = vmatprep.subr.mxu0 0.0
      %794 = vmatpush1.xpose.msra.mxu0 0.0
      %795 = vmatprep.subr.mxu0 0.0
      %796 = vmatpush1.xpose.msra.mxu0 0.0
      %797 = vmatprep.subr.mxu0 0.0
      %798 = vmatpush1.xpose.msra.mxu0 0.0
      %799 = vmatprep.subr.mxu0 0.0
      %800 = vmatpush1.xpose.msra.mxu0 0.0
      %801 = vmatprep.subr.mxu0 0.0
      %802 = vmatpush1.xpose.msra.mxu0 0.0
      %803 = vmatprep.subr.mxu0 0.0
      %804 = vmatpush1.xpose.msra.mxu0 0.0
      %805 = vmatprep.subr.mxu0 0.0
      %806 = vmatpush1.xpose.msra.mxu0 0.0
      %807 = vmatprep.subr.mxu0 0.0
      %808 = vmatpush1.xpose.msra.mxu0 0.0
      %809 = vmatprep.subr.mxu0 0.0
      %810 = vmatpush1.xpose.msra.mxu0 0.0
      %811 = vmatprep.subr.mxu0 0.0
      %812 = vmatpush1.xpose.msra.mxu0 0.0
      %813 = vmatprep.subr.mxu0 0.0
      %814 = vmatpush1.xpose.msra.mxu0 0.0
      %815 = vmatprep.subr.mxu0 0.0
      %816 = vmatpush1.xpose.msra.mxu0 0.0
      %817 = vmatprep.subr.mxu0 0.0
      %818 = vmatpush1.xpose.msra.mxu0 0.0
      %819 = vmatprep.subr.mxu0 0.0
      %820 = vmatpush1.xpose.msra.mxu0 0.0
      %821 = vmatprep.subr.mxu0 0.0
      %822 = vmatpush1.xpose.msra.mxu0 0.0
      %823 = vmatprep.subr.mxu0 0.0
      %824 = vmatpush1.xpose.msra.mxu0 0.0
      %825 = vmatprep.subr.mxu0 0.0
      %826 = vmatpush1.xpose.msra.mxu0 0.0
      %827 = vmatprep.subr.mxu0 0.0
      %828 = vmatpush1.xpose.msra.mxu0 0.0
      %829 = vmatprep.subr.mxu0 0.0
      %830 = vmatpush1.xpose.msra.mxu0 0.0
      %831 = vmatprep.subr.mxu0 0.0
      %832 = vmatpush1.xpose.msra.mxu0 0.0
      %833 = vmatprep.subr.mxu0 0.0
      %834 = vmatpush1.xpose.msra.mxu0 0.0
      %835 = vmatprep.subr.mxu0 0.0
      %836 = vmatpush1.xpose.msra.mxu0 0.0
      %837 = vmatprep.subr.mxu0 0.0
      %838 = vmatpush1.xpose.msra.mxu0 0.0
      %839 = vmatprep.subr.mxu0 0.0
      %840 = vmatpush1.xpose.msra.mxu0 0.0
      %841 = vmatprep.mubr.f32.mxu0 0.0
      %842 = vmatmul.mubr.f32.gmra.mrb[0].mxu0 %v772
      %v843 = vpop.f32.mrb[0].mxu0
      %v844 = vadd.f32 0.0, %v843
      %v845 = vpop.f32.mrb[0].mxu0
      %846 = vdwg.mxu0
      %v848 = vsel %vm314, %v225, 0
      %v851 = vsel %vm314, %v257, 0
      %853 = vmatprep.subr.mxu0 0.0
      %854 = vmatpush1.xpose.msra.mxu0 %v851
      %855 = vmatprep.subr.mxu0 0.0
      %856 = vmatpush1.xpose.msra.mxu0 0.0
      %857 = vmatprep.subr.mxu0 0.0
      %858 = vmatpush1.xpose.msra.mxu0 0.0
      %859 = vmatprep.subr.mxu0 0.0
      %860 = vmatpush1.xpose.msra.mxu0 0.0
      %861 = vmatprep.subr.mxu0 0.0
      %862 = vmatpush1.xpose.msra.mxu0 0.0
      %863 = vmatprep.subr.mxu0 0.0
      %864 = vmatpush1.xpose.msra.mxu0 0.0
      %865 = vmatprep.subr.mxu0 0.0
      %866 = vmatpush1.xpose.msra.mxu0 0.0
      %867 = vmatprep.subr.mxu0 0.0
      %868 = vmatpush1.xpose.msra.mxu0 0.0
      %869 = vmatprep.subr.mxu0 0.0
      %870 = vmatpush1.xpose.msra.mxu0 0.0
      %871 = vmatprep.subr.mxu0 0.0
      %872 = vmatpush1.xpose.msra.mxu0 0.0
      %873 = vmatprep.subr.mxu0 0.0
      %874 = vmatpush1.xpose.msra.mxu0 0.0
      %875 = vmatprep.subr.mxu0 0.0
      %876 = vmatpush1.xpose.msra.mxu0 0.0
      %877 = vmatprep.subr.mxu0 0.0
      %878 = vmatpush1.xpose.msra.mxu0 0.0
      %879 = vmatprep.subr.mxu0 0.0
      %880 = vmatpush1.xpose.msra.mxu0 0.0
      %881 = vmatprep.subr.mxu0 0.0
      %882 = vmatpush1.xpose.msra.mxu0 0.0
      %883 = vmatprep.subr.mxu0 0.0
      %884 = vmatpush1.xpose.msra.mxu0 0.0
      %885 = vmatprep.subr.mxu0 0.0
      %886 = vmatpush1.xpose.msra.mxu0 0.0
      %887 = vmatprep.subr.mxu0 0.0
      %888 = vmatpush1.xpose.msra.mxu0 0.0
      %889 = vmatprep.subr.mxu0 0.0
      %890 = vmatpush1.xpose.msra.mxu0 0.0
      %891 = vmatprep.subr.mxu0 0.0
      %892 = vmatpush1.xpose.msra.mxu0 0.0
      %893 = vmatprep.subr.mxu0 0.0
      %894 = vmatpush1.xpose.msra.mxu0 0.0
      %895 = vmatprep.subr.mxu0 0.0
      %896 = vmatpush1.xpose.msra.mxu0 0.0
      %897 = vmatprep.subr.mxu0 0.0
      %898 = vmatpush1.xpose.msra.mxu0 0.0
      %899 = vmatprep.subr.mxu0 0.0
      %900 = vmatpush1.xpose.msra.mxu0 0.0
      %901 = vmatprep.subr.mxu0 0.0
      %902 = vmatpush1.xpose.msra.mxu0 0.0
      %903 = vmatprep.subr.mxu0 0.0
      %904 = vmatpush1.xpose.msra.mxu0 0.0
      %905 = vmatprep.subr.mxu0 0.0
      %906 = vmatpush1.xpose.msra.mxu0 0.0
      %907 = vmatprep.subr.mxu0 0.0
      %908 = vmatpush1.xpose.msra.mxu0 0.0
      %909 = vmatprep.subr.mxu0 0.0
      %910 = vmatpush1.xpose.msra.mxu0 0.0
      %911 = vmatprep.subr.mxu0 0.0
      %912 = vmatpush1.xpose.msra.mxu0 0.0
      %913 = vmatprep.subr.mxu0 0.0
      %914 = vmatpush1.xpose.msra.mxu0 0.0
      %915 = vmatprep.subr.mxu0 0.0
      %916 = vmatpush1.xpose.msra.mxu0 0.0
      %917 = vmatprep.mubr.f32.mxu0 0.0
      %918 = vmatmul.mubr.f32.gmra.mrb[0].mxu0 %v848
      %v919 = vpop.f32.mrb[0].mxu0
      %v920 = vadd.f32 0.0, %v919
      %v921 = vpop.f32.mrb[0].mxu0
      %922 = vdwg.mxu0
      %v924 = vsel %vm314, %v226, 0
      %v927 = vsel %vm314, %v258, 0
      %929 = vmatprep.subr.mxu0 0.0
      %930 = vmatpush1.xpose.msra.mxu0 %v927
      %931 = vmatprep.subr.mxu0 0.0
      %932 = vmatpush1.xpose.msra.mxu0 0.0
      %933 = vmatprep.subr.mxu0 0.0
      %934 = vmatpush1.xpose.msra.mxu0 0.0
      %935 = vmatprep.subr.mxu0 0.0
      %936 = vmatpush1.xpose.msra.mxu0 0.0
      %937 = vmatprep.subr.mxu0 0.0
      %938 = vmatpush1.xpose.msra.mxu0 0.0
      %939 = vmatprep.subr.mxu0 0.0
      %940 = vmatpush1.xpose.msra.mxu0 0.0
      %941 = vmatprep.subr.mxu0 0.0
      %942 = vmatpush1.xpose.msra.mxu0 0.0
      %943 = vmatprep.subr.mxu0 0.0
      %944 = vmatpush1.xpose.msra.mxu0 0.0
      %945 = vmatprep.subr.mxu0 0.0
      %946 = vmatpush1.xpose.msra.mxu0 0.0
      %947 = vmatprep.subr.mxu0 0.0
      %948 = vmatpush1.xpose.msra.mxu0 0.0
      %949 = vmatprep.subr.mxu0 0.0
      %950 = vmatpush1.xpose.msra.mxu0 0.0
      %951 = vmatprep.subr.mxu0 0.0
      %952 = vmatpush1.xpose.msra.mxu0 0.0
      %953 = vmatprep.subr.mxu0 0.0
      %954 = vmatpush1.xpose.msra.mxu0 0.0
      %955 = vmatprep.subr.mxu0 0.0
      %956 = vmatpush1.xpose.msra.mxu0 0.0
      %957 = vmatprep.subr.mxu0 0.0
      %958 = vmatpush1.xpose.msra.mxu0 0.0
      %959 = vmatprep.subr.mxu0 0.0
      %960 = vmatpush1.xpose.msra.mxu0 0.0
      %961 = vmatprep.subr.mxu0 0.0
      %962 = vmatpush1.xpose.msra.mxu0 0.0
      %963 = vmatprep.subr.mxu0 0.0
      %964 = vmatpush1.xpose.msra.mxu0 0.0
      %965 = vmatprep.subr.mxu0 0.0
      %966 = vmatpush1.xpose.msra.mxu0 0.0
      %967 = vmatprep.subr.mxu0 0.0
      %968 = vmatpush1.xpose.msra.mxu0 0.0
      %969 = vmatprep.subr.mxu0 0.0
      %970 = vmatpush1.xpose.msra.mxu0 0.0
      %971 = vmatprep.subr.mxu0 0.0
      %972 = vmatpush1.xpose.msra.mxu0 0.0
      %973 = vmatprep.subr.mxu0 0.0
      %974 = vmatpush1.xpose.msra.mxu0 0.0
      %975 = vmatprep.subr.mxu0 0.0
      %976 = vmatpush1.xpose.msra.mxu0 0.0
      %977 = vmatprep.subr.mxu0 0.0
      %978 = vmatpush1.xpose.msra.mxu0 0.0
      %979 = vmatprep.subr.mxu0 0.0
      %980 = vmatpush1.xpose.msra.mxu0 0.0
      %981 = vmatprep.subr.mxu0 0.0
      %982 = vmatpush1.xpose.msra.mxu0 0.0
      %983 = vmatprep.subr.mxu0 0.0
      %984 = vmatpush1.xpose.msra.mxu0 0.0
      %985 = vmatprep.subr.mxu0 0.0
      %986 = vmatpush1.xpose.msra.mxu0 0.0
      %987 = vmatprep.subr.mxu0 0.0
      %988 = vmatpush1.xpose.msra.mxu0 0.0
      %989 = vmatprep.subr.mxu0 0.0
      %990 = vmatpush1.xpose.msra.mxu0 0.0
      %991 = vmatprep.subr.mxu0 0.0
      %992 = vmatpush1.xpose.msra.mxu0 0.0
      %993 = vmatprep.mubr.f32.mxu0 0.0
      %994 = vmatmul.mubr.f32.gmra.mrb[0].mxu0 %v924
      %v995 = vpop.f32.mrb[0].mxu0
      %v996 = vadd.f32 0.0, %v995
      %v997 = vpop.f32.mrb[0].mxu0
      %998 = vdwg.mxu0
      %v1000 = vsel %vm314, %v227, 0
      %v1003 = vsel %vm314, %v259, 0
      %1005 = vmatprep.subr.mxu0 0.0
      %1006 = vmatpush1.xpose.msra.mxu0 %v1003
      %1007 = vmatprep.subr.mxu0 0.0
      %1008 = vmatpush1.xpose.msra.mxu0 0.0
      %1009 = vmatprep.subr.mxu0 0.0
      %1010 = vmatpush1.xpose.msra.mxu0 0.0
      %1011 = vmatprep.subr.mxu0 0.0
      %1012 = vmatpush1.xpose.msra.mxu0 0.0
      %1013 = vmatprep.subr.mxu0 0.0
      %1014 = vmatpush1.xpose.msra.mxu0 0.0
      %1015 = vmatprep.subr.mxu0 0.0
      %1016 = vmatpush1.xpose.msra.mxu0 0.0
      %1017 = vmatprep.subr.mxu0 0.0
      %1018 = vmatpush1.xpose.msra.mxu0 0.0
      %1019 = vmatprep.subr.mxu0 0.0
      %1020 = vmatpush1.xpose.msra.mxu0 0.0
      %1021 = vmatprep.subr.mxu0 0.0
      %1022 = vmatpush1.xpose.msra.mxu0 0.0
      %1023 = vmatprep.subr.mxu0 0.0
      %1024 = vmatpush1.xpose.msra.mxu0 0.0
      %1025 = vmatprep.subr.mxu0 0.0
      %1026 = vmatpush1.xpose.msra.mxu0 0.0
      %1027 = vmatprep.subr.mxu0 0.0
      %1028 = vmatpush1.xpose.msra.mxu0 0.0
      %1029 = vmatprep.subr.mxu0 0.0
      %1030 = vmatpush1.xpose.msra.mxu0 0.0
      %1031 = vmatprep.subr.mxu0 0.0
      %1032 = vmatpush1.xpose.msra.mxu0 0.0
      %1033 = vmatprep.subr.mxu0 0.0
      %1034 = vmatpush1.xpose.msra.mxu0 0.0
      %1035 = vmatprep.subr.mxu0 0.0
      %1036 = vmatpush1.xpose.msra.mxu0 0.0
      %1037 = vmatprep.subr.mxu0 0.0
      %1038 = vmatpush1.xpose.msra.mxu0 0.0
      %1039 = vmatprep.subr.mxu0 0.0
      %1040 = vmatpush1.xpose.msra.mxu0 0.0
      %1041 = vmatprep.subr.mxu0 0.0
      %1042 = vmatpush1.xpose.msra.mxu0 0.0
      %1043 = vmatprep.subr.mxu0 0.0
      %1044 = vmatpush1.xpose.msra.mxu0 0.0
      %1045 = vmatprep.subr.mxu0 0.0
      %1046 = vmatpush1.xpose.msra.mxu0 0.0
      %1047 = vmatprep.subr.mxu0 0.0
      %1048 = vmatpush1.xpose.msra.mxu0 0.0
      %1049 = vmatprep.subr.mxu0 0.0
      %1050 = vmatpush1.xpose.msra.mxu0 0.0
      %1051 = vmatprep.subr.mxu0 0.0
      %1052 = vmatpush1.xpose.msra.mxu0 0.0
      %1053 = vmatprep.subr.mxu0 0.0
      %1054 = vmatpush1.xpose.msra.mxu0 0.0
      %1055 = vmatprep.subr.mxu0 0.0
      %1056 = vmatpush1.xpose.msra.mxu0 0.0
      %1057 = vmatprep.subr.mxu0 0.0
      %1058 = vmatpush1.xpose.msra.mxu0 0.0
      %1059 = vmatprep.subr.mxu0 0.0
      %1060 = vmatpush1.xpose.msra.mxu0 0.0
      %1061 = vmatprep.subr.mxu0 0.0
      %1062 = vmatpush1.xpose.msra.mxu0 0.0
      %1063 = vmatprep.subr.mxu0 0.0
      %1064 = vmatpush1.xpose.msra.mxu0 0.0
      %1065 = vmatprep.subr.mxu0 0.0
      %1066 = vmatpush1.xpose.msra.mxu0 0.0
      %1067 = vmatprep.subr.mxu0 0.0
      %1068 = vmatpush1.xpose.msra.mxu0 0.0
      %1069 = vmatprep.mubr.f32.mxu0 0.0
      %1070 = vmatmul.mubr.f32.gmra.mrb[0].mxu0 %v1000
      %v1071 = vpop.f32.mrb[0].mxu0
      %v1072 = vadd.f32 0.0, %v1071
      %v1073 = vpop.f32.mrb[0].mxu0
      %1074 = vdwg.mxu0
      %v1076 = vsel %vm314, %v228, 0
      %v1079 = vsel %vm314, %v260, 0
      %1081 = vmatprep.subr.mxu0 0.0
      %1082 = vmatpush1.xpose.msra.mxu0 %v1079
      %1083 = vmatprep.subr.mxu0 0.0
      %1084 = vmatpush1.xpose.msra.mxu0 0.0
      %1085 = vmatprep.subr.mxu0 0.0
      %1086 = vmatpush1.xpose.msra.mxu0 0.0
      %1087 = vmatprep.subr.mxu0 0.0
      %1088 = vmatpush1.xpose.msra.mxu0 0.0
      %1089 = vmatprep.subr.mxu0 0.0
      %1090 = vmatpush1.xpose.msra.mxu0 0.0
      %1091 = vmatprep.subr.mxu0 0.0
      %1092 = vmatpush1.xpose.msra.mxu0 0.0
      %1093 = vmatprep.subr.mxu0 0.0
      %1094 = vmatpush1.xpose.msra.mxu0 0.0
      %1095 = vmatprep.subr.mxu0 0.0
      %1096 = vmatpush1.xpose.msra.mxu0 0.0
      %1097 = vmatprep.subr.mxu0 0.0
      %1098 = vmatpush1.xpose.msra.mxu0 0.0
      %1099 = vmatprep.subr.mxu0 0.0
      %1100 = vmatpush1.xpose.msra.mxu0 0.0
      %1101 = vmatprep.subr.mxu0 0.0
      %1102 = vmatpush1.xpose.msra.mxu0 0.0
      %1103 = vmatprep.subr.mxu0 0.0
      %1104 = vmatpush1.xpose.msra.mxu0 0.0
      %1105 = vmatprep.subr.mxu0 0.0
      %1106 = vmatpush1.xpose.msra.mxu0 0.0
      %1107 = vmatprep.subr.mxu0 0.0
      %1108 = vmatpush1.xpose.msra.mxu0 0.0
      %1109 = vmatprep.subr.mxu0 0.0
      %1110 = vmatpush1.xpose.msra.mxu0 0.0
      %1111 = vmatprep.subr.mxu0 0.0
      %1112 = vmatpush1.xpose.msra.mxu0 0.0
      %1113 = vmatprep.subr.mxu0 0.0
      %1114 = vmatpush1.xpose.msra.mxu0 0.0
      %1115 = vmatprep.subr.mxu0 0.0
      %1116 = vmatpush1.xpose.msra.mxu0 0.0
      %1117 = vmatprep.subr.mxu0 0.0
      %1118 = vmatpush1.xpose.msra.mxu0 0.0
      %1119 = vmatprep.subr.mxu0 0.0
      %1120 = vmatpush1.xpose.msra.mxu0 0.0
      %1121 = vmatprep.subr.mxu0 0.0
      %1122 = vmatpush1.xpose.msra.mxu0 0.0
      %1123 = vmatprep.subr.mxu0 0.0
      %1124 = vmatpush1.xpose.msra.mxu0 0.0
      %1125 = vmatprep.subr.mxu0 0.0
      %1126 = vmatpush1.xpose.msra.mxu0 0.0
      %1127 = vmatprep.subr.mxu0 0.0
      %1128 = vmatpush1.xpose.msra.mxu0 0.0
      %1129 = vmatprep.subr.mxu0 0.0
      %1130 = vmatpush1.xpose.msra.mxu0 0.0
      %1131 = vmatprep.subr.mxu0 0.0
      %1132 = vmatpush1.xpose.msra.mxu0 0.0
      %1133 = vmatprep.subr.mxu0 0.0
      %1134 = vmatpush1.xpose.msra.mxu0 0.0
      %1135 = vmatprep.subr.mxu0 0.0
      %1136 = vmatpush1.xpose.msra.mxu0 0.0
      %1137 = vmatprep.subr.mxu0 0.0
      %1138 = vmatpush1.xpose.msra.mxu0 0.0
      %1139 = vmatprep.subr.mxu0 0.0
      %1140 = vmatpush1.xpose.msra.mxu0 0.0
      %1141 = vmatprep.subr.mxu0 0.0
      %1142 = vmatpush1.xpose.msra.mxu0 0.0
      %1143 = vmatprep.subr.mxu0 0.0
      %1144 = vmatpush1.xpose.msra.mxu0 0.0
      %1145 = vmatprep.mubr.f32.mxu0 0.0
      %1146 = vmatmul.mubr.f32.gmra.mrb[0].mxu0 %v1076
      %v1147 = vpop.f32.mrb[0].mxu0
      %v1148 = vadd.f32 0.0, %v1147
      %v1149 = vpop.f32.mrb[0].mxu0
      %1150 = vdwg.mxu0
      %v1152 = vsel %vm314, %v229, 0
      %v1155 = vsel %vm314, %v261, 0
      %1157 = vmatprep.subr.mxu0 0.0
      %1158 = vmatpush1.xpose.msra.mxu0 %v1155
      %1159 = vmatprep.subr.mxu0 0.0
      %1160 = vmatpush1.xpose.msra.mxu0 0.0
      %1161 = vmatprep.subr.mxu0 0.0
      %1162 = vmatpush1.xpose.msra.mxu0 0.0
      %1163 = vmatprep.subr.mxu0 0.0
      %1164 = vmatpush1.xpose.msra.mxu0 0.0
      %1165 = vmatprep.subr.mxu0 0.0
      %1166 = vmatpush1.xpose.msra.mxu0 0.0
      %1167 = vmatprep.subr.mxu0 0.0
      %1168 = vmatpush1.xpose.msra.mxu0 0.0
      %1169 = vmatprep.subr.mxu0 0.0
      %1170 = vmatpush1.xpose.msra.mxu0 0.0
      %1171 = vmatprep.subr.mxu0 0.0
      %1172 = vmatpush1.xpose.msra.mxu0 0.0
      %1173 = vmatprep.subr.mxu0 0.0
      %1174 = vmatpush1.xpose.msra.mxu0 0.0
      %1175 = vmatprep.subr.mxu0 0.0
      %1176 = vmatpush1.xpose.msra.mxu0 0.0
      %1177 = vmatprep.subr.mxu0 0.0
      %1178 = vmatpush1.xpose.msra.mxu0 0.0
      %1179 = vmatprep.subr.mxu0 0.0
      %1180 = vmatpush1.xpose.msra.mxu0 0.0
      %1181 = vmatprep.subr.mxu0 0.0
      %1182 = vmatpush1.xpose.msra.mxu0 0.0
      %1183 = vmatprep.subr.mxu0 0.0
      %1184 = vmatpush1.xpose.msra.mxu0 0.0
      %1185 = vmatprep.subr.mxu0 0.0
      %1186 = vmatpush1.xpose.msra.mxu0 0.0
      %1187 = vmatprep.subr.mxu0 0.0
      %1188 = vmatpush1.xpose.msra.mxu0 0.0
      %1189 = vmatprep.subr.mxu0 0.0
      %1190 = vmatpush1.xpose.msra.mxu0 0.0
      %1191 = vmatprep.subr.mxu0 0.0
      %1192 = vmatpush1.xpose.msra.mxu0 0.0
      %1193 = vmatprep.subr.mxu0 0.0
      %1194 = vmatpush1.xpose.msra.mxu0 0.0
      %1195 = vmatprep.subr.mxu0 0.0
      %1196 = vmatpush1.xpose.msra.mxu0 0.0
      %1197 = vmatprep.subr.mxu0 0.0
      %1198 = vmatpush1.xpose.msra.mxu0 0.0
      %1199 = vmatprep.subr.mxu0 0.0
      %1200 = vmatpush1.xpose.msra.mxu0 0.0
      %1201 = vmatprep.subr.mxu0 0.0
      %1202 = vmatpush1.xpose.msra.mxu0 0.0
      %1203 = vmatprep.subr.mxu0 0.0
      %1204 = vmatpush1.xpose.msra.mxu0 0.0
      %1205 = vmatprep.subr.mxu0 0.0
      %1206 = vmatpush1.xpose.msra.mxu0 0.0
      %1207 = vmatprep.subr.mxu0 0.0
      %1208 = vmatpush1.xpose.msra.mxu0 0.0
      %1209 = vmatprep.subr.mxu0 0.0
      %1210 = vmatpush1.xpose.msra.mxu0 0.0
      %1211 = vmatprep.subr.mxu0 0.0
      %1212 = vmatpush1.xpose.msra.mxu0 0.0
      %1213 = vmatprep.subr.mxu0 0.0
      %1214 = vmatpush1.xpose.msra.mxu0 0.0
      %1215 = vmatprep.subr.mxu0 0.0
      %1216 = vmatpush1.xpose.msra.mxu0 0.0
      %1217 = vmatprep.subr.mxu0 0.0
      %1218 = vmatpush1.xpose.msra.mxu0 0.0
      %1219 = vmatprep.subr.mxu0 0.0
      %1220 = vmatpush1.xpose.msra.mxu0 0.0
      %1221 = vmatprep.mubr.f32.mxu0 0.0
      %1222 = vmatmul.mubr.f32.gmra.mrb[0].mxu0 %v1152
      %v1223 = vpop.f32.mrb[0].mxu0
      %v1224 = vadd.f32 0.0, %v1223
      %v1225 = vpop.f32.mrb[0].mxu0
      %1226 = vdwg.mxu0
      %v1228 = vsel %vm314, %v230, 0
      %v1231 = vsel %vm314, %v262, 0
      %1233 = vmatprep.subr.mxu0 0.0
      %1234 = vmatpush1.xpose.msra.mxu0 %v1231
      %1235 = vmatprep.subr.mxu0 0.0
      %1236 = vmatpush1.xpose.msra.mxu0 0.0
      %1237 = vmatprep.subr.mxu0 0.0
      %1238 = vmatpush1.xpose.msra.mxu0 0.0
      %1239 = vmatprep.subr.mxu0 0.0
      %1240 = vmatpush1.xpose.msra.mxu0 0.0
      %1241 = vmatprep.subr.mxu0 0.0
      %1242 = vmatpush1.xpose.msra.mxu0 0.0
      %1243 = vmatprep.subr.mxu0 0.0
      %1244 = vmatpush1.xpose.msra.mxu0 0.0
      %1245 = vmatprep.subr.mxu0 0.0
      %1246 = vmatpush1.xpose.msra.mxu0 0.0
      %1247 = vmatprep.subr.mxu0 0.0
      %1248 = vmatpush1.xpose.msra.mxu0 0.0
      %1249 = vmatprep.subr.mxu0 0.0
      %1250 = vmatpush1.xpose.msra.mxu0 0.0
      %1251 = vmatprep.subr.mxu0 0.0
      %1252 = vmatpush1.xpose.msra.mxu0 0.0
      %1253 = vmatprep.subr.mxu0 0.0
      %1254 = vmatpush1.xpose.msra.mxu0 0.0
      %1255 = vmatprep.subr.mxu0 0.0
      %1256 = vmatpush1.xpose.msra.mxu0 0.0
      %1257 = vmatprep.subr.mxu0 0.0
      %1258 = vmatpush1.xpose.msra.mxu0 0.0
      %1259 = vmatprep.subr.mxu0 0.0
      %1260 = vmatpush1.xpose.msra.mxu0 0.0
      %1261 = vmatprep.subr.mxu0 0.0
      %1262 = vmatpush1.xpose.msra.mxu0 0.0
      %1263 = vmatprep.subr.mxu0 0.0
      %1264 = vmatpush1.xpose.msra.mxu0 0.0
      %1265 = vmatprep.subr.mxu0 0.0
      %1266 = vmatpush1.xpose.msra.mxu0 0.0
      %1267 = vmatprep.subr.mxu0 0.0
      %1268 = vmatpush1.xpose.msra.mxu0 0.0
      %1269 = vmatprep.subr.mxu0 0.0
      %1270 = vmatpush1.xpose.msra.mxu0 0.0
      %1271 = vmatprep.subr.mxu0 0.0
      %1272 = vmatpush1.xpose.msra.mxu0 0.0
      %1273 = vmatprep.subr.mxu0 0.0
      %1274 = vmatpush1.xpose.msra.mxu0 0.0
      %1275 = vmatprep.subr.mxu0 0.0
      %1276 = vmatpush1.xpose.msra.mxu0 0.0
      %1277 = vmatprep.subr.mxu0 0.0
      %1278 = vmatpush1.xpose.msra.mxu0 0.0
      %1279 = vmatprep.subr.mxu0 0.0
      %1280 = vmatpush1.xpose.msra.mxu0 0.0
      %1281 = vmatprep.subr.mxu0 0.0
      %1282 = vmatpush1.xpose.msra.mxu0 0.0
      %1283 = vmatprep.subr.mxu0 0.0
      %1284 = vmatpush1.xpose.msra.mxu0 0.0
      %1285 = vmatprep.subr.mxu0 0.0
      %1286 = vmatpush1.xpose.msra.mxu0 0.0
      %1287 = vmatprep.subr.mxu0 0.0
      %1288 = vmatpush1.xpose.msra.mxu0 0.0
      %1289 = vmatprep.subr.mxu0 0.0
      %1290 = vmatpush1.xpose.msra.mxu0 0.0
      %1291 = vmatprep.subr.mxu0 0.0
      %1292 = vmatpush1.xpose.msra.mxu0 0.0
      %1293 = vmatprep.subr.mxu0 0.0
      %1294 = vmatpush1.xpose.msra.mxu0 0.0
      %1295 = vmatprep.subr.mxu0 0.0
      %1296 = vmatpush1.xpose.msra.mxu0 0.0
      %1297 = vmatprep.mubr.f32.mxu0 0.0
      %1298 = vmatmul.mubr.f32.gmra.mrb[0].mxu0 %v1228
      %v1299 = vpop.f32.mrb[0].mxu0
      %v1300 = vadd.f32 0.0, %v1299
      %v1301 = vpop.f32.mrb[0].mxu0
      %1302 = vdwg.mxu0
      %v1304 = vsel %vm314, %v231, 0
      %v1307 = vsel %vm314, %v263, 0
      %1309 = vmatprep.subr.mxu0 0.0
      %1310 = vmatpush1.xpose.msra.mxu0 %v1307
      %1311 = vmatprep.subr.mxu0 0.0
      %1312 = vmatpush1.xpose.msra.mxu0 0.0
      %1313 = vmatprep.subr.mxu0 0.0
      %1314 = vmatpush1.xpose.msra.mxu0 0.0
      %1315 = vmatprep.subr.mxu0 0.0
      %1316 = vmatpush1.xpose.msra.mxu0 0.0
      %1317 = vmatprep.subr.mxu0 0.0
      %1318 = vmatpush1.xpose.msra.mxu0 0.0
      %1319 = vmatprep.subr.mxu0 0.0
      %1320 = vmatpush1.xpose.msra.mxu0 0.0
      %1321 = vmatprep.subr.mxu0 0.0
      %1322 = vmatpush1.xpose.msra.mxu0 0.0
      %1323 = vmatprep.subr.mxu0 0.0
      %1324 = vmatpush1.xpose.msra.mxu0 0.0
      %1325 = vmatprep.subr.mxu0 0.0
      %1326 = vmatpush1.xpose.msra.mxu0 0.0
      %1327 = vmatprep.subr.mxu0 0.0
      %1328 = vmatpush1.xpose.msra.mxu0 0.0
      %1329 = vmatprep.subr.mxu0 0.0
      %1330 = vmatpush1.xpose.msra.mxu0 0.0
      %1331 = vmatprep.subr.mxu0 0.0
      %1332 = vmatpush1.xpose.msra.mxu0 0.0
      %1333 = vmatprep.subr.mxu0 0.0
      %1334 = vmatpush1.xpose.msra.mxu0 0.0
      %1335 = vmatprep.subr.mxu0 0.0
      %1336 = vmatpush1.xpose.msra.mxu0 0.0
      %1337 = vmatprep.subr.mxu0 0.0
      %1338 = vmatpush1.xpose.msra.mxu0 0.0
      %1339 = vmatprep.subr.mxu0 0.0
      %1340 = vmatpush1.xpose.msra.mxu0 0.0
      %1341 = vmatprep.subr.mxu0 0.0
      %1342 = vmatpush1.xpose.msra.mxu0 0.0
      %1343 = vmatprep.subr.mxu0 0.0
      %1344 = vmatpush1.xpose.msra.mxu0 0.0
      %1345 = vmatprep.subr.mxu0 0.0
      %1346 = vmatpush1.xpose.msra.mxu0 0.0
      %1347 = vmatprep.subr.mxu0 0.0
      %1348 = vmatpush1.xpose.msra.mxu0 0.0
      %1349 = vmatprep.subr.mxu0 0.0
      %1350 = vmatpush1.xpose.msra.mxu0 0.0
      %1351 = vmatprep.subr.mxu0 0.0
      %1352 = vmatpush1.xpose.msra.mxu0 0.0
      %1353 = vmatprep.subr.mxu0 0.0
      %1354 = vmatpush1.xpose.msra.mxu0 0.0
      %1355 = vmatprep.subr.mxu0 0.0
      %1356 = vmatpush1.xpose.msra.mxu0 0.0
      %1357 = vmatprep.subr.mxu0 0.0
      %1358 = vmatpush1.xpose.msra.mxu0 0.0
      %1359 = vmatprep.subr.mxu0 0.0
      %1360 = vmatpush1.xpose.msra.mxu0 0.0
      %1361 = vmatprep.subr.mxu0 0.0
      %1362 = vmatpush1.xpose.msra.mxu0 0.0
      %1363 = vmatprep.subr.mxu0 0.0
      %1364 = vmatpush1.xpose.msra.mxu0 0.0
      %1365 = vmatprep.subr.mxu0 0.0
      %1366 = vmatpush1.xpose.msra.mxu0 0.0
      %1367 = vmatprep.subr.mxu0 0.0
      %1368 = vmatpush1.xpose.msra.mxu0 0.0
      %1369 = vmatprep.subr.mxu0 0.0
      %1370 = vmatpush1.xpose.msra.mxu0 0.0
      %1371 = vmatprep.subr.mxu0 0.0
      %1372 = vmatpush1.xpose.msra.mxu0 0.0
      %1373 = vmatprep.mubr.f32.mxu0 0.0
      %1374 = vmatmul.mubr.f32.gmra.mrb[0].mxu0 %v1304
      %v1375 = vpop.f32.mrb[0].mxu0
      %v1376 = vadd.f32 0.0, %v1375
      %v1377 = vpop.f32.mrb[0].mxu0
      %1378 = vdwg.mxu0
      %v1380 = vsel %vm314, %v232, 0
      %v1383 = vsel %vm314, %v264, 0
      %1385 = vmatprep.subr.mxu0 0.0
      %1386 = vmatpush1.xpose.msra.mxu0 %v1383
      %1387 = vmatprep.subr.mxu0 0.0
      %1388 = vmatpush1.xpose.msra.mxu0 0.0
      %1389 = vmatprep.subr.mxu0 0.0
      %1390 = vmatpush1.xpose.msra.mxu0 0.0
      %1391 = vmatprep.subr.mxu0 0.0
      %1392 = vmatpush1.xpose.msra.mxu0 0.0
      %1393 = vmatprep.subr.mxu0 0.0
      %1394 = vmatpush1.xpose.msra.mxu0 0.0
      %1395 = vmatprep.subr.mxu0 0.0
      %1396 = vmatpush1.xpose.msra.mxu0 0.0
      %1397 = vmatprep.subr.mxu0 0.0
      %1398 = vmatpush1.xpose.msra.mxu0 0.0
      %1399 = vmatprep.subr.mxu0 0.0
      %1400 = vmatpush1.xpose.msra.mxu0 0.0
      %1401 = vmatprep.subr.mxu0 0.0
      %1402 = vmatpush1.xpose.msra.mxu0 0.0
      %1403 = vmatprep.subr.mxu0 0.0
      %1404 = vmatpush1.xpose.msra.mxu0 0.0
      %1405 = vmatprep.subr.mxu0 0.0
      %1406 = vmatpush1.xpose.msra.mxu0 0.0
      %1407 = vmatprep.subr.mxu0 0.0
      %1408 = vmatpush1.xpose.msra.mxu0 0.0
      %1409 = vmatprep.subr.mxu0 0.0
      %1410 = vmatpush1.xpose.msra.mxu0 0.0
      %1411 = vmatprep.subr.mxu0 0.0
      %1412 = vmatpush1.xpose.msra.mxu0 0.0
      %1413 = vmatprep.subr.mxu0 0.0
      %1414 = vmatpush1.xpose.msra.mxu0 0.0
      %1415 = vmatprep.subr.mxu0 0.0
      %1416 = vmatpush1.xpose.msra.mxu0 0.0
      %1417 = vmatprep.subr.mxu0 0.0
      %1418 = vmatpush1.xpose.msra.mxu0 0.0
      %1419 = vmatprep.subr.mxu0 0.0
      %1420 = vmatpush1.xpose.msra.mxu0 0.0
      %1421 = vmatprep.subr.mxu0 0.0
      %1422 = vmatpush1.xpose.msra.mxu0 0.0
      %1423 = vmatprep.subr.mxu0 0.0
      %1424 = vmatpush1.xpose.msra.mxu0 0.0
      %1425 = vmatprep.subr.mxu0 0.0
      %1426 = vmatpush1.xpose.msra.mxu0 0.0
      %1427 = vmatprep.subr.mxu0 0.0
      %1428 = vmatpush1.xpose.msra.mxu0 0.0
      %1429 = vmatprep.subr.mxu0 0.0
      %1430 = vmatpush1.xpose.msra.mxu0 0.0
      %1431 = vmatprep.subr.mxu0 0.0
      %1432 = vmatpush1.xpose.msra.mxu0 0.0
      %1433 = vmatprep.subr.mxu0 0.0
      %1434 = vmatpush1.xpose.msra.mxu0 0.0
      %1435 = vmatprep.subr.mxu0 0.0
      %1436 = vmatpush1.xpose.msra.mxu0 0.0
      %1437 = vmatprep.subr.mxu0 0.0
      %1438 = vmatpush1.xpose.msra.mxu0 0.0
      %1439 = vmatprep.subr.mxu0 0.0
      %1440 = vmatpush1.xpose.msra.mxu0 0.0
      %1441 = vmatprep.subr.mxu0 0.0
      %1442 = vmatpush1.xpose.msra.mxu0 0.0
      %1443 = vmatprep.subr.mxu0 0.0
      %1444 = vmatpush1.xpose.msra.mxu0 0.0
      %1445 = vmatprep.subr.mxu0 0.0
      %1446 = vmatpush1.xpose.msra.mxu0 0.0
      %1447 = vmatprep.subr.mxu0 0.0
      %1448 = vmatpush1.xpose.msra.mxu0 0.0
      %1449 = vmatprep.mubr.f32.mxu0 0.0
      %1450 = vmatmul.mubr.f32.gmra.mrb[0].mxu0 %v1380
      %v1451 = vpop.f32.mrb[0].mxu0
      %v1452 = vadd.f32 0.0, %v1451
      %v1453 = vpop.f32.mrb[0].mxu0
      %1454 = vdwg.mxu0
      %v1456 = vsel %vm314, %v233, 0
      %v1459 = vsel %vm314, %v265, 0
      %1461 = vmatprep.subr.mxu0 0.0
      %1462 = vmatpush1.xpose.msra.mxu0 %v1459
      %1463 = vmatprep.subr.mxu0 0.0
      %1464 = vmatpush1.xpose.msra.mxu0 0.0
      %1465 = vmatprep.subr.mxu0 0.0
      %1466 = vmatpush1.xpose.msra.mxu0 0.0
      %1467 = vmatprep.subr.mxu0 0.0
      %1468 = vmatpush1.xpose.msra.mxu0 0.0
      %1469 = vmatprep.subr.mxu0 0.0
      %1470 = vmatpush1.xpose.msra.mxu0 0.0
      %1471 = vmatprep.subr.mxu0 0.0
      %1472 = vmatpush1.xpose.msra.mxu0 0.0
      %1473 = vmatprep.subr.mxu0 0.0
      %1474 = vmatpush1.xpose.msra.mxu0 0.0
      %1475 = vmatprep.subr.mxu0 0.0
      %1476 = vmatpush1.xpose.msra.mxu0 0.0
      %1477 = vmatprep.subr.mxu0 0.0
      %1478 = vmatpush1.xpose.msra.mxu0 0.0
      %1479 = vmatprep.subr.mxu0 0.0
      %1480 = vmatpush1.xpose.msra.mxu0 0.0
      %1481 = vmatprep.subr.mxu0 0.0
      %1482 = vmatpush1.xpose.msra.mxu0 0.0
      %1483 = vmatprep.subr.mxu0 0.0
      %1484 = vmatpush1.xpose.msra.mxu0 0.0
      %1485 = vmatprep.subr.mxu0 0.0
      %1486 = vmatpush1.xpose.msra.mxu0 0.0
      %1487 = vmatprep.subr.mxu0 0.0
      %1488 = vmatpush1.xpose.msra.mxu0 0.0
      %1489 = vmatprep.subr.mxu0 0.0
      %1490 = vmatpush1.xpose.msra.mxu0 0.0
      %1491 = vmatprep.subr.mxu0 0.0
      %1492 = vmatpush1.xpose.msra.mxu0 0.0
      %1493 = vmatprep.subr.mxu0 0.0
      %1494 = vmatpush1.xpose.msra.mxu0 0.0
      %1495 = vmatprep.subr.mxu0 0.0
      %1496 = vmatpush1.xpose.msra.mxu0 0.0
      %1497 = vmatprep.subr.mxu0 0.0
      %1498 = vmatpush1.xpose.msra.mxu0 0.0
      %1499 = vmatprep.subr.mxu0 0.0
      %1500 = vmatpush1.xpose.msra.mxu0 0.0
      %1501 = vmatprep.subr.mxu0 0.0
      %1502 = vmatpush1.xpose.msra.mxu0 0.0
      %1503 = vmatprep.subr.mxu0 0.0
      %1504 = vmatpush1.xpose.msra.mxu0 0.0
      %1505 = vmatprep.subr.mxu0 0.0
      %1506 = vmatpush1.xpose.msra.mxu0 0.0
      %1507 = vmatprep.subr.mxu0 0.0
      %1508 = vmatpush1.xpose.msra.mxu0 0.0
      %1509 = vmatprep.subr.mxu0 0.0
      %1510 = vmatpush1.xpose.msra.mxu0 0.0
      %1511 = vmatprep.subr.mxu0 0.0
      %1512 = vmatpush1.xpose.msra.mxu0 0.0
      %1513 = vmatprep.subr.mxu0 0.0
      %1514 = vmatpush1.xpose.msra.mxu0 0.0
      %1515 = vmatprep.subr.mxu0 0.0
      %1516 = vmatpush1.xpose.msra.mxu0 0.0
      %1517 = vmatprep.subr.mxu0 0.0
      %1518 = vmatpush1.xpose.msra.mxu0 0.0
      %1519 = vmatprep.subr.mxu0 0.0
      %1520 = vmatpush1.xpose.msra.mxu0 0.0
      %1521 = vmatprep.subr.mxu0 0.0
      %1522 = vmatpush1.xpose.msra.mxu0 0.0
      %1523 = vmatprep.subr.mxu0 0.0
      %1524 = vmatpush1.xpose.msra.mxu0 0.0
      %1525 = vmatprep.mubr.f32.mxu0 0.0
      %1526 = vmatmul.mubr.f32.gmra.mrb[0].mxu0 %v1456
      %v1527 = vpop.f32.mrb[0].mxu0
      %v1528 = vadd.f32 0.0, %v1527
      %v1529 = vpop.f32.mrb[0].mxu0
      %1530 = vdwg.mxu0
      %v1532 = vsel %vm314, %v234, 0
      %v1535 = vsel %vm314, %v266, 0
      %1537 = vmatprep.subr.mxu0 0.0
      %1538 = vmatpush1.xpose.msra.mxu0 %v1535
      %1539 = vmatprep.subr.mxu0 0.0
      %1540 = vmatpush1.xpose.msra.mxu0 0.0
      %1541 = vmatprep.subr.mxu0 0.0
      %1542 = vmatpush1.xpose.msra.mxu0 0.0
      %1543 = vmatprep.subr.mxu0 0.0
      %1544 = vmatpush1.xpose.msra.mxu0 0.0
      %1545 = vmatprep.subr.mxu0 0.0
      %1546 = vmatpush1.xpose.msra.mxu0 0.0
      %1547 = vmatprep.subr.mxu0 0.0
      %1548 = vmatpush1.xpose.msra.mxu0 0.0
      %1549 = vmatprep.subr.mxu0 0.0
      %1550 = vmatpush1.xpose.msra.mxu0 0.0
      %1551 = vmatprep.subr.mxu0 0.0
      %1552 = vmatpush1.xpose.msra.mxu0 0.0
      %1553 = vmatprep.subr.mxu0 0.0
      %1554 = vmatpush1.xpose.msra.mxu0 0.0
      %1555 = vmatprep.subr.mxu0 0.0
      %1556 = vmatpush1.xpose.msra.mxu0 0.0
      %1557 = vmatprep.subr.mxu0 0.0
      %1558 = vmatpush1.xpose.msra.mxu0 0.0
      %1559 = vmatprep.subr.mxu0 0.0
      %1560 = vmatpush1.xpose.msra.mxu0 0.0
      %1561 = vmatprep.subr.mxu0 0.0
      %1562 = vmatpush1.xpose.msra.mxu0 0.0
      %1563 = vmatprep.subr.mxu0 0.0
      %1564 = vmatpush1.xpose.msra.mxu0 0.0
      %1565 = vmatprep.subr.mxu0 0.0
      %1566 = vmatpush1.xpose.msra.mxu0 0.0
      %1567 = vmatprep.subr.mxu0 0.0
      %1568 = vmatpush1.xpose.msra.mxu0 0.0
      %1569 = vmatprep.subr.mxu0 0.0
      %1570 = vmatpush1.xpose.msra.mxu0 0.0
      %1571 = vmatprep.subr.mxu0 0.0
      %1572 = vmatpush1.xpose.msra.mxu0 0.0
      %1573 = vmatprep.subr.mxu0 0.0
      %1574 = vmatpush1.xpose.msra.mxu0 0.0
      %1575 = vmatprep.subr.mxu0 0.0
      %1576 = vmatpush1.xpose.msra.mxu0 0.0
      %1577 = vmatprep.subr.mxu0 0.0
      %1578 = vmatpush1.xpose.msra.mxu0 0.0
      %1579 = vmatprep.subr.mxu0 0.0
      %1580 = vmatpush1.xpose.msra.mxu0 0.0
      %1581 = vmatprep.subr.mxu0 0.0
      %1582 = vmatpush1.xpose.msra.mxu0 0.0
      %1583 = vmatprep.subr.mxu0 0.0
      %1584 = vmatpush1.xpose.msra.mxu0 0.0
      %1585 = vmatprep.subr.mxu0 0.0
      %1586 = vmatpush1.xpose.msra.mxu0 0.0
      %1587 = vmatprep.subr.mxu0 0.0
      %1588 = vmatpush1.xpose.msra.mxu0 0.0
      %1589 = vmatprep.subr.mxu0 0.0
      %1590 = vmatpush1.xpose.msra.mxu0 0.0
      %1591 = vmatprep.subr.mxu0 0.0
      %1592 = vmatpush1.xpose.msra.mxu0 0.0
      %1593 = vmatprep.subr.mxu0 0.0
      %1594 = vmatpush1.xpose.msra.mxu0 0.0
      %1595 = vmatprep.subr.mxu0 0.0
      %1596 = vmatpush1.xpose.msra.mxu0 0.0
      %1597 = vmatprep.subr.mxu0 0.0
      %1598 = vmatpush1.xpose.msra.mxu0 0.0
      %1599 = vmatprep.subr.mxu0 0.0
      %1600 = vmatpush1.xpose.msra.mxu0 0.0
      %1601 = vmatprep.mubr.f32.mxu0 0.0
      %1602 = vmatmul.mubr.f32.gmra.mrb[0].mxu0 %v1532
      %v1603 = vpop.f32.mrb[0].mxu0
      %v1604 = vadd.f32 0.0, %v1603
      %v1605 = vpop.f32.mrb[0].mxu0
      %1606 = vdwg.mxu0
      %v1608 = vsel %vm314, %v235, 0
      %v1611 = vsel %vm314, %v267, 0
      %1613 = vmatprep.subr.mxu0 0.0
      %1614 = vmatpush1.xpose.msra.mxu0 %v1611
      %1615 = vmatprep.subr.mxu0 0.0
      %1616 = vmatpush1.xpose.msra.mxu0 0.0
      %1617 = vmatprep.subr.mxu0 0.0
      %1618 = vmatpush1.xpose.msra.mxu0 0.0
      %1619 = vmatprep.subr.mxu0 0.0
      %1620 = vmatpush1.xpose.msra.mxu0 0.0
      %1621 = vmatprep.subr.mxu0 0.0
      %1622 = vmatpush1.xpose.msra.mxu0 0.0
      %1623 = vmatprep.subr.mxu0 0.0
      %1624 = vmatpush1.xpose.msra.mxu0 0.0
      %1625 = vmatprep.subr.mxu0 0.0
      %1626 = vmatpush1.xpose.msra.mxu0 0.0
      %1627 = vmatprep.subr.mxu0 0.0
      %1628 = vmatpush1.xpose.msra.mxu0 0.0
      %1629 = vmatprep.subr.mxu0 0.0
      %1630 = vmatpush1.xpose.msra.mxu0 0.0
      %1631 = vmatprep.subr.mxu0 0.0
      %1632 = vmatpush1.xpose.msra.mxu0 0.0
      %1633 = vmatprep.subr.mxu0 0.0
      %1634 = vmatpush1.xpose.msra.mxu0 0.0
      %1635 = vmatprep.subr.mxu0 0.0
      %1636 = vmatpush1.xpose.msra.mxu0 0.0
      %1637 = vmatprep.subr.mxu0 0.0
      %1638 = vmatpush1.xpose.msra.mxu0 0.0
      %1639 = vmatprep.subr.mxu0 0.0
      %1640 = vmatpush1.xpose.msra.mxu0 0.0
      %1641 = vmatprep.subr.mxu0 0.0
      %1642 = vmatpush1.xpose.msra.mxu0 0.0
      %1643 = vmatprep.subr.mxu0 0.0
      %1644 = vmatpush1.xpose.msra.mxu0 0.0
      %1645 = vmatprep.subr.mxu0 0.0
      %1646 = vmatpush1.xpose.msra.mxu0 0.0
      %1647 = vmatprep.subr.mxu0 0.0
      %1648 = vmatpush1.xpose.msra.mxu0 0.0
      %1649 = vmatprep.subr.mxu0 0.0
      %1650 = vmatpush1.xpose.msra.mxu0 0.0
      %1651 = vmatprep.subr.mxu0 0.0
      %1652 = vmatpush1.xpose.msra.mxu0 0.0
      %1653 = vmatprep.subr.mxu0 0.0
      %1654 = vmatpush1.xpose.msra.mxu0 0.0
      %1655 = vmatprep.subr.mxu0 0.0
      %1656 = vmatpush1.xpose.msra.mxu0 0.0
      %1657 = vmatprep.subr.mxu0 0.0
      %1658 = vmatpush1.xpose.msra.mxu0 0.0
      %1659 = vmatprep.subr.mxu0 0.0
      %1660 = vmatpush1.xpose.msra.mxu0 0.0
      %1661 = vmatprep.subr.mxu0 0.0
      %1662 = vmatpush1.xpose.msra.mxu0 0.0
      %1663 = vmatprep.subr.mxu0 0.0
      %1664 = vmatpush1.xpose.msra.mxu0 0.0
      %1665 = vmatprep.subr.mxu0 0.0
      %1666 = vmatpush1.xpose.msra.mxu0 0.0
      %1667 = vmatprep.subr.mxu0 0.0
      %1668 = vmatpush1.xpose.msra.mxu0 0.0
      %1669 = vmatprep.subr.mxu0 0.0
      %1670 = vmatpush1.xpose.msra.mxu0 0.0
      %1671 = vmatprep.subr.mxu0 0.0
      %1672 = vmatpush1.xpose.msra.mxu0 0.0
      %1673 = vmatprep.subr.mxu0 0.0
      %1674 = vmatpush1.xpose.msra.mxu0 0.0
      %1675 = vmatprep.subr.mxu0 0.0
      %1676 = vmatpush1.xpose.msra.mxu0 0.0
      %1677 = vmatprep.mubr.f32.mxu0 0.0
      %1678 = vmatmul.mubr.f32.gmra.mrb[0].mxu0 %v1608
      %v1679 = vpop.f32.mrb[0].mxu0
      %v1680 = vadd.f32 0.0, %v1679
      %v1681 = vpop.f32.mrb[0].mxu0
      %1682 = vdwg.mxu0
      %v1684 = vsel %vm314, %v236, 0
      %v1687 = vsel %vm314, %v268, 0
      %1689 = vmatprep.subr.mxu0 0.0
      %1690 = vmatpush1.xpose.msra.mxu0 %v1687
      %1691 = vmatprep.subr.mxu0 0.0
      %1692 = vmatpush1.xpose.msra.mxu0 0.0
      %1693 = vmatprep.subr.mxu0 0.0
      %1694 = vmatpush1.xpose.msra.mxu0 0.0
      %1695 = vmatprep.subr.mxu0 0.0
      %1696 = vmatpush1.xpose.msra.mxu0 0.0
      %1697 = vmatprep.subr.mxu0 0.0
      %1698 = vmatpush1.xpose.msra.mxu0 0.0
      %1699 = vmatprep.subr.mxu0 0.0
      %1700 = vmatpush1.xpose.msra.mxu0 0.0
      %1701 = vmatprep.subr.mxu0 0.0
      %1702 = vmatpush1.xpose.msra.mxu0 0.0
      %1703 = vmatprep.subr.mxu0 0.0
      %1704 = vmatpush1.xpose.msra.mxu0 0.0
      %1705 = vmatprep.subr.mxu0 0.0
      %1706 = vmatpush1.xpose.msra.mxu0 0.0
      %1707 = vmatprep.subr.mxu0 0.0
      %1708 = vmatpush1.xpose.msra.mxu0 0.0
      %1709 = vmatprep.subr.mxu0 0.0
      %1710 = vmatpush1.xpose.msra.mxu0 0.0
      %1711 = vmatprep.subr.mxu0 0.0
      %1712 = vmatpush1.xpose.msra.mxu0 0.0
      %1713 = vmatprep.subr.mxu0 0.0
      %1714 = vmatpush1.xpose.msra.mxu0 0.0
      %1715 = vmatprep.subr.mxu0 0.0
      %1716 = vmatpush1.xpose.msra.mxu0 0.0
      %1717 = vmatprep.subr.mxu0 0.0
      %1718 = vmatpush1.xpose.msra.mxu0 0.0
      %1719 = vmatprep.subr.mxu0 0.0
      %1720 = vmatpush1.xpose.msra.mxu0 0.0
      %1721 = vmatprep.subr.mxu0 0.0
      %1722 = vmatpush1.xpose.msra.mxu0 0.0
      %1723 = vmatprep.subr.mxu0 0.0
      %1724 = vmatpush1.xpose.msra.mxu0 0.0
      %1725 = vmatprep.subr.mxu0 0.0
      %1726 = vmatpush1.xpose.msra.mxu0 0.0
      %1727 = vmatprep.subr.mxu0 0.0
      %1728 = vmatpush1.xpose.msra.mxu0 0.0
      %1729 = vmatprep.subr.mxu0 0.0
      %1730 = vmatpush1.xpose.msra.mxu0 0.0
      %1731 = vmatprep.subr.mxu0 0.0
      %1732 = vmatpush1.xpose.msra.mxu0 0.0
      %1733 = vmatprep.subr.mxu0 0.0
      %1734 = vmatpush1.xpose.msra.mxu0 0.0
      %1735 = vmatprep.subr.mxu0 0.0
      %1736 = vmatpush1.xpose.msra.mxu0 0.0
      %1737 = vmatprep.subr.mxu0 0.0
      %1738 = vmatpush1.xpose.msra.mxu0 0.0
      %1739 = vmatprep.subr.mxu0 0.0
      %1740 = vmatpush1.xpose.msra.mxu0 0.0
      %1741 = vmatprep.subr.mxu0 0.0
      %1742 = vmatpush1.xpose.msra.mxu0 0.0
      %1743 = vmatprep.subr.mxu0 0.0
      %1744 = vmatpush1.xpose.msra.mxu0 0.0
      %1745 = vmatprep.subr.mxu0 0.0
      %1746 = vmatpush1.xpose.msra.mxu0 0.0
      %1747 = vmatprep.subr.mxu0 0.0
      %1748 = vmatpush1.xpose.msra.mxu0 0.0
      %1749 = vmatprep.subr.mxu0 0.0
      %1750 = vmatpush1.xpose.msra.mxu0 0.0
      %1751 = vmatprep.subr.mxu0 0.0
      %1752 = vmatpush1.xpose.msra.mxu0 0.0
      %1753 = vmatprep.mubr.f32.mxu0 0.0
      %1754 = vmatmul.mubr.f32.gmra.mrb[0].mxu0 %v1684
      %v1755 = vpop.f32.mrb[0].mxu0
      %v1756 = vadd.f32 0.0, %v1755
      %v1757 = vpop.f32.mrb[0].mxu0
      %1758 = vdwg.mxu0
      %v1760 = vsel %vm314, %v237, 0
      %v1763 = vsel %vm314, %v269, 0
      %1765 = vmatprep.subr.mxu0 0.0
      %1766 = vmatpush1.xpose.msra.mxu0 %v1763
      %1767 = vmatprep.subr.mxu0 0.0
      %1768 = vmatpush1.xpose.msra.mxu0 0.0
      %1769 = vmatprep.subr.mxu0 0.0
      %1770 = vmatpush1.xpose.msra.mxu0 0.0
      %1771 = vmatprep.subr.mxu0 0.0
      %1772 = vmatpush1.xpose.msra.mxu0 0.0
      %1773 = vmatprep.subr.mxu0 0.0
      %1774 = vmatpush1.xpose.msra.mxu0 0.0
      %1775 = vmatprep.subr.mxu0 0.0
      %1776 = vmatpush1.xpose.msra.mxu0 0.0
      %1777 = vmatprep.subr.mxu0 0.0
      %1778 = vmatpush1.xpose.msra.mxu0 0.0
      %1779 = vmatprep.subr.mxu0 0.0
      %1780 = vmatpush1.xpose.msra.mxu0 0.0
      %1781 = vmatprep.subr.mxu0 0.0
      %1782 = vmatpush1.xpose.msra.mxu0 0.0
      %1783 = vmatprep.subr.mxu0 0.0
      %1784 = vmatpush1.xpose.msra.mxu0 0.0
      %1785 = vmatprep.subr.mxu0 0.0
      %1786 = vmatpush1.xpose.msra.mxu0 0.0
      %1787 = vmatprep.subr.mxu0 0.0
      %1788 = vmatpush1.xpose.msra.mxu0 0.0
      %1789 = vmatprep.subr.mxu0 0.0
      %1790 = vmatpush1.xpose.msra.mxu0 0.0
      %1791 = vmatprep.subr.mxu0 0.0
      %1792 = vmatpush1.xpose.msra.mxu0 0.0
      %1793 = vmatprep.subr.mxu0 0.0
      %1794 = vmatpush1.xpose.msra.mxu0 0.0
      %1795 = vmatprep.subr.mxu0 0.0
      %1796 = vmatpush1.xpose.msra.mxu0 0.0
      %1797 = vmatprep.subr.mxu0 0.0
      %1798 = vmatpush1.xpose.msra.mxu0 0.0
      %1799 = vmatprep.subr.mxu0 0.0
      %1800 = vmatpush1.xpose.msra.mxu0 0.0
      %1801 = vmatprep.subr.mxu0 0.0
      %1802 = vmatpush1.xpose.msra.mxu0 0.0
      %1803 = vmatprep.subr.mxu0 0.0
      %1804 = vmatpush1.xpose.msra.mxu0 0.0
      %1805 = vmatprep.subr.mxu0 0.0
      %1806 = vmatpush1.xpose.msra.mxu0 0.0
      %1807 = vmatprep.subr.mxu0 0.0
      %1808 = vmatpush1.xpose.msra.mxu0 0.0
      %1809 = vmatprep.subr.mxu0 0.0
      %1810 = vmatpush1.xpose.msra.mxu0 0.0
      %1811 = vmatprep.subr.mxu0 0.0
      %1812 = vmatpush1.xpose.msra.mxu0 0.0
      %1813 = vmatprep.subr.mxu0 0.0
      %1814 = vmatpush1.xpose.msra.mxu0 0.0
      %1815 = vmatprep.subr.mxu0 0.0
      %1816 = vmatpush1.xpose.msra.mxu0 0.0
      %1817 = vmatprep.subr.mxu0 0.0
      %1818 = vmatpush1.xpose.msra.mxu0 0.0
      %1819 = vmatprep.subr.mxu0 0.0
      %1820 = vmatpush1.xpose.msra.mxu0 0.0
      %1821 = vmatprep.subr.mxu0 0.0
      %1822 = vmatpush1.xpose.msra.mxu0 0.0
      %1823 = vmatprep.subr.mxu0 0.0
      %1824 = vmatpush1.xpose.msra.mxu0 0.0
      %1825 = vmatprep.subr.mxu0 0.0
      %1826 = vmatpush1.xpose.msra.mxu0 0.0
      %1827 = vmatprep.subr.mxu0 0.0
      %1828 = vmatpush1.xpose.msra.mxu0 0.0
      %1829 = vmatprep.mubr.f32.mxu0 0.0
      %1830 = vmatmul.mubr.f32.gmra.mrb[0].mxu0 %v1760
      %v1831 = vpop.f32.mrb[0].mxu0
      %v1832 = vadd.f32 0.0, %v1831
      %v1833 = vpop.f32.mrb[0].mxu0
      %1834 = vdwg.mxu0
      %v1836 = vsel %vm314, %v238, 0
      %v1839 = vsel %vm314, %v270, 0
      %1841 = vmatprep.subr.mxu0 0.0
      %1842 = vmatpush1.xpose.msra.mxu0 %v1839
      %1843 = vmatprep.subr.mxu0 0.0
      %1844 = vmatpush1.xpose.msra.mxu0 0.0
      %1845 = vmatprep.subr.mxu0 0.0
      %1846 = vmatpush1.xpose.msra.mxu0 0.0
      %1847 = vmatprep.subr.mxu0 0.0
      %1848 = vmatpush1.xpose.msra.mxu0 0.0
      %1849 = vmatprep.subr.mxu0 0.0
      %1850 = vmatpush1.xpose.msra.mxu0 0.0
      %1851 = vmatprep.subr.mxu0 0.0
      %1852 = vmatpush1.xpose.msra.mxu0 0.0
      %1853 = vmatprep.subr.mxu0 0.0
      %1854 = vmatpush1.xpose.msra.mxu0 0.0
      %1855 = vmatprep.subr.mxu0 0.0
      %1856 = vmatpush1.xpose.msra.mxu0 0.0
      %1857 = vmatprep.subr.mxu0 0.0
      %1858 = vmatpush1.xpose.msra.mxu0 0.0
      %1859 = vmatprep.subr.mxu0 0.0
      %1860 = vmatpush1.xpose.msra.mxu0 0.0
      %1861 = vmatprep.subr.mxu0 0.0
      %1862 = vmatpush1.xpose.msra.mxu0 0.0
      %1863 = vmatprep.subr.mxu0 0.0
      %1864 = vmatpush1.xpose.msra.mxu0 0.0
      %1865 = vmatprep.subr.mxu0 0.0
      %1866 = vmatpush1.xpose.msra.mxu0 0.0
      %1867 = vmatprep.subr.mxu0 0.0
      %1868 = vmatpush1.xpose.msra.mxu0 0.0
      %1869 = vmatprep.subr.mxu0 0.0
      %1870 = vmatpush1.xpose.msra.mxu0 0.0
      %1871 = vmatprep.subr.mxu0 0.0
      %1872 = vmatpush1.xpose.msra.mxu0 0.0
      %1873 = vmatprep.subr.mxu0 0.0
      %1874 = vmatpush1.xpose.msra.mxu0 0.0
      %1875 = vmatprep.subr.mxu0 0.0
      %1876 = vmatpush1.xpose.msra.mxu0 0.0
      %1877 = vmatprep.subr.mxu0 0.0
      %1878 = vmatpush1.xpose.msra.mxu0 0.0
      %1879 = vmatprep.subr.mxu0 0.0
      %1880 = vmatpush1.xpose.msra.mxu0 0.0
      %1881 = vmatprep.subr.mxu0 0.0
      %1882 = vmatpush1.xpose.msra.mxu0 0.0
      %1883 = vmatprep.subr.mxu0 0.0
      %1884 = vmatpush1.xpose.msra.mxu0 0.0
      %1885 = vmatprep.subr.mxu0 0.0
      %1886 = vmatpush1.xpose.msra.mxu0 0.0
      %1887 = vmatprep.subr.mxu0 0.0
      %1888 = vmatpush1.xpose.msra.mxu0 0.0
      %1889 = vmatprep.subr.mxu0 0.0
      %1890 = vmatpush1.xpose.msra.mxu0 0.0
      %1891 = vmatprep.subr.mxu0 0.0
      %1892 = vmatpush1.xpose.msra.mxu0 0.0
      %1893 = vmatprep.subr.mxu0 0.0
      %1894 = vmatpush1.xpose.msra.mxu0 0.0
      %1895 = vmatprep.subr.mxu0 0.0
      %1896 = vmatpush1.xpose.msra.mxu0 0.0
      %1897 = vmatprep.subr.mxu0 0.0
      %1898 = vmatpush1.xpose.msra.mxu0 0.0
      %1899 = vmatprep.subr.mxu0 0.0
      %1900 = vmatpush1.xpose.msra.mxu0 0.0
      %1901 = vmatprep.subr.mxu0 0.0
      %1902 = vmatpush1.xpose.msra.mxu0 0.0
      %1903 = vmatprep.subr.mxu0 0.0
      %1904 = vmatpush1.xpose.msra.mxu0 0.0
      %1905 = vmatprep.mubr.f32.mxu0 0.0
      %1906 = vmatmul.mubr.f32.gmra.mrb[0].mxu0 %v1836
      %v1907 = vpop.f32.mrb[0].mxu0
      %v1908 = vadd.f32 0.0, %v1907
      %v1909 = vpop.f32.mrb[0].mxu0
      %1910 = vdwg.mxu0
      %v1912 = vsel %vm314, %v239, 0
      %v1915 = vsel %vm314, %v271, 0
      %1917 = vmatprep.subr.mxu0 0.0
      %1918 = vmatpush1.xpose.msra.mxu0 %v1915
      %1919 = vmatprep.subr.mxu0 0.0
      %1920 = vmatpush1.xpose.msra.mxu0 0.0
      %1921 = vmatprep.subr.mxu0 0.0
      %1922 = vmatpush1.xpose.msra.mxu0 0.0
      %1923 = vmatprep.subr.mxu0 0.0
      %1924 = vmatpush1.xpose.msra.mxu0 0.0
      %1925 = vmatprep.subr.mxu0 0.0
      %1926 = vmatpush1.xpose.msra.mxu0 0.0
      %1927 = vmatprep.subr.mxu0 0.0
      %1928 = vmatpush1.xpose.msra.mxu0 0.0
      %1929 = vmatprep.subr.mxu0 0.0
      %1930 = vmatpush1.xpose.msra.mxu0 0.0
      %1931 = vmatprep.subr.mxu0 0.0
      %1932 = vmatpush1.xpose.msra.mxu0 0.0
      %1933 = vmatprep.subr.mxu0 0.0
      %1934 = vmatpush1.xpose.msra.mxu0 0.0
      %1935 = vmatprep.subr.mxu0 0.0
      %1936 = vmatpush1.xpose.msra.mxu0 0.0
      %1937 = vmatprep.subr.mxu0 0.0
      %1938 = vmatpush1.xpose.msra.mxu0 0.0
      %1939 = vmatprep.subr.mxu0 0.0
      %1940 = vmatpush1.xpose.msra.mxu0 0.0
      %1941 = vmatprep.subr.mxu0 0.0
      %1942 = vmatpush1.xpose.msra.mxu0 0.0
      %1943 = vmatprep.subr.mxu0 0.0
      %1944 = vmatpush1.xpose.msra.mxu0 0.0
      %1945 = vmatprep.subr.mxu0 0.0
      %1946 = vmatpush1.xpose.msra.mxu0 0.0
      %1947 = vmatprep.subr.mxu0 0.0
      %1948 = vmatpush1.xpose.msra.mxu0 0.0
      %1949 = vmatprep.subr.mxu0 0.0
      %1950 = vmatpush1.xpose.msra.mxu0 0.0
      %1951 = vmatprep.subr.mxu0 0.0
      %1952 = vmatpush1.xpose.msra.mxu0 0.0
      %1953 = vmatprep.subr.mxu0 0.0
      %1954 = vmatpush1.xpose.msra.mxu0 0.0
      %1955 = vmatprep.subr.mxu0 0.0
      %1956 = vmatpush1.xpose.msra.mxu0 0.0
      %1957 = vmatprep.subr.mxu0 0.0
      %1958 = vmatpush1.xpose.msra.mxu0 0.0
      %1959 = vmatprep.subr.mxu0 0.0
      %1960 = vmatpush1.xpose.msra.mxu0 0.0
      %1961 = vmatprep.subr.mxu0 0.0
      %1962 = vmatpush1.xpose.msra.mxu0 0.0
      %1963 = vmatprep.subr.mxu0 0.0
      %1964 = vmatpush1.xpose.msra.mxu0 0.0
      %1965 = vmatprep.subr.mxu0 0.0
      %1966 = vmatpush1.xpose.msra.mxu0 0.0
      %1967 = vmatprep.subr.mxu0 0.0
      %1968 = vmatpush1.xpose.msra.mxu0 0.0
      %1969 = vmatprep.subr.mxu0 0.0
      %1970 = vmatpush1.xpose.msra.mxu0 0.0
      %1971 = vmatprep.subr.mxu0 0.0
      %1972 = vmatpush1.xpose.msra.mxu0 0.0
      %1973 = vmatprep.subr.mxu0 0.0
      %1974 = vmatpush1.xpose.msra.mxu0 0.0
      %1975 = vmatprep.subr.mxu0 0.0
      %1976 = vmatpush1.xpose.msra.mxu0 0.0
      %1977 = vmatprep.subr.mxu0 0.0
      %1978 = vmatpush1.xpose.msra.mxu0 0.0
      %1979 = vmatprep.subr.mxu0 0.0
      %1980 = vmatpush1.xpose.msra.mxu0 0.0
      %1981 = vmatprep.mubr.f32.mxu0 0.0
      %1982 = vmatmul.mubr.f32.gmra.mrb[0].mxu0 %v1912
      %v1983 = vpop.f32.mrb[0].mxu0
      %v1984 = vadd.f32 0.0, %v1983
      %v1985 = vpop.f32.mrb[0].mxu0
      %1986 = vdwg.mxu0
      %v1988 = vsel %vm314, %v240, 0
      %v1991 = vsel %vm314, %v272, 0
      %1993 = vmatprep.subr.mxu0 0.0
      %1994 = vmatpush1.xpose.msra.mxu0 %v1991
      %1995 = vmatprep.subr.mxu0 0.0
      %1996 = vmatpush1.xpose.msra.mxu0 0.0
      %1997 = vmatprep.subr.mxu0 0.0
      %1998 = vmatpush1.xpose.msra.mxu0 0.0
      %1999 = vmatprep.subr.mxu0 0.0
      %2000 = vmatpush1.xpose.msra.mxu0 0.0
      %2001 = vmatprep.subr.mxu0 0.0
      %2002 = vmatpush1.xpose.msra.mxu0 0.0
      %2003 = vmatprep.subr.mxu0 0.0
      %2004 = vmatpush1.xpose.msra.mxu0 0.0
      %2005 = vmatprep.subr.mxu0 0.0
      %2006 = vmatpush1.xpose.msra.mxu0 0.0
      %2007 = vmatprep.subr.mxu0 0.0
      %2008 = vmatpush1.xpose.msra.mxu0 0.0
      %2009 = vmatprep.subr.mxu0 0.0
      %2010 = vmatpush1.xpose.msra.mxu0 0.0
      %2011 = vmatprep.subr.mxu0 0.0
      %2012 = vmatpush1.xpose.msra.mxu0 0.0
      %2013 = vmatprep.subr.mxu0 0.0
      %2014 = vmatpush1.xpose.msra.mxu0 0.0
      %2015 = vmatprep.subr.mxu0 0.0
      %2016 = vmatpush1.xpose.msra.mxu0 0.0
      %2017 = vmatprep.subr.mxu0 0.0
      %2018 = vmatpush1.xpose.msra.mxu0 0.0
      %2019 = vmatprep.subr.mxu0 0.0
      %2020 = vmatpush1.xpose.msra.mxu0 0.0
      %2021 = vmatprep.subr.mxu0 0.0
      %2022 = vmatpush1.xpose.msra.mxu0 0.0
      %2023 = vmatprep.subr.mxu0 0.0
      %2024 = vmatpush1.xpose.msra.mxu0 0.0
      %2025 = vmatprep.subr.mxu0 0.0
      %2026 = vmatpush1.xpose.msra.mxu0 0.0
      %2027 = vmatprep.subr.mxu0 0.0
      %2028 = vmatpush1.xpose.msra.mxu0 0.0
      %2029 = vmatprep.subr.mxu0 0.0
      %2030 = vmatpush1.xpose.msra.mxu0 0.0
      %2031 = vmatprep.subr.mxu0 0.0
      %2032 = vmatpush1.xpose.msra.mxu0 0.0
      %2033 = vmatprep.subr.mxu0 0.0
      %2034 = vmatpush1.xpose.msra.mxu0 0.0
      %2035 = vmatprep.subr.mxu0 0.0
      %2036 = vmatpush1.xpose.msra.mxu0 0.0
      %2037 = vmatprep.subr.mxu0 0.0
      %2038 = vmatpush1.xpose.msra.mxu0 0.0
      %2039 = vmatprep.subr.mxu0 0.0
      %2040 = vmatpush1.xpose.msra.mxu0 0.0
      %2041 = vmatprep.subr.mxu0 0.0
      %2042 = vmatpush1.xpose.msra.mxu0 0.0
      %2043 = vmatprep.subr.mxu0 0.0
      %2044 = vmatpush1.xpose.msra.mxu0 0.0
      %2045 = vmatprep.subr.mxu0 0.0
      %2046 = vmatpush1.xpose.msra.mxu0 0.0
      %2047 = vmatprep.subr.mxu0 0.0
      %2048 = vmatpush1.xpose.msra.mxu0 0.0
      %2049 = vmatprep.subr.mxu0 0.0
      %2050 = vmatpush1.xpose.msra.mxu0 0.0
      %2051 = vmatprep.subr.mxu0 0.0
      %2052 = vmatpush1.xpose.msra.mxu0 0.0
      %2053 = vmatprep.subr.mxu0 0.0
      %2054 = vmatpush1.xpose.msra.mxu0 0.0
      %2055 = vmatprep.subr.mxu0 0.0
      %2056 = vmatpush1.xpose.msra.mxu0 0.0
      %2057 = vmatprep.mubr.f32.mxu0 0.0
      %2058 = vmatmul.mubr.f32.gmra.mrb[0].mxu0 %v1988
      %v2059 = vpop.f32.mrb[0].mxu0
      %v2060 = vadd.f32 0.0, %v2059
      %v2061 = vpop.f32.mrb[0].mxu0
      %2062 = vdwg.mxu0
      %v2064 = vsel %vm314, %v241, 0
      %v2067 = vsel %vm314, %v273, 0
      %2069 = vmatprep.subr.mxu0 0.0
      %2070 = vmatpush1.xpose.msra.mxu0 %v2067
      %2071 = vmatprep.subr.mxu0 0.0
      %2072 = vmatpush1.xpose.msra.mxu0 0.0
      %2073 = vmatprep.subr.mxu0 0.0
      %2074 = vmatpush1.xpose.msra.mxu0 0.0
      %2075 = vmatprep.subr.mxu0 0.0
      %2076 = vmatpush1.xpose.msra.mxu0 0.0
      %2077 = vmatprep.subr.mxu0 0.0
      %2078 = vmatpush1.xpose.msra.mxu0 0.0
      %2079 = vmatprep.subr.mxu0 0.0
      %2080 = vmatpush1.xpose.msra.mxu0 0.0
      %2081 = vmatprep.subr.mxu0 0.0
      %2082 = vmatpush1.xpose.msra.mxu0 0.0
      %2083 = vmatprep.subr.mxu0 0.0
      %2084 = vmatpush1.xpose.msra.mxu0 0.0
      %2085 = vmatprep.subr.mxu0 0.0
      %2086 = vmatpush1.xpose.msra.mxu0 0.0
      %2087 = vmatprep.subr.mxu0 0.0
      %2088 = vmatpush1.xpose.msra.mxu0 0.0
      %2089 = vmatprep.subr.mxu0 0.0
      %2090 = vmatpush1.xpose.msra.mxu0 0.0
      %2091 = vmatprep.subr.mxu0 0.0
      %2092 = vmatpush1.xpose.msra.mxu0 0.0
      %2093 = vmatprep.subr.mxu0 0.0
      %2094 = vmatpush1.xpose.msra.mxu0 0.0
      %2095 = vmatprep.subr.mxu0 0.0
      %2096 = vmatpush1.xpose.msra.mxu0 0.0
      %2097 = vmatprep.subr.mxu0 0.0
      %2098 = vmatpush1.xpose.msra.mxu0 0.0
      %2099 = vmatprep.subr.mxu0 0.0
      %2100 = vmatpush1.xpose.msra.mxu0 0.0
      %2101 = vmatprep.subr.mxu0 0.0
      %2102 = vmatpush1.xpose.msra.mxu0 0.0
      %2103 = vmatprep.subr.mxu0 0.0
      %2104 = vmatpush1.xpose.msra.mxu0 0.0
      %2105 = vmatprep.subr.mxu0 0.0
      %2106 = vmatpush1.xpose.msra.mxu0 0.0
      %2107 = vmatprep.subr.mxu0 0.0
      %2108 = vmatpush1.xpose.msra.mxu0 0.0
      %2109 = vmatprep.subr.mxu0 0.0
      %2110 = vmatpush1.xpose.msra.mxu0 0.0
      %2111 = vmatprep.subr.mxu0 0.0
      %2112 = vmatpush1.xpose.msra.mxu0 0.0
      %2113 = vmatprep.subr.mxu0 0.0
      %2114 = vmatpush1.xpose.msra.mxu0 0.0
      %2115 = vmatprep.subr.mxu0 0.0
      %2116 = vmatpush1.xpose.msra.mxu0 0.0
      %2117 = vmatprep.subr.mxu0 0.0
      %2118 = vmatpush1.xpose.msra.mxu0 0.0
      %2119 = vmatprep.subr.mxu0 0.0
      %2120 = vmatpush1.xpose.msra.mxu0 0.0
      %2121 = vmatprep.subr.mxu0 0.0
      %2122 = vmatpush1.xpose.msra.mxu0 0.0
      %2123 = vmatprep.subr.mxu0 0.0
      %2124 = vmatpush1.xpose.msra.mxu0 0.0
      %2125 = vmatprep.subr.mxu0 0.0
      %2126 = vmatpush1.xpose.msra.mxu0 0.0
      %2127 = vmatprep.subr.mxu0 0.0
      %2128 = vmatpush1.xpose.msra.mxu0 0.0
      %2129 = vmatprep.subr.mxu0 0.0
      %2130 = vmatpush1.xpose.msra.mxu0 0.0
      %2131 = vmatprep.subr.mxu0 0.0
      %2132 = vmatpush1.xpose.msra.mxu0 0.0
      %2133 = vmatprep.mubr.f32.mxu0 0.0
      %2134 = vmatmul.mubr.f32.gmra.mrb[0].mxu0 %v2064
      %v2135 = vpop.f32.mrb[0].mxu0
      %v2136 = vadd.f32 0.0, %v2135
      %v2137 = vpop.f32.mrb[0].mxu0
      %2138 = vdwg.mxu0
      %v2140 = vsel %vm314, %v242, 0
      %v2143 = vsel %vm314, %v274, 0
      %2145 = vmatprep.subr.mxu0 0.0
      %2146 = vmatpush1.xpose.msra.mxu0 %v2143
      %2147 = vmatprep.subr.mxu0 0.0
      %2148 = vmatpush1.xpose.msra.mxu0 0.0
      %2149 = vmatprep.subr.mxu0 0.0
      %2150 = vmatpush1.xpose.msra.mxu0 0.0
      %2151 = vmatprep.subr.mxu0 0.0
      %2152 = vmatpush1.xpose.msra.mxu0 0.0
      %2153 = vmatprep.subr.mxu0 0.0
      %2154 = vmatpush1.xpose.msra.mxu0 0.0
      %2155 = vmatprep.subr.mxu0 0.0
      %2156 = vmatpush1.xpose.msra.mxu0 0.0
      %2157 = vmatprep.subr.mxu0 0.0
      %2158 = vmatpush1.xpose.msra.mxu0 0.0
      %2159 = vmatprep.subr.mxu0 0.0
      %2160 = vmatpush1.xpose.msra.mxu0 0.0
      %2161 = vmatprep.subr.mxu0 0.0
      %2162 = vmatpush1.xpose.msra.mxu0 0.0
      %2163 = vmatprep.subr.mxu0 0.0
      %2164 = vmatpush1.xpose.msra.mxu0 0.0
      %2165 = vmatprep.subr.mxu0 0.0
      %2166 = vmatpush1.xpose.msra.mxu0 0.0
      %2167 = vmatprep.subr.mxu0 0.0
      %2168 = vmatpush1.xpose.msra.mxu0 0.0
      %2169 = vmatprep.subr.mxu0 0.0
      %2170 = vmatpush1.xpose.msra.mxu0 0.0
      %2171 = vmatprep.subr.mxu0 0.0
      %2172 = vmatpush1.xpose.msra.mxu0 0.0
      %2173 = vmatprep.subr.mxu0 0.0
      %2174 = vmatpush1.xpose.msra.mxu0 0.0
      %2175 = vmatprep.subr.mxu0 0.0
      %2176 = vmatpush1.xpose.msra.mxu0 0.0
      %2177 = vmatprep.subr.mxu0 0.0
      %2178 = vmatpush1.xpose.msra.mxu0 0.0
      %2179 = vmatprep.subr.mxu0 0.0
      %2180 = vmatpush1.xpose.msra.mxu0 0.0
      %2181 = vmatprep.subr.mxu0 0.0
      %2182 = vmatpush1.xpose.msra.mxu0 0.0
      %2183 = vmatprep.subr.mxu0 0.0
      %2184 = vmatpush1.xpose.msra.mxu0 0.0
      %2185 = vmatprep.subr.mxu0 0.0
      %2186 = vmatpush1.xpose.msra.mxu0 0.0
      %2187 = vmatprep.subr.mxu0 0.0
      %2188 = vmatpush1.xpose.msra.mxu0 0.0
      %2189 = vmatprep.subr.mxu0 0.0
      %2190 = vmatpush1.xpose.msra.mxu0 0.0
      %2191 = vmatprep.subr.mxu0 0.0
      %2192 = vmatpush1.xpose.msra.mxu0 0.0
      %2193 = vmatprep.subr.mxu0 0.0
      %2194 = vmatpush1.xpose.msra.mxu0 0.0
      %2195 = vmatprep.subr.mxu0 0.0
      %2196 = vmatpush1.xpose.msra.mxu0 0.0
      %2197 = vmatprep.subr.mxu0 0.0
      %2198 = vmatpush1.xpose.msra.mxu0 0.0
      %2199 = vmatprep.subr.mxu0 0.0
      %2200 = vmatpush1.xpose.msra.mxu0 0.0
      %2201 = vmatprep.subr.mxu0 0.0
      %2202 = vmatpush1.xpose.msra.mxu0 0.0
      %2203 = vmatprep.subr.mxu0 0.0
      %2204 = vmatpush1.xpose.msra.mxu0 0.0
      %2205 = vmatprep.subr.mxu0 0.0
      %2206 = vmatpush1.xpose.msra.mxu0 0.0
      %2207 = vmatprep.subr.mxu0 0.0
      %2208 = vmatpush1.xpose.msra.mxu0 0.0
      %2209 = vmatprep.mubr.f32.mxu0 0.0
      %2210 = vmatmul.mubr.f32.gmra.mrb[0].mxu0 %v2140
      %v2211 = vpop.f32.mrb[0].mxu0
      %v2212 = vadd.f32 0.0, %v2211
      %v2213 = vpop.f32.mrb[0].mxu0
      %2214 = vdwg.mxu0
      %v2216 = vsel %vm314, %v243, 0
      %v2219 = vsel %vm314, %v275, 0
      %2221 = vmatprep.subr.mxu0 0.0
      %2222 = vmatpush1.xpose.msra.mxu0 %v2219
      %2223 = vmatprep.subr.mxu0 0.0
      %2224 = vmatpush1.xpose.msra.mxu0 0.0
      %2225 = vmatprep.subr.mxu0 0.0
      %2226 = vmatpush1.xpose.msra.mxu0 0.0
      %2227 = vmatprep.subr.mxu0 0.0
      %2228 = vmatpush1.xpose.msra.mxu0 0.0
      %2229 = vmatprep.subr.mxu0 0.0
      %2230 = vmatpush1.xpose.msra.mxu0 0.0
      %2231 = vmatprep.subr.mxu0 0.0
      %2232 = vmatpush1.xpose.msra.mxu0 0.0
      %2233 = vmatprep.subr.mxu0 0.0
      %2234 = vmatpush1.xpose.msra.mxu0 0.0
      %2235 = vmatprep.subr.mxu0 0.0
      %2236 = vmatpush1.xpose.msra.mxu0 0.0
      %2237 = vmatprep.subr.mxu0 0.0
      %2238 = vmatpush1.xpose.msra.mxu0 0.0
      %2239 = vmatprep.subr.mxu0 0.0
      %2240 = vmatpush1.xpose.msra.mxu0 0.0
      %2241 = vmatprep.subr.mxu0 0.0
      %2242 = vmatpush1.xpose.msra.mxu0 0.0
      %2243 = vmatprep.subr.mxu0 0.0
      %2244 = vmatpush1.xpose.msra.mxu0 0.0
      %2245 = vmatprep.subr.mxu0 0.0
      %2246 = vmatpush1.xpose.msra.mxu0 0.0
      %2247 = vmatprep.subr.mxu0 0.0
      %2248 = vmatpush1.xpose.msra.mxu0 0.0
      %2249 = vmatprep.subr.mxu0 0.0
      %2250 = vmatpush1.xpose.msra.mxu0 0.0
      %2251 = vmatprep.subr.mxu0 0.0
      %2252 = vmatpush1.xpose.msra.mxu0 0.0
      %2253 = vmatprep.subr.mxu0 0.0
      %2254 = vmatpush1.xpose.msra.mxu0 0.0
      %2255 = vmatprep.subr.mxu0 0.0
      %2256 = vmatpush1.xpose.msra.mxu0 0.0
      %2257 = vmatprep.subr.mxu0 0.0
      %2258 = vmatpush1.xpose.msra.mxu0 0.0
      %2259 = vmatprep.subr.mxu0 0.0
      %2260 = vmatpush1.xpose.msra.mxu0 0.0
      %2261 = vmatprep.subr.mxu0 0.0
      %2262 = vmatpush1.xpose.msra.mxu0 0.0
      %2263 = vmatprep.subr.mxu0 0.0
      %2264 = vmatpush1.xpose.msra.mxu0 0.0
      %2265 = vmatprep.subr.mxu0 0.0
      %2266 = vmatpush1.xpose.msra.mxu0 0.0
      %2267 = vmatprep.subr.mxu0 0.0
      %2268 = vmatpush1.xpose.msra.mxu0 0.0
      %2269 = vmatprep.subr.mxu0 0.0
      %2270 = vmatpush1.xpose.msra.mxu0 0.0
      %2271 = vmatprep.subr.mxu0 0.0
      %2272 = vmatpush1.xpose.msra.mxu0 0.0
      %2273 = vmatprep.subr.mxu0 0.0
      %2274 = vmatpush1.xpose.msra.mxu0 0.0
      %2275 = vmatprep.subr.mxu0 0.0
      %2276 = vmatpush1.xpose.msra.mxu0 0.0
      %2277 = vmatprep.subr.mxu0 0.0
      %2278 = vmatpush1.xpose.msra.mxu0 0.0
      %2279 = vmatprep.subr.mxu0 0.0
      %2280 = vmatpush1.xpose.msra.mxu0 0.0
      %2281 = vmatprep.subr.mxu0 0.0
      %2282 = vmatpush1.xpose.msra.mxu0 0.0
      %2283 = vmatprep.subr.mxu0 0.0
      %2284 = vmatpush1.xpose.msra.mxu0 0.0
      %2285 = vmatprep.mubr.f32.mxu0 0.0
      %2286 = vmatmul.mubr.f32.gmra.mrb[0].mxu0 %v2216
      %v2287 = vpop.f32.mrb[0].mxu0
      %v2288 = vadd.f32 0.0, %v2287
      %v2289 = vpop.f32.mrb[0].mxu0
      %2290 = vdwg.mxu0
      %v2292 = vsel %vm314, %v244, 0
      %v2295 = vsel %vm314, %v276, 0
      %2297 = vmatprep.subr.mxu0 0.0
      %2298 = vmatpush1.xpose.msra.mxu0 %v2295
      %2299 = vmatprep.subr.mxu0 0.0
      %2300 = vmatpush1.xpose.msra.mxu0 0.0
      %2301 = vmatprep.subr.mxu0 0.0
      %2302 = vmatpush1.xpose.msra.mxu0 0.0
      %2303 = vmatprep.subr.mxu0 0.0
      %2304 = vmatpush1.xpose.msra.mxu0 0.0
      %2305 = vmatprep.subr.mxu0 0.0
      %2306 = vmatpush1.xpose.msra.mxu0 0.0
      %2307 = vmatprep.subr.mxu0 0.0
      %2308 = vmatpush1.xpose.msra.mxu0 0.0
      %2309 = vmatprep.subr.mxu0 0.0
      %2310 = vmatpush1.xpose.msra.mxu0 0.0
      %2311 = vmatprep.subr.mxu0 0.0
      %2312 = vmatpush1.xpose.msra.mxu0 0.0
      %2313 = vmatprep.subr.mxu0 0.0
      %2314 = vmatpush1.xpose.msra.mxu0 0.0
      %2315 = vmatprep.subr.mxu0 0.0
      %2316 = vmatpush1.xpose.msra.mxu0 0.0
      %2317 = vmatprep.subr.mxu0 0.0
      %2318 = vmatpush1.xpose.msra.mxu0 0.0
      %2319 = vmatprep.subr.mxu0 0.0
      %2320 = vmatpush1.xpose.msra.mxu0 0.0
      %2321 = vmatprep.subr.mxu0 0.0
      %2322 = vmatpush1.xpose.msra.mxu0 0.0
      %2323 = vmatprep.subr.mxu0 0.0
      %2324 = vmatpush1.xpose.msra.mxu0 0.0
      %2325 = vmatprep.subr.mxu0 0.0
      %2326 = vmatpush1.xpose.msra.mxu0 0.0
      %2327 = vmatprep.subr.mxu0 0.0
      %2328 = vmatpush1.xpose.msra.mxu0 0.0
      %2329 = vmatprep.subr.mxu0 0.0
      %2330 = vmatpush1.xpose.msra.mxu0 0.0
      %2331 = vmatprep.subr.mxu0 0.0
      %2332 = vmatpush1.xpose.msra.mxu0 0.0
      %2333 = vmatprep.subr.mxu0 0.0
      %2334 = vmatpush1.xpose.msra.mxu0 0.0
      %2335 = vmatprep.subr.mxu0 0.0
      %2336 = vmatpush1.xpose.msra.mxu0 0.0
      %2337 = vmatprep.subr.mxu0 0.0
      %2338 = vmatpush1.xpose.msra.mxu0 0.0
      %2339 = vmatprep.subr.mxu0 0.0
      %2340 = vmatpush1.xpose.msra.mxu0 0.0
      %2341 = vmatprep.subr.mxu0 0.0
      %2342 = vmatpush1.xpose.msra.mxu0 0.0
      %2343 = vmatprep.subr.mxu0 0.0
      %2344 = vmatpush1.xpose.msra.mxu0 0.0
      %2345 = vmatprep.subr.mxu0 0.0
      %2346 = vmatpush1.xpose.msra.mxu0 0.0
      %2347 = vmatprep.subr.mxu0 0.0
      %2348 = vmatpush1.xpose.msra.mxu0 0.0
      %2349 = vmatprep.subr.mxu0 0.0
      %2350 = vmatpush1.xpose.msra.mxu0 0.0
      %2351 = vmatprep.subr.mxu0 0.0
      %2352 = vmatpush1.xpose.msra.mxu0 0.0
      %2353 = vmatprep.subr.mxu0 0.0
      %2354 = vmatpush1.xpose.msra.mxu0 0.0
      %2355 = vmatprep.subr.mxu0 0.0
      %2356 = vmatpush1.xpose.msra.mxu0 0.0
      %2357 = vmatprep.subr.mxu0 0.0
      %2358 = vmatpush1.xpose.msra.mxu0 0.0
      %2359 = vmatprep.subr.mxu0 0.0
      %2360 = vmatpush1.xpose.msra.mxu0 0.0
      %2361 = vmatprep.mubr.f32.mxu0 0.0
      %2362 = vmatmul.mubr.f32.gmra.mrb[0].mxu0 %v2292
      %v2363 = vpop.f32.mrb[0].mxu0
      %v2364 = vadd.f32 0.0, %v2363
      %v2365 = vpop.f32.mrb[0].mxu0
      %2366 = vdwg.mxu0
      %v2368 = vsel %vm314, %v245, 0
      %v2371 = vsel %vm314, %v277, 0
      %2373 = vmatprep.subr.mxu0 0.0
      %2374 = vmatpush1.xpose.msra.mxu0 %v2371
      %2375 = vmatprep.subr.mxu0 0.0
      %2376 = vmatpush1.xpose.msra.mxu0 0.0
      %2377 = vmatprep.subr.mxu0 0.0
      %2378 = vmatpush1.xpose.msra.mxu0 0.0
      %2379 = vmatprep.subr.mxu0 0.0
      %2380 = vmatpush1.xpose.msra.mxu0 0.0
      %2381 = vmatprep.subr.mxu0 0.0
      %2382 = vmatpush1.xpose.msra.mxu0 0.0
      %2383 = vmatprep.subr.mxu0 0.0
      %2384 = vmatpush1.xpose.msra.mxu0 0.0
      %2385 = vmatprep.subr.mxu0 0.0
      %2386 = vmatpush1.xpose.msra.mxu0 0.0
      %2387 = vmatprep.subr.mxu0 0.0
      %2388 = vmatpush1.xpose.msra.mxu0 0.0
      %2389 = vmatprep.subr.mxu0 0.0
      %2390 = vmatpush1.xpose.msra.mxu0 0.0
      %2391 = vmatprep.subr.mxu0 0.0
      %2392 = vmatpush1.xpose.msra.mxu0 0.0
      %2393 = vmatprep.subr.mxu0 0.0
      %2394 = vmatpush1.xpose.msra.mxu0 0.0
      %2395 = vmatprep.subr.mxu0 0.0
      %2396 = vmatpush1.xpose.msra.mxu0 0.0
      %2397 = vmatprep.subr.mxu0 0.0
      %2398 = vmatpush1.xpose.msra.mxu0 0.0
      %2399 = vmatprep.subr.mxu0 0.0
      %2400 = vmatpush1.xpose.msra.mxu0 0.0
      %2401 = vmatprep.subr.mxu0 0.0
      %2402 = vmatpush1.xpose.msra.mxu0 0.0
      %2403 = vmatprep.subr.mxu0 0.0
      %2404 = vmatpush1.xpose.msra.mxu0 0.0
      %2405 = vmatprep.subr.mxu0 0.0
      %2406 = vmatpush1.xpose.msra.mxu0 0.0
      %2407 = vmatprep.subr.mxu0 0.0
      %2408 = vmatpush1.xpose.msra.mxu0 0.0
      %2409 = vmatprep.subr.mxu0 0.0
      %2410 = vmatpush1.xpose.msra.mxu0 0.0
      %2411 = vmatprep.subr.mxu0 0.0
      %2412 = vmatpush1.xpose.msra.mxu0 0.0
      %2413 = vmatprep.subr.mxu0 0.0
      %2414 = vmatpush1.xpose.msra.mxu0 0.0
      %2415 = vmatprep.subr.mxu0 0.0
      %2416 = vmatpush1.xpose.msra.mxu0 0.0
      %2417 = vmatprep.subr.mxu0 0.0
      %2418 = vmatpush1.xpose.msra.mxu0 0.0
      %2419 = vmatprep.subr.mxu0 0.0
      %2420 = vmatpush1.xpose.msra.mxu0 0.0
      %2421 = vmatprep.subr.mxu0 0.0
      %2422 = vmatpush1.xpose.msra.mxu0 0.0
      %2423 = vmatprep.subr.mxu0 0.0
      %2424 = vmatpush1.xpose.msra.mxu0 0.0
      %2425 = vmatprep.subr.mxu0 0.0
      %2426 = vmatpush1.xpose.msra.mxu0 0.0
      %2427 = vmatprep.subr.mxu0 0.0
      %2428 = vmatpush1.xpose.msra.mxu0 0.0
      %2429 = vmatprep.subr.mxu0 0.0
      %2430 = vmatpush1.xpose.msra.mxu0 0.0
      %2431 = vmatprep.subr.mxu0 0.0
      %2432 = vmatpush1.xpose.msra.mxu0 0.0
      %2433 = vmatprep.subr.mxu0 0.0
      %2434 = vmatpush1.xpose.msra.mxu0 0.0
      %2435 = vmatprep.subr.mxu0 0.0
      %2436 = vmatpush1.xpose.msra.mxu0 0.0
      %2437 = vmatprep.mubr.f32.mxu0 0.0
      %2438 = vmatmul.mubr.f32.gmra.mrb[0].mxu0 %v2368
      %v2439 = vpop.f32.mrb[0].mxu0
      %v2440 = vadd.f32 0.0, %v2439
      %v2441 = vpop.f32.mrb[0].mxu0
      %2442 = vdwg.mxu0
      %v2444 = vsel %vm314, %v246, 0
      %v2447 = vsel %vm314, %v278, 0
      %2449 = vmatprep.subr.mxu0 0.0
      %2450 = vmatpush1.xpose.msra.mxu0 %v2447
      %2451 = vmatprep.subr.mxu0 0.0
      %2452 = vmatpush1.xpose.msra.mxu0 0.0
      %2453 = vmatprep.subr.mxu0 0.0
      %2454 = vmatpush1.xpose.msra.mxu0 0.0
      %2455 = vmatprep.subr.mxu0 0.0
      %2456 = vmatpush1.xpose.msra.mxu0 0.0
      %2457 = vmatprep.subr.mxu0 0.0
      %2458 = vmatpush1.xpose.msra.mxu0 0.0
      %2459 = vmatprep.subr.mxu0 0.0
      %2460 = vmatpush1.xpose.msra.mxu0 0.0
      %2461 = vmatprep.subr.mxu0 0.0
      %2462 = vmatpush1.xpose.msra.mxu0 0.0
      %2463 = vmatprep.subr.mxu0 0.0
      %2464 = vmatpush1.xpose.msra.mxu0 0.0
      %2465 = vmatprep.subr.mxu0 0.0
      %2466 = vmatpush1.xpose.msra.mxu0 0.0
      %2467 = vmatprep.subr.mxu0 0.0
      %2468 = vmatpush1.xpose.msra.mxu0 0.0
      %2469 = vmatprep.subr.mxu0 0.0
      %2470 = vmatpush1.xpose.msra.mxu0 0.0
      %2471 = vmatprep.subr.mxu0 0.0
      %2472 = vmatpush1.xpose.msra.mxu0 0.0
      %2473 = vmatprep.subr.mxu0 0.0
      %2474 = vmatpush1.xpose.msra.mxu0 0.0
      %2475 = vmatprep.subr.mxu0 0.0
      %2476 = vmatpush1.xpose.msra.mxu0 0.0
      %2477 = vmatprep.subr.mxu0 0.0
      %2478 = vmatpush1.xpose.msra.mxu0 0.0
      %2479 = vmatprep.subr.mxu0 0.0
      %2480 = vmatpush1.xpose.msra.mxu0 0.0
      %2481 = vmatprep.subr.mxu0 0.0
      %2482 = vmatpush1.xpose.msra.mxu0 0.0
      %2483 = vmatprep.subr.mxu0 0.0
      %2484 = vmatpush1.xpose.msra.mxu0 0.0
      %2485 = vmatprep.subr.mxu0 0.0
      %2486 = vmatpush1.xpose.msra.mxu0 0.0
      %2487 = vmatprep.subr.mxu0 0.0
      %2488 = vmatpush1.xpose.msra.mxu0 0.0
      %2489 = vmatprep.subr.mxu0 0.0
      %2490 = vmatpush1.xpose.msra.mxu0 0.0
      %2491 = vmatprep.subr.mxu0 0.0
      %2492 = vmatpush1.xpose.msra.mxu0 0.0
      %2493 = vmatprep.subr.mxu0 0.0
      %2494 = vmatpush1.xpose.msra.mxu0 0.0
      %2495 = vmatprep.subr.mxu0 0.0
      %2496 = vmatpush1.xpose.msra.mxu0 0.0
      %2497 = vmatprep.subr.mxu0 0.0
      %2498 = vmatpush1.xpose.msra.mxu0 0.0
      %2499 = vmatprep.subr.mxu0 0.0
      %2500 = vmatpush1.xpose.msra.mxu0 0.0
      %2501 = vmatprep.subr.mxu0 0.0
      %2502 = vmatpush1.xpose.msra.mxu0 0.0
      %2503 = vmatprep.subr.mxu0 0.0
      %2504 = vmatpush1.xpose.msra.mxu0 0.0
      %2505 = vmatprep.subr.mxu0 0.0
      %2506 = vmatpush1.xpose.msra.mxu0 0.0
      %2507 = vmatprep.subr.mxu0 0.0
      %2508 = vmatpush1.xpose.msra.mxu0 0.0
      %2509 = vmatprep.subr.mxu0 0.0
      %2510 = vmatpush1.xpose.msra.mxu0 0.0
      %2511 = vmatprep.subr.mxu0 0.0
      %2512 = vmatpush1.xpose.msra.mxu0 0.0
      %2513 = vmatprep.mubr.f32.mxu0 0.0
      %2514 = vmatmul.mubr.f32.gmra.mrb[0].mxu0 %v2444
      %v2515 = vpop.f32.mrb[0].mxu0
      %v2516 = vadd.f32 0.0, %v2515
      %v2517 = vpop.f32.mrb[0].mxu0
      %2518 = vdwg.mxu0
      %v2520 = vsel %vm314, %v247, 0
      %v2523 = vsel %vm314, %v279, 0
      %2525 = vmatprep.subr.mxu0 0.0
      %2526 = vmatpush1.xpose.msra.mxu0 %v2523
      %2527 = vmatprep.subr.mxu0 0.0
      %2528 = vmatpush1.xpose.msra.mxu0 0.0
      %2529 = vmatprep.subr.mxu0 0.0
      %2530 = vmatpush1.xpose.msra.mxu0 0.0
      %2531 = vmatprep.subr.mxu0 0.0
      %2532 = vmatpush1.xpose.msra.mxu0 0.0
      %2533 = vmatprep.subr.mxu0 0.0
      %2534 = vmatpush1.xpose.msra.mxu0 0.0
      %2535 = vmatprep.subr.mxu0 0.0
      %2536 = vmatpush1.xpose.msra.mxu0 0.0
      %2537 = vmatprep.subr.mxu0 0.0
      %2538 = vmatpush1.xpose.msra.mxu0 0.0
      %2539 = vmatprep.subr.mxu0 0.0
      %2540 = vmatpush1.xpose.msra.mxu0 0.0
      %2541 = vmatprep.subr.mxu0 0.0
      %2542 = vmatpush1.xpose.msra.mxu0 0.0
      %2543 = vmatprep.subr.mxu0 0.0
      %2544 = vmatpush1.xpose.msra.mxu0 0.0
      %2545 = vmatprep.subr.mxu0 0.0
      %2546 = vmatpush1.xpose.msra.mxu0 0.0
      %2547 = vmatprep.subr.mxu0 0.0
      %2548 = vmatpush1.xpose.msra.mxu0 0.0
      %2549 = vmatprep.subr.mxu0 0.0
      %2550 = vmatpush1.xpose.msra.mxu0 0.0
      %2551 = vmatprep.subr.mxu0 0.0
      %2552 = vmatpush1.xpose.msra.mxu0 0.0
      %2553 = vmatprep.subr.mxu0 0.0
      %2554 = vmatpush1.xpose.msra.mxu0 0.0
      %2555 = vmatprep.subr.mxu0 0.0
      %2556 = vmatpush1.xpose.msra.mxu0 0.0
      %2557 = vmatprep.subr.mxu0 0.0
      %2558 = vmatpush1.xpose.msra.mxu0 0.0
      %2559 = vmatprep.subr.mxu0 0.0
      %2560 = vmatpush1.xpose.msra.mxu0 0.0
      %2561 = vmatprep.subr.mxu0 0.0
      %2562 = vmatpush1.xpose.msra.mxu0 0.0
      %2563 = vmatprep.subr.mxu0 0.0
      %2564 = vmatpush1.xpose.msra.mxu0 0.0
      %2565 = vmatprep.subr.mxu0 0.0
      %2566 = vmatpush1.xpose.msra.mxu0 0.0
      %2567 = vmatprep.subr.mxu0 0.0
      %2568 = vmatpush1.xpose.msra.mxu0 0.0
      %2569 = vmatprep.subr.mxu0 0.0
      %2570 = vmatpush1.xpose.msra.mxu0 0.0
      %2571 = vmatprep.subr.mxu0 0.0
      %2572 = vmatpush1.xpose.msra.mxu0 0.0
      %2573 = vmatprep.subr.mxu0 0.0
      %2574 = vmatpush1.xpose.msra.mxu0 0.0
      %2575 = vmatprep.subr.mxu0 0.0
      %2576 = vmatpush1.xpose.msra.mxu0 0.0
      %2577 = vmatprep.subr.mxu0 0.0
      %2578 = vmatpush1.xpose.msra.mxu0 0.0
      %2579 = vmatprep.subr.mxu0 0.0
      %2580 = vmatpush1.xpose.msra.mxu0 0.0
      %2581 = vmatprep.subr.mxu0 0.0
      %2582 = vmatpush1.xpose.msra.mxu0 0.0
      %2583 = vmatprep.subr.mxu0 0.0
      %2584 = vmatpush1.xpose.msra.mxu0 0.0
      %2585 = vmatprep.subr.mxu0 0.0
      %2586 = vmatpush1.xpose.msra.mxu0 0.0
      %2587 = vmatprep.subr.mxu0 0.0
      %2588 = vmatpush1.xpose.msra.mxu0 0.0
      %2589 = vmatprep.mubr.f32.mxu0 0.0
      %2590 = vmatmul.mubr.f32.gmra.mrb[0].mxu0 %v2520
      %v2591 = vpop.f32.mrb[0].mxu0
      %v2592 = vadd.f32 0.0, %v2591
      %v2593 = vpop.f32.mrb[0].mxu0
      %2594 = vdwg.mxu0
      %v2596 = vsel %vm314, %v248, 0
      %v2599 = vsel %vm314, %v280, 0
      %2601 = vmatprep.subr.mxu0 0.0
      %2602 = vmatpush1.xpose.msra.mxu0 %v2599
      %2603 = vmatprep.subr.mxu0 0.0
      %2604 = vmatpush1.xpose.msra.mxu0 0.0
      %2605 = vmatprep.subr.mxu0 0.0
      %2606 = vmatpush1.xpose.msra.mxu0 0.0
      %2607 = vmatprep.subr.mxu0 0.0
      %2608 = vmatpush1.xpose.msra.mxu0 0.0
      %2609 = vmatprep.subr.mxu0 0.0
      %2610 = vmatpush1.xpose.msra.mxu0 0.0
      %2611 = vmatprep.subr.mxu0 0.0
      %2612 = vmatpush1.xpose.msra.mxu0 0.0
      %2613 = vmatprep.subr.mxu0 0.0
      %2614 = vmatpush1.xpose.msra.mxu0 0.0
      %2615 = vmatprep.subr.mxu0 0.0
      %2616 = vmatpush1.xpose.msra.mxu0 0.0
      %2617 = vmatprep.subr.mxu0 0.0
      %2618 = vmatpush1.xpose.msra.mxu0 0.0
      %2619 = vmatprep.subr.mxu0 0.0
      %2620 = vmatpush1.xpose.msra.mxu0 0.0
      %2621 = vmatprep.subr.mxu0 0.0
      %2622 = vmatpush1.xpose.msra.mxu0 0.0
      %2623 = vmatprep.subr.mxu0 0.0
      %2624 = vmatpush1.xpose.msra.mxu0 0.0
      %2625 = vmatprep.subr.mxu0 0.0
      %2626 = vmatpush1.xpose.msra.mxu0 0.0
      %2627 = vmatprep.subr.mxu0 0.0
      %2628 = vmatpush1.xpose.msra.mxu0 0.0
      %2629 = vmatprep.subr.mxu0 0.0
      %2630 = vmatpush1.xpose.msra.mxu0 0.0
      %2631 = vmatprep.subr.mxu0 0.0
      %2632 = vmatpush1.xpose.msra.mxu0 0.0
      %2633 = vmatprep.subr.mxu0 0.0
      %2634 = vmatpush1.xpose.msra.mxu0 0.0
      %2635 = vmatprep.subr.mxu0 0.0
      %2636 = vmatpush1.xpose.msra.mxu0 0.0
      %2637 = vmatprep.subr.mxu0 0.0
      %2638 = vmatpush1.xpose.msra.mxu0 0.0
      %2639 = vmatprep.subr.mxu0 0.0
      %2640 = vmatpush1.xpose.msra.mxu0 0.0
      %2641 = vmatprep.subr.mxu0 0.0
      %2642 = vmatpush1.xpose.msra.mxu0 0.0
      %2643 = vmatprep.subr.mxu0 0.0
      %2644 = vmatpush1.xpose.msra.mxu0 0.0
      %2645 = vmatprep.subr.mxu0 0.0
      %2646 = vmatpush1.xpose.msra.mxu0 0.0
      %2647 = vmatprep.subr.mxu0 0.0
      %2648 = vmatpush1.xpose.msra.mxu0 0.0
      %2649 = vmatprep.subr.mxu0 0.0
      %2650 = vmatpush1.xpose.msra.mxu0 0.0
      %2651 = vmatprep.subr.mxu0 0.0
      %2652 = vmatpush1.xpose.msra.mxu0 0.0
      %2653 = vmatprep.subr.mxu0 0.0
      %2654 = vmatpush1.xpose.msra.mxu0 0.0
      %2655 = vmatprep.subr.mxu0 0.0
      %2656 = vmatpush1.xpose.msra.mxu0 0.0
      %2657 = vmatprep.subr.mxu0 0.0
      %2658 = vmatpush1.xpose.msra.mxu0 0.0
      %2659 = vmatprep.subr.mxu0 0.0
      %2660 = vmatpush1.xpose.msra.mxu0 0.0
      %2661 = vmatprep.subr.mxu0 0.0
      %2662 = vmatpush1.xpose.msra.mxu0 0.0
      %2663 = vmatprep.subr.mxu0 0.0
      %2664 = vmatpush1.xpose.msra.mxu0 0.0
      %2665 = vmatprep.mubr.f32.mxu0 0.0
      %2666 = vmatmul.mubr.f32.gmra.mrb[0].mxu0 %v2596
      %v2667 = vpop.f32.mrb[0].mxu0
      %v2668 = vadd.f32 0.0, %v2667
      %v2669 = vpop.f32.mrb[0].mxu0
      %2670 = vdwg.mxu0
      %v2672 = vsel %vm314, %v249, 0
      %v2675 = vsel %vm314, %v281, 0
      %2677 = vmatprep.subr.mxu0 0.0
      %2678 = vmatpush1.xpose.msra.mxu0 %v2675
      %2679 = vmatprep.subr.mxu0 0.0
      %2680 = vmatpush1.xpose.msra.mxu0 0.0
      %2681 = vmatprep.subr.mxu0 0.0
      %2682 = vmatpush1.xpose.msra.mxu0 0.0
      %2683 = vmatprep.subr.mxu0 0.0
      %2684 = vmatpush1.xpose.msra.mxu0 0.0
      %2685 = vmatprep.subr.mxu0 0.0
      %2686 = vmatpush1.xpose.msra.mxu0 0.0
      %2687 = vmatprep.subr.mxu0 0.0
      %2688 = vmatpush1.xpose.msra.mxu0 0.0
      %2689 = vmatprep.subr.mxu0 0.0
      %2690 = vmatpush1.xpose.msra.mxu0 0.0
      %2691 = vmatprep.subr.mxu0 0.0
      %2692 = vmatpush1.xpose.msra.mxu0 0.0
      %2693 = vmatprep.subr.mxu0 0.0
      %2694 = vmatpush1.xpose.msra.mxu0 0.0
      %2695 = vmatprep.subr.mxu0 0.0
      %2696 = vmatpush1.xpose.msra.mxu0 0.0
      %2697 = vmatprep.subr.mxu0 0.0
      %2698 = vmatpush1.xpose.msra.mxu0 0.0
      %2699 = vmatprep.subr.mxu0 0.0
      %2700 = vmatpush1.xpose.msra.mxu0 0.0
      %2701 = vmatprep.subr.mxu0 0.0
      %2702 = vmatpush1.xpose.msra.mxu0 0.0
      %2703 = vmatprep.subr.mxu0 0.0
      %2704 = vmatpush1.xpose.msra.mxu0 0.0
      %2705 = vmatprep.subr.mxu0 0.0
      %2706 = vmatpush1.xpose.msra.mxu0 0.0
      %2707 = vmatprep.subr.mxu0 0.0
      %2708 = vmatpush1.xpose.msra.mxu0 0.0
      %2709 = vmatprep.subr.mxu0 0.0
      %2710 = vmatpush1.xpose.msra.mxu0 0.0
      %2711 = vmatprep.subr.mxu0 0.0
      %2712 = vmatpush1.xpose.msra.mxu0 0.0
      %2713 = vmatprep.subr.mxu0 0.0
      %2714 = vmatpush1.xpose.msra.mxu0 0.0
      %2715 = vmatprep.subr.mxu0 0.0
      %2716 = vmatpush1.xpose.msra.mxu0 0.0
      %2717 = vmatprep.subr.mxu0 0.0
      %2718 = vmatpush1.xpose.msra.mxu0 0.0
      %2719 = vmatprep.subr.mxu0 0.0
      %2720 = vmatpush1.xpose.msra.mxu0 0.0
      %2721 = vmatprep.subr.mxu0 0.0
      %2722 = vmatpush1.xpose.msra.mxu0 0.0
      %2723 = vmatprep.subr.mxu0 0.0
      %2724 = vmatpush1.xpose.msra.mxu0 0.0
      %2725 = vmatprep.subr.mxu0 0.0
      %2726 = vmatpush1.xpose.msra.mxu0 0.0
      %2727 = vmatprep.subr.mxu0 0.0
      %2728 = vmatpush1.xpose.msra.mxu0 0.0
      %2729 = vmatprep.subr.mxu0 0.0
      %2730 = vmatpush1.xpose.msra.mxu0 0.0
      %2731 = vmatprep.subr.mxu0 0.0
      %2732 = vmatpush1.xpose.msra.mxu0 0.0
      %2733 = vmatprep.subr.mxu0 0.0
      %2734 = vmatpush1.xpose.msra.mxu0 0.0
      %2735 = vmatprep.subr.mxu0 0.0
      %2736 = vmatpush1.xpose.msra.mxu0 0.0
      %2737 = vmatprep.subr.mxu0 0.0
      %2738 = vmatpush1.xpose.msra.mxu0 0.0
      %2739 = vmatprep.subr.mxu0 0.0
      %2740 = vmatpush1.xpose.msra.mxu0 0.0
      %2741 = vmatprep.mubr.f32.mxu0 0.0
      %2742 = vmatmul.mubr.f32.gmra.mrb[0].mxu0 %v2672
      %v2743 = vpop.f32.mrb[0].mxu0
      %v2744 = vadd.f32 0.0, %v2743
      %v2745 = vpop.f32.mrb[0].mxu0
      %2746 = vdwg.mxu0
      %vm2747 = vcmask 64512
      %v2748 = vsel %vm2747, %v388, -inf
      %2749 = vmax.xlane.f32.xlu0 %v2748
      %v2750 = vpop.xlane.xlu0 %2749
      %v2751 = vsel %vm2747, %v464, -inf
      %2752 = vmax.xlane.f32.xlu0 %v2751
      %v2753 = vpop.xlane.xlu0 %2752
      %v2754 = vsel %vm2747, %v540, -inf
      %2755 = vmax.xlane.f32.xlu0 %v2754
      %v2756 = vpop.xlane.xlu0 %2755
      %v2757 = vsel %vm2747, %v616, -inf
      %2758 = vmax.xlane.f32.xlu0 %v2757
      %v2759 = vpop.xlane.xlu0 %2758
      %v2760 = vsel %vm2747, %v692, -inf
      %2761 = vmax.xlane.f32.xlu0 %v2760
      %v2762 = vpop.xlane.xlu0 %2761
      %v2763 = vsel %vm2747, %v768, -inf
      %2764 = vmax.xlane.f32.xlu0 %v2763
      %v2765 = vpop.xlane.xlu0 %2764
      %v2766 = vsel %vm2747, %v844, -inf
      %2767 = vmax.xlane.f32.xlu0 %v2766
      %v2768 = vpop.xlane.xlu0 %2767
      %v2769 = vsel %vm2747, %v920, -inf
      %2770 = vmax.xlane.f32.xlu0 %v2769
      %v2771 = vpop.xlane.xlu0 %2770
      %v2772 = vsel %vm2747, %v996, -inf
      %2773 = vmax.xlane.f32.xlu0 %v2772
      %v2774 = vpop.xlane.xlu0 %2773
      %v2775 = vsel %vm2747, %v1072, -inf
      %2776 = vmax.xlane.f32.xlu0 %v2775
      %v2777 = vpop.xlane.xlu0 %2776
      %v2778 = vsel %vm2747, %v1148, -inf
      %2779 = vmax.xlane.f32.xlu0 %v2778
      %v2780 = vpop.xlane.xlu0 %2779
      %v2781 = vsel %vm2747, %v1224, -inf
      %2782 = vmax.xlane.f32.xlu0 %v2781
      %v2783 = vpop.xlane.xlu0 %2782
      %v2784 = vsel %vm2747, %v1300, -inf
      %2785 = vmax.xlane.f32.xlu0 %v2784
      %v2786 = vpop.xlane.xlu0 %2785
      %v2787 = vsel %vm2747, %v1376, -inf
      %2788 = vmax.xlane.f32.xlu0 %v2787
      %v2789 = vpop.xlane.xlu0 %2788
      %v2790 = vsel %vm2747, %v1452, -inf
      %2791 = vmax.xlane.f32.xlu0 %v2790
      %v2792 = vpop.xlane.xlu0 %2791
      %v2793 = vsel %vm2747, %v1528, -inf
      %2794 = vmax.xlane.f32.xlu0 %v2793
      %v2795 = vpop.xlane.xlu0 %2794
      %v2796 = vsel %vm2747, %v1604, -inf
      %2797 = vmax.xlane.f32.xlu0 %v2796
      %v2798 = vpop.xlane.xlu0 %2797
      %v2799 = vsel %vm2747, %v1680, -inf
      %2800 = vmax.xlane.f32.xlu0 %v2799
      %v2801 = vpop.xlane.xlu0 %2800
      %v2802 = vsel %vm2747, %v1756, -inf
      %2803 = vmax.xlane.f32.xlu0 %v2802
      %v2804 = vpop.xlane.xlu0 %2803
      %v2805 = vsel %vm2747, %v1832, -inf
      %2806 = vmax.xlane.f32.xlu0 %v2805
      %v2807 = vpop.xlane.xlu0 %2806
      %v2808 = vsel %vm2747, %v1908, -inf
      %2809 = vmax.xlane.f32.xlu0 %v2808
      %v2810 = vpop.xlane.xlu0 %2809
      %v2811 = vsel %vm2747, %v1984, -inf
      %2812 = vmax.xlane.f32.xlu0 %v2811
      %v2813 = vpop.xlane.xlu0 %2812
      %v2814 = vsel %vm2747, %v2060, -inf
      %2815 = vmax.xlane.f32.xlu0 %v2814
      %v2816 = vpop.xlane.xlu0 %2815
      %v2817 = vsel %vm2747, %v2136, -inf
      %2818 = vmax.xlane.f32.xlu0 %v2817
      %v2819 = vpop.xlane.xlu0 %2818
      %v2820 = vsel %vm2747, %v2212, -inf
      %2821 = vmax.xlane.f32.xlu0 %v2820
      %v2822 = vpop.xlane.xlu0 %2821
      %v2823 = vsel %vm2747, %v2288, -inf
      %2824 = vmax.xlane.f32.xlu0 %v2823
      %v2825 = vpop.xlane.xlu0 %2824
      %v2826 = vsel %vm2747, %v2364, -inf
      %2827 = vmax.xlane.f32.xlu0 %v2826
      %v2828 = vpop.xlane.xlu0 %2827
      %v2829 = vsel %vm2747, %v2440, -inf
      %2830 = vmax.xlane.f32.xlu0 %v2829
      %v2831 = vpop.xlane.xlu0 %2830
      %v2832 = vsel %vm2747, %v2516, -inf
      %2833 = vmax.xlane.f32.xlu0 %v2832
      %v2834 = vpop.xlane.xlu0 %2833
      %v2835 = vsel %vm2747, %v2592, -inf
      %2836 = vmax.xlane.f32.xlu0 %v2835
      %v2837 = vpop.xlane.xlu0 %2836
      %v2838 = vsel %vm2747, %v2668, -inf
      %2839 = vmax.xlane.f32.xlu0 %v2838
      %v2840 = vpop.xlane.xlu0 %2839
      %v2841 = vsel %vm2747, %v2744, -inf
      %2842 = vmax.xlane.f32.xlu0 %v2841
      %v2843 = vpop.xlane.xlu0 %2842
      %v2844 = vsub.f32 %v388, %v2750
      %v2845 = vsub.f32 %v464, %v2753
      %v2846 = vsub.f32 %v540, %v2756
      %v2847 = vsub.f32 %v616, %v2759
      %v2848 = vsub.f32 %v692, %v2762
      %v2849 = vsub.f32 %v768, %v2765
      %v2850 = vsub.f32 %v844, %v2768
      %v2851 = vsub.f32 %v920, %v2771
      %v2852 = vsub.f32 %v996, %v2774
      %v2853 = vsub.f32 %v1072, %v2777
      %v2854 = vsub.f32 %v1148, %v2780
      %v2855 = vsub.f32 %v1224, %v2783
      %v2856 = vsub.f32 %v1300, %v2786
      %v2857 = vsub.f32 %v1376, %v2789
      %v2858 = vsub.f32 %v1452, %v2792
      %v2859 = vsub.f32 %v1528, %v2795
      %v2860 = vsub.f32 %v1604, %v2798
      %v2861 = vsub.f32 %v1680, %v2801
      %v2862 = vsub.f32 %v1756, %v2804
      %v2863 = vsub.f32 %v1832, %v2807
      %v2864 = vsub.f32 %v1908, %v2810
      %v2865 = vsub.f32 %v1984, %v2813
      %v2866 = vsub.f32 %v2060, %v2816
      %v2867 = vsub.f32 %v2136, %v2819
      %v2868 = vsub.f32 %v2212, %v2822
      %v2869 = vsub.f32 %v2288, %v2825
      %v2870 = vsub.f32 %v2364, %v2828
      %v2871 = vsub.f32 %v2440, %v2831
      %v2872 = vsub.f32 %v2516, %v2834
      %v2873 = vsub.f32 %v2592, %v2837
      %v2874 = vsub.f32 %v2668, %v2840
      %v2875 = vsub.f32 %v2744, %v2843
      %v2876 = vmul.f32 %v2844, 0.17677669
      %v2877 = vmul.f32 %v2845, 0.17677669
      %v2878 = vmul.f32 %v2846, 0.17677669
      %v2879 = vmul.f32 %v2847, 0.17677669
      %v2880 = vmul.f32 %v2848, 0.17677669
      %v2881 = vmul.f32 %v2849, 0.17677669
      %v2882 = vmul.f32 %v2850, 0.17677669
      %v2883 = vmul.f32 %v2851, 0.17677669
      %v2884 = vmul.f32 %v2852, 0.17677669
      %v2885 = vmul.f32 %v2853, 0.17677669
      %v2886 = vmul.f32 %v2854, 0.17677669
      %v2887 = vmul.f32 %v2855, 0.17677669
      %v2888 = vmul.f32 %v2856, 0.17677669
      %v2889 = vmul.f32 %v2857, 0.17677669
      %v2890 = vmul.f32 %v2858, 0.17677669
      %v2891 = vmul.f32 %v2859, 0.17677669
      %v2892 = vmul.f32 %v2860, 0.17677669
      %v2893 = vmul.f32 %v2861, 0.17677669
      %v2894 = vmul.f32 %v2862, 0.17677669
      %v2895 = vmul.f32 %v2863, 0.17677669
      %v2896 = vmul.f32 %v2864, 0.17677669
      %v2897 = vmul.f32 %v2865, 0.17677669
      %v2898 = vmul.f32 %v2866, 0.17677669
      %v2899 = vmul.f32 %v2867, 0.17677669
      %v2900 = vmul.f32 %v2868, 0.17677669
      %v2901 = vmul.f32 %v2869, 0.17677669
      %v2902 = vmul.f32 %v2870, 0.17677669
      %v2903 = vmul.f32 %v2871, 0.17677669
      %v2904 = vmul.f32 %v2872, 0.17677669
      %v2905 = vmul.f32 %v2873, 0.17677669
      %v2906 = vmul.f32 %v2874, 0.17677669
      %v2907 = vmul.f32 %v2875, 0.17677669
      %v2908 = vmul.f32 %v2876, 1.442695
      %v2909 = vpow.pop %v2908
      %v2910 = vmul.f32 %v2877, 1.442695
      %v2911 = vpow.pop %v2910
      %v2912 = vmul.f32 %v2878, 1.442695
      %v2913 = vpow.pop %v2912
      %v2914 = vmul.f32 %v2879, 1.442695
      %v2915 = vpow.pop %v2914
      %v2916 = vmul.f32 %v2880, 1.442695
      %v2917 = vpow.pop %v2916
      %v2918 = vmul.f32 %v2881, 1.442695
      %v2919 = vpow.pop %v2918
      %v2920 = vmul.f32 %v2882, 1.442695
      %v2921 = vpow.pop %v2920
      %v2922 = vmul.f32 %v2883, 1.442695
      %v2923 = vpow.pop %v2922
      %v2924 = vmul.f32 %v2884, 1.442695
      %v2925 = vpow.pop %v2924
      %v2926 = vmul.f32 %v2885, 1.442695
      %v2927 = vpow.pop %v2926
      %v2928 = vmul.f32 %v2886, 1.442695
      %v2929 = vpow.pop %v2928
      %v2930 = vmul.f32 %v2887, 1.442695
      %v2931 = vpow.pop %v2930
      %v2932 = vmul.f32 %v2888, 1.442695
      %v2933 = vpow.pop %v2932
      %v2934 = vmul.f32 %v2889, 1.442695
      %v2935 = vpow.pop %v2934
      %v2936 = vmul.f32 %v2890, 1.442695
      %v2937 = vpow.pop %v2936
      %v2938 = vmul.f32 %v2891, 1.442695
      %v2939 = vpow.pop %v2938
      %v2940 = vmul.f32 %v2892, 1.442695
      %v2941 = vpow.pop %v2940
      %v2942 = vmul.f32 %v2893, 1.442695
      %v2943 = vpow.pop %v2942
      %v2944 = vmul.f32 %v2894, 1.442695
      %v2945 = vpow.pop %v2944
      %v2946 = vmul.f32 %v2895, 1.442695
      %v2947 = vpow.pop %v2946
      %v2948 = vmul.f32 %v2896, 1.442695
      %v2949 = vpow.pop %v2948
      %v2950 = vmul.f32 %v2897, 1.442695
      %v2951 = vpow.pop %v2950
      %v2952 = vmul.f32 %v2898, 1.442695
      %v2953 = vpow.pop %v2952
      %v2954 = vmul.f32 %v2899, 1.442695
      %v2955 = vpow.pop %v2954
      %v2956 = vmul.f32 %v2900, 1.442695
      %v2957 = vpow.pop %v2956
      %v2958 = vmul.f32 %v2901, 1.442695
      %v2959 = vpow.pop %v2958
      %v2960 = vmul.f32 %v2902, 1.442695
      %v2961 = vpow.pop %v2960
      %v2962 = vmul.f32 %v2903, 1.442695
      %v2963 = vpow.pop %v2962
      %v2964 = vmul.f32 %v2904, 1.442695
      %v2965 = vpow.pop %v2964
      %v2966 = vmul.f32 %v2905, 1.442695
      %v2967 = vpow.pop %v2966
      %v2968 = vmul.f32 %v2906, 1.442695
      %v2969 = vpow.pop %v2968
      %v2970 = vmul.f32 %v2907, 1.442695
      %v2971 = vpow.pop %v2970
      %v2972 = vsel %vm2747, %v2909, 0.0
      %2973 = vadd.xlane.f32.xlu0 %v2972
      %v2974 = vpop.xlane.xlu0 %2973
      %v2975 = vsel %vm2747, %v2911, 0.0
      %2976 = vadd.xlane.f32.xlu0 %v2975
      %v2977 = vpop.xlane.xlu0 %2976
      %v2978 = vsel %vm2747, %v2913, 0.0
      %2979 = vadd.xlane.f32.xlu0 %v2978
      %v2980 = vpop.xlane.xlu0 %2979
      %v2981 = vsel %vm2747, %v2915, 0.0
      %2982 = vadd.xlane.f32.xlu0 %v2981
      %v2983 = vpop.xlane.xlu0 %2982
      %v2984 = vsel %vm2747, %v2917, 0.0
      %2985 = vadd.xlane.f32.xlu0 %v2984
      %v2986 = vpop.xlane.xlu0 %2985
      %v2987 = vsel %vm2747, %v2919, 0.0
      %2988 = vadd.xlane.f32.xlu0 %v2987
      %v2989 = vpop.xlane.xlu0 %2988
      %v2990 = vsel %vm2747, %v2921, 0.0
      %2991 = vadd.xlane.f32.xlu0 %v2990
      %v2992 = vpop.xlane.xlu0 %2991
      %v2993 = vsel %vm2747, %v2923, 0.0
      %2994 = vadd.xlane.f32.xlu0 %v2993
      %v2995 = vpop.xlane.xlu0 %2994
      %v2996 = vsel %vm2747, %v2925, 0.0
      %2997 = vadd.xlane.f32.xlu0 %v2996
      %v2998 = vpop.xlane.xlu0 %2997
      %v2999 = vsel %vm2747, %v2927, 0.0
      %3000 = vadd.xlane.f32.xlu0 %v2999
      %v3001 = vpop.xlane.xlu0 %3000
      %v3002 = vsel %vm2747, %v2929, 0.0
      %3003 = vadd.xlane.f32.xlu0 %v3002
      %v3004 = vpop.xlane.xlu0 %3003
      %v3005 = vsel %vm2747, %v2931, 0.0
      %3006 = vadd.xlane.f32.xlu0 %v3005
      %v3007 = vpop.xlane.xlu0 %3006
      %v3008 = vsel %vm2747, %v2933, 0.0
      %3009 = vadd.xlane.f32.xlu0 %v3008
      %v3010 = vpop.xlane.xlu0 %3009
      %v3011 = vsel %vm2747, %v2935, 0.0
      %3012 = vadd.xlane.f32.xlu0 %v3011
      %v3013 = vpop.xlane.xlu0 %3012
      %v3014 = vsel %vm2747, %v2937, 0.0
      %3015 = vadd.xlane.f32.xlu0 %v3014
      %v3016 = vpop.xlane.xlu0 %3015
      %v3017 = vsel %vm2747, %v2939, 0.0
      %3018 = vadd.xlane.f32.xlu0 %v3017
      %v3019 = vpop.xlane.xlu0 %3018
      %v3020 = vsel %vm2747, %v2941, 0.0
      %3021 = vadd.xlane.f32.xlu0 %v3020
      %v3022 = vpop.xlane.xlu0 %3021
      %v3023 = vsel %vm2747, %v2943, 0.0
      %3024 = vadd.xlane.f32.xlu0 %v3023
      %v3025 = vpop.xlane.xlu0 %3024
      %v3026 = vsel %vm2747, %v2945, 0.0
      %3027 = vadd.xlane.f32.xlu0 %v3026
      %v3028 = vpop.xlane.xlu0 %3027
      %v3029 = vsel %vm2747, %v2947, 0.0
      %3030 = vadd.xlane.f32.xlu0 %v3029
      %v3031 = vpop.xlane.xlu0 %3030
      %v3032 = vsel %vm2747, %v2949, 0.0
      %3033 = vadd.xlane.f32.xlu0 %v3032
      %v3034 = vpop.xlane.xlu0 %3033
      %v3035 = vsel %vm2747, %v2951, 0.0
      %3036 = vadd.xlane.f32.xlu0 %v3035
      %v3037 = vpop.xlane.xlu0 %3036
      %v3038 = vsel %vm2747, %v2953, 0.0
      %3039 = vadd.xlane.f32.xlu0 %v3038
      %v3040 = vpop.xlane.xlu0 %3039
      %v3041 = vsel %vm2747, %v2955, 0.0
      %3042 = vadd.xlane.f32.xlu0 %v3041
      %v3043 = vpop.xlane.xlu0 %3042
      %v3044 = vsel %vm2747, %v2957, 0.0
      %3045 = vadd.xlane.f32.xlu0 %v3044
      %v3046 = vpop.xlane.xlu0 %3045
      %v3047 = vsel %vm2747, %v2959, 0.0
      %3048 = vadd.xlane.f32.xlu0 %v3047
      %v3049 = vpop.xlane.xlu0 %3048
      %v3050 = vsel %vm2747, %v2961, 0.0
      %3051 = vadd.xlane.f32.xlu0 %v3050
      %v3052 = vpop.xlane.xlu0 %3051
      %v3053 = vsel %vm2747, %v2963, 0.0
      %3054 = vadd.xlane.f32.xlu0 %v3053
      %v3055 = vpop.xlane.xlu0 %3054
      %v3056 = vsel %vm2747, %v2965, 0.0
      %3057 = vadd.xlane.f32.xlu0 %v3056
      %v3058 = vpop.xlane.xlu0 %3057
      %v3059 = vsel %vm2747, %v2967, 0.0
      %3060 = vadd.xlane.f32.xlu0 %v3059
      %v3061 = vpop.xlane.xlu0 %3060
      %v3062 = vsel %vm2747, %v2969, 0.0
      %3063 = vadd.xlane.f32.xlu0 %v3062
      %v3064 = vpop.xlane.xlu0 %3063
      %v3065 = vsel %vm2747, %v2971, 0.0
      %3066 = vadd.xlane.f32.xlu0 %v3065
      %v3067 = vpop.xlane.xlu0 %3066
      %v3068 = vrcp.pop %v2974
      %v3069 = vrcp.pop %v2977
      %v3070 = vrcp.pop %v2980
      %v3071 = vrcp.pop %v2983
      %v3072 = vrcp.pop %v2986
      %v3073 = vrcp.pop %v2989
      %v3074 = vrcp.pop %v2992
      %v3075 = vrcp.pop %v2995
      %v3076 = vrcp.pop %v2998
      %v3077 = vrcp.pop %v3001
      %v3078 = vrcp.pop %v3004
      %v3079 = vrcp.pop %v3007
      %v3080 = vrcp.pop %v3010
      %v3081 = vrcp.pop %v3013
      %v3082 = vrcp.pop %v3016
      %v3083 = vrcp.pop %v3019
      %v3084 = vrcp.pop %v3022
      %v3085 = vrcp.pop %v3025
      %v3086 = vrcp.pop %v3028
      %v3087 = vrcp.pop %v3031
      %v3088 = vrcp.pop %v3034
      %v3089 = vrcp.pop %v3037
      %v3090 = vrcp.pop %v3040
      %v3091 = vrcp.pop %v3043
      %v3092 = vrcp.pop %v3046
      %v3093 = vrcp.pop %v3049
      %v3094 = vrcp.pop %v3052
      %v3095 = vrcp.pop %v3055
      %v3096 = vrcp.pop %v3058
      %v3097 = vrcp.pop %v3061
      %v3098 = vrcp.pop %v3064
      %v3099 = vrcp.pop %v3067
      %v3100 = vmul.f32 %v2909, %v3068
      %v3101 = vmul.f32 %v2911, %v3069
      %v3102 = vmul.f32 %v2913, %v3070
      %v3103 = vmul.f32 %v2915, %v3071
      %v3104 = vmul.f32 %v2917, %v3072
      %v3105 = vmul.f32 %v2919, %v3073
      %v3106 = vmul.f32 %v2921, %v3074
      %v3107 = vmul.f32 %v2923, %v3075
      %v3108 = vmul.f32 %v2925, %v3076
      %v3109 = vmul.f32 %v2927, %v3077
      %v3110 = vmul.f32 %v2929, %v3078
      %v3111 = vmul.f32 %v2931, %v3079
      %v3112 = vmul.f32 %v2933, %v3080
      %v3113 = vmul.f32 %v2935, %v3081
      %v3114 = vmul.f32 %v2937, %v3082
      %v3115 = vmul.f32 %v2939, %v3083
      %v3116 = vmul.f32 %v2941, %v3084
      %v3117 = vmul.f32 %v2943, %v3085
      %v3118 = vmul.f32 %v2945, %v3086
      %v3119 = vmul.f32 %v2947, %v3087
      %v3120 = vmul.f32 %v2949, %v3088
      %v3121 = vmul.f32 %v2951, %v3089
      %v3122 = vmul.f32 %v2953, %v3090
      %v3123 = vmul.f32 %v2955, %v3091
      %v3124 = vmul.f32 %v2957, %v3092
      %v3125 = vmul.f32 %v2959, %v3093
      %v3126 = vmul.f32 %v2961, %v3094
      %v3127 = vmul.f32 %v2963, %v3095
      %v3128 = vmul.f32 %v2965, %v3096
      %v3129 = vmul.f32 %v2967, %v3097
      %v3130 = vmul.f32 %v2969, %v3098
      %v3131 = vmul.f32 %v2971, %v3099
      %v3133 = vsel %vm2747, %v3100, 0
      %3135 = vmatprep.subr.mxu0 0.0
      %3136 = vmatpush1.msra.mxu0 %v282
      %3137 = vmatprep.subr.mxu0 0.0
      %3138 = vmatpush1.msra.mxu0 0.0
      %3139 = vmatprep.subr.mxu0 0.0
      %3140 = vmatpush1.msra.mxu0 0.0
      %3141 = vmatprep.subr.mxu0 0.0
      %3142 = vmatpush1.msra.mxu0 0.0
      %3143 = vmatprep.subr.mxu0 0.0
      %3144 = vmatpush1.msra.mxu0 0.0
      %3145 = vmatprep.subr.mxu0 0.0
      %3146 = vmatpush1.msra.mxu0 0.0
      %3147 = vmatprep.subr.mxu0 0.0
      %3148 = vmatpush1.msra.mxu0 0.0
      %3149 = vmatprep.subr.mxu0 0.0
      %3150 = vmatpush1.msra.mxu0 0.0
      %3151 = vmatprep.subr.mxu0 0.0
      %3152 = vmatpush1.msra.mxu0 0.0
      %3153 = vmatprep.subr.mxu0 0.0
      %3154 = vmatpush1.msra.mxu0 0.0
      %3155 = vmatprep.subr.mxu0 0.0
      %3156 = vmatpush1.msra.mxu0 0.0
      %3157 = vmatprep.subr.mxu0 0.0
      %3158 = vmatpush1.msra.mxu0 0.0
      %3159 = vmatprep.subr.mxu0 0.0
      %3160 = vmatpush1.msra.mxu0 0.0
      %3161 = vmatprep.subr.mxu0 0.0
      %3162 = vmatpush1.msra.mxu0 0.0
      %3163 = vmatprep.subr.mxu0 0.0
      %3164 = vmatpush1.msra.mxu0 0.0
      %3165 = vmatprep.subr.mxu0 0.0
      %3166 = vmatpush1.msra.mxu0 0.0
      %3167 = vmatprep.subr.mxu0 0.0
      %3168 = vmatpush1.msra.mxu0 0.0
      %3169 = vmatprep.subr.mxu0 0.0
      %3170 = vmatpush1.msra.mxu0 0.0
      %3171 = vmatprep.subr.mxu0 0.0
      %3172 = vmatpush1.msra.mxu0 0.0
      %3173 = vmatprep.subr.mxu0 0.0
      %3174 = vmatpush1.msra.mxu0 0.0
      %3175 = vmatprep.subr.mxu0 0.0
      %3176 = vmatpush1.msra.mxu0 0.0
      %3177 = vmatprep.subr.mxu0 0.0
      %3178 = vmatpush1.msra.mxu0 0.0
      %3179 = vmatprep.subr.mxu0 0.0
      %3180 = vmatpush1.msra.mxu0 0.0
      %3181 = vmatprep.subr.mxu0 0.0
      %3182 = vmatpush1.msra.mxu0 0.0
      %3183 = vmatprep.subr.mxu0 0.0
      %3184 = vmatpush1.msra.mxu0 0.0
      %3185 = vmatprep.subr.mxu0 0.0
      %3186 = vmatpush1.msra.mxu0 0.0
      %3187 = vmatprep.subr.mxu0 0.0
      %3188 = vmatpush1.msra.mxu0 0.0
      %3189 = vmatprep.subr.mxu0 0.0
      %3190 = vmatpush1.msra.mxu0 0.0
      %3191 = vmatprep.subr.mxu0 0.0
      %3192 = vmatpush1.msra.mxu0 0.0
      %3193 = vmatprep.subr.mxu0 0.0
      %3194 = vmatpush1.msra.mxu0 0.0
      %3195 = vmatprep.subr.mxu0 0.0
      %3196 = vmatpush1.msra.mxu0 0.0
      %3197 = vmatprep.subr.mxu0 0.0
      %3198 = vmatpush1.msra.mxu0 0.0
      %3199 = vmatprep.mubr.f32.mxu0 0.0
      %3200 = vmatmul.mubr.f32.gmra.mrb[0].mxu0 %v3133
      %v3201 = vpop.f32.mrb[0].mxu0
      %v3202 = vadd.f32 0.0, %v3201
      %v3203 = vpop.f32.mrb[0].mxu0
      %3204 = vdwg.mxu0
      %v3206 = vsel %vm2747, %v3101, 0
      %3208 = vmatprep.subr.mxu0 0.0
      %3209 = vmatpush1.msra.mxu0 %v283
      %3210 = vmatprep.subr.mxu0 0.0
      %3211 = vmatpush1.msra.mxu0 0.0
      %3212 = vmatprep.subr.mxu0 0.0
      %3213 = vmatpush1.msra.mxu0 0.0
      %3214 = vmatprep.subr.mxu0 0.0
      %3215 = vmatpush1.msra.mxu0 0.0
      %3216 = vmatprep.subr.mxu0 0.0
      %3217 = vmatpush1.msra.mxu0 0.0
      %3218 = vmatprep.subr.mxu0 0.0
      %3219 = vmatpush1.msra.mxu0 0.0
      %3220 = vmatprep.subr.mxu0 0.0
      %3221 = vmatpush1.msra.mxu0 0.0
      %3222 = vmatprep.subr.mxu0 0.0
      %3223 = vmatpush1.msra.mxu0 0.0
      %3224 = vmatprep.subr.mxu0 0.0
      %3225 = vmatpush1.msra.mxu0 0.0
      %3226 = vmatprep.subr.mxu0 0.0
      %3227 = vmatpush1.msra.mxu0 0.0
      %3228 = vmatprep.subr.mxu0 0.0
      %3229 = vmatpush1.msra.mxu0 0.0
      %3230 = vmatprep.subr.mxu0 0.0
      %3231 = vmatpush1.msra.mxu0 0.0
      %3232 = vmatprep.subr.mxu0 0.0
      %3233 = vmatpush1.msra.mxu0 0.0
      %3234 = vmatprep.subr.mxu0 0.0
      %3235 = vmatpush1.msra.mxu0 0.0
      %3236 = vmatprep.subr.mxu0 0.0
      %3237 = vmatpush1.msra.mxu0 0.0
      %3238 = vmatprep.subr.mxu0 0.0
      %3239 = vmatpush1.msra.mxu0 0.0
      %3240 = vmatprep.subr.mxu0 0.0
      %3241 = vmatpush1.msra.mxu0 0.0
      %3242 = vmatprep.subr.mxu0 0.0
      %3243 = vmatpush1.msra.mxu0 0.0
      %3244 = vmatprep.subr.mxu0 0.0
      %3245 = vmatpush1.msra.mxu0 0.0
      %3246 = vmatprep.subr.mxu0 0.0
      %3247 = vmatpush1.msra.mxu0 0.0
      %3248 = vmatprep.subr.mxu0 0.0
      %3249 = vmatpush1.msra.mxu0 0.0
      %3250 = vmatprep.subr.mxu0 0.0
      %3251 = vmatpush1.msra.mxu0 0.0
      %3252 = vmatprep.subr.mxu0 0.0
      %3253 = vmatpush1.msra.mxu0 0.0
      %3254 = vmatprep.subr.mxu0 0.0
      %3255 = vmatpush1.msra.mxu0 0.0
      %3256 = vmatprep.subr.mxu0 0.0
      %3257 = vmatpush1.msra.mxu0 0.0
      %3258 = vmatprep.subr.mxu0 0.0
      %3259 = vmatpush1.msra.mxu0 0.0
      %3260 = vmatprep.subr.mxu0 0.0
      %3261 = vmatpush1.msra.mxu0 0.0
      %3262 = vmatprep.subr.mxu0 0.0
      %3263 = vmatpush1.msra.mxu0 0.0
      %3264 = vmatprep.subr.mxu0 0.0
      %3265 = vmatpush1.msra.mxu0 0.0
      %3266 = vmatprep.subr.mxu0 0.0
      %3267 = vmatpush1.msra.mxu0 0.0
      %3268 = vmatprep.subr.mxu0 0.0
      %3269 = vmatpush1.msra.mxu0 0.0
      %3270 = vmatprep.subr.mxu0 0.0
      %3271 = vmatpush1.msra.mxu0 0.0
      %3272 = vmatprep.mubr.f32.mxu0 0.0
      %3273 = vmatmul.mubr.f32.gmra.mrb[0].mxu0 %v3206
      %v3274 = vpop.f32.mrb[0].mxu0
      %v3275 = vadd.f32 0.0, %v3274
      %v3276 = vpop.f32.mrb[0].mxu0
      %3277 = vdwg.mxu0
      %v3279 = vsel %vm2747, %v3102, 0
      %3281 = vmatprep.subr.mxu0 0.0
      %3282 = vmatpush1.msra.mxu0 %v284
      %3283 = vmatprep.subr.mxu0 0.0
      %3284 = vmatpush1.msra.mxu0 0.0
      %3285 = vmatprep.subr.mxu0 0.0
      %3286 = vmatpush1.msra.mxu0 0.0
      %3287 = vmatprep.subr.mxu0 0.0
      %3288 = vmatpush1.msra.mxu0 0.0
      %3289 = vmatprep.subr.mxu0 0.0
      %3290 = vmatpush1.msra.mxu0 0.0
      %3291 = vmatprep.subr.mxu0 0.0
      %3292 = vmatpush1.msra.mxu0 0.0
      %3293 = vmatprep.subr.mxu0 0.0
      %3294 = vmatpush1.msra.mxu0 0.0
      %3295 = vmatprep.subr.mxu0 0.0
      %3296 = vmatpush1.msra.mxu0 0.0
      %3297 = vmatprep.subr.mxu0 0.0
      %3298 = vmatpush1.msra.mxu0 0.0
      %3299 = vmatprep.subr.mxu0 0.0
      %3300 = vmatpush1.msra.mxu0 0.0
      %3301 = vmatprep.subr.mxu0 0.0
      %3302 = vmatpush1.msra.mxu0 0.0
      %3303 = vmatprep.subr.mxu0 0.0
      %3304 = vmatpush1.msra.mxu0 0.0
      %3305 = vmatprep.subr.mxu0 0.0
      %3306 = vmatpush1.msra.mxu0 0.0
      %3307 = vmatprep.subr.mxu0 0.0
      %3308 = vmatpush1.msra.mxu0 0.0
      %3309 = vmatprep.subr.mxu0 0.0
      %3310 = vmatpush1.msra.mxu0 0.0
      %3311 = vmatprep.subr.mxu0 0.0
      %3312 = vmatpush1.msra.mxu0 0.0
      %3313 = vmatprep.subr.mxu0 0.0
      %3314 = vmatpush1.msra.mxu0 0.0
      %3315 = vmatprep.subr.mxu0 0.0
      %3316 = vmatpush1.msra.mxu0 0.0
      %3317 = vmatprep.subr.mxu0 0.0
      %3318 = vmatpush1.msra.mxu0 0.0
      %3319 = vmatprep.subr.mxu0 0.0
      %3320 = vmatpush1.msra.mxu0 0.0
      %3321 = vmatprep.subr.mxu0 0.0
      %3322 = vmatpush1.msra.mxu0 0.0
      %3323 = vmatprep.subr.mxu0 0.0
      %3324 = vmatpush1.msra.mxu0 0.0
      %3325 = vmatprep.subr.mxu0 0.0
      %3326 = vmatpush1.msra.mxu0 0.0
      %3327 = vmatprep.subr.mxu0 0.0
      %3328 = vmatpush1.msra.mxu0 0.0
      %3329 = vmatprep.subr.mxu0 0.0
      %3330 = vmatpush1.msra.mxu0 0.0
      %3331 = vmatprep.subr.mxu0 0.0
      %3332 = vmatpush1.msra.mxu0 0.0
      %3333 = vmatprep.subr.mxu0 0.0
      %3334 = vmatpush1.msra.mxu0 0.0
      %3335 = vmatprep.subr.mxu0 0.0
      %3336 = vmatpush1.msra.mxu0 0.0
      %3337 = vmatprep.subr.mxu0 0.0
      %3338 = vmatpush1.msra.mxu0 0.0
      %3339 = vmatprep.subr.mxu0 0.0
      %3340 = vmatpush1.msra.mxu0 0.0
      %3341 = vmatprep.subr.mxu0 0.0
      %3342 = vmatpush1.msra.mxu0 0.0
      %3343 = vmatprep.subr.mxu0 0.0
      %3344 = vmatpush1.msra.mxu0 0.0
      %3345 = vmatprep.mubr.f32.mxu0 0.0
      %3346 = vmatmul.mubr.f32.gmra.mrb[0].mxu0 %v3279
      %v3347 = vpop.f32.mrb[0].mxu0
      %v3348 = vadd.f32 0.0, %v3347
      %v3349 = vpop.f32.mrb[0].mxu0
      %3350 = vdwg.mxu0
      %v3352 = vsel %vm2747, %v3103, 0
      %3354 = vmatprep.subr.mxu0 0.0
      %3355 = vmatpush1.msra.mxu0 %v285
      %3356 = vmatprep.subr.mxu0 0.0
      %3357 = vmatpush1.msra.mxu0 0.0
      %3358 = vmatprep.subr.mxu0 0.0
      %3359 = vmatpush1.msra.mxu0 0.0
      %3360 = vmatprep.subr.mxu0 0.0
      %3361 = vmatpush1.msra.mxu0 0.0
      %3362 = vmatprep.subr.mxu0 0.0
      %3363 = vmatpush1.msra.mxu0 0.0
      %3364 = vmatprep.subr.mxu0 0.0
      %3365 = vmatpush1.msra.mxu0 0.0
      %3366 = vmatprep.subr.mxu0 0.0
      %3367 = vmatpush1.msra.mxu0 0.0
      %3368 = vmatprep.subr.mxu0 0.0
      %3369 = vmatpush1.msra.mxu0 0.0
      %3370 = vmatprep.subr.mxu0 0.0
      %3371 = vmatpush1.msra.mxu0 0.0
      %3372 = vmatprep.subr.mxu0 0.0
      %3373 = vmatpush1.msra.mxu0 0.0
      %3374 = vmatprep.subr.mxu0 0.0
      %3375 = vmatpush1.msra.mxu0 0.0
      %3376 = vmatprep.subr.mxu0 0.0
      %3377 = vmatpush1.msra.mxu0 0.0
      %3378 = vmatprep.subr.mxu0 0.0
      %3379 = vmatpush1.msra.mxu0 0.0
      %3380 = vmatprep.subr.mxu0 0.0
      %3381 = vmatpush1.msra.mxu0 0.0
      %3382 = vmatprep.subr.mxu0 0.0
      %3383 = vmatpush1.msra.mxu0 0.0
      %3384 = vmatprep.subr.mxu0 0.0
      %3385 = vmatpush1.msra.mxu0 0.0
      %3386 = vmatprep.subr.mxu0 0.0
      %3387 = vmatpush1.msra.mxu0 0.0
      %3388 = vmatprep.subr.mxu0 0.0
      %3389 = vmatpush1.msra.mxu0 0.0
      %3390 = vmatprep.subr.mxu0 0.0
      %3391 = vmatpush1.msra.mxu0 0.0
      %3392 = vmatprep.subr.mxu0 0.0
      %3393 = vmatpush1.msra.mxu0 0.0
      %3394 = vmatprep.subr.mxu0 0.0
      %3395 = vmatpush1.msra.mxu0 0.0
      %3396 = vmatprep.subr.mxu0 0.0
      %3397 = vmatpush1.msra.mxu0 0.0
      %3398 = vmatprep.subr.mxu0 0.0
      %3399 = vmatpush1.msra.mxu0 0.0
      %3400 = vmatprep.subr.mxu0 0.0
      %3401 = vmatpush1.msra.mxu0 0.0
      %3402 = vmatprep.subr.mxu0 0.0
      %3403 = vmatpush1.msra.mxu0 0.0
      %3404 = vmatprep.subr.mxu0 0.0
      %3405 = vmatpush1.msra.mxu0 0.0
      %3406 = vmatprep.subr.mxu0 0.0
      %3407 = vmatpush1.msra.mxu0 0.0
      %3408 = vmatprep.subr.mxu0 0.0
      %3409 = vmatpush1.msra.mxu0 0.0
      %3410 = vmatprep.subr.mxu0 0.0
      %3411 = vmatpush1.msra.mxu0 0.0
      %3412 = vmatprep.subr.mxu0 0.0
      %3413 = vmatpush1.msra.mxu0 0.0
      %3414 = vmatprep.subr.mxu0 0.0
      %3415 = vmatpush1.msra.mxu0 0.0
      %3416 = vmatprep.subr.mxu0 0.0
      %3417 = vmatpush1.msra.mxu0 0.0
      %3418 = vmatprep.mubr.f32.mxu0 0.0
      %3419 = vmatmul.mubr.f32.gmra.mrb[0].mxu0 %v3352
      %v3420 = vpop.f32.mrb[0].mxu0
      %v3421 = vadd.f32 0.0, %v3420
      %v3422 = vpop.f32.mrb[0].mxu0
      %3423 = vdwg.mxu0
      %v3425 = vsel %vm2747, %v3104, 0
      %3427 = vmatprep.subr.mxu0 0.0
      %3428 = vmatpush1.msra.mxu0 %v286
      %3429 = vmatprep.subr.mxu0 0.0
      %3430 = vmatpush1.msra.mxu0 0.0
      %3431 = vmatprep.subr.mxu0 0.0
      %3432 = vmatpush1.msra.mxu0 0.0
      %3433 = vmatprep.subr.mxu0 0.0
      %3434 = vmatpush1.msra.mxu0 0.0
      %3435 = vmatprep.subr.mxu0 0.0
      %3436 = vmatpush1.msra.mxu0 0.0
      %3437 = vmatprep.subr.mxu0 0.0
      %3438 = vmatpush1.msra.mxu0 0.0
      %3439 = vmatprep.subr.mxu0 0.0
      %3440 = vmatpush1.msra.mxu0 0.0
      %3441 = vmatprep.subr.mxu0 0.0
      %3442 = vmatpush1.msra.mxu0 0.0
      %3443 = vmatprep.subr.mxu0 0.0
      %3444 = vmatpush1.msra.mxu0 0.0
      %3445 = vmatprep.subr.mxu0 0.0
      %3446 = vmatpush1.msra.mxu0 0.0
      %3447 = vmatprep.subr.mxu0 0.0
      %3448 = vmatpush1.msra.mxu0 0.0
      %3449 = vmatprep.subr.mxu0 0.0
      %3450 = vmatpush1.msra.mxu0 0.0
      %3451 = vmatprep.subr.mxu0 0.0
      %3452 = vmatpush1.msra.mxu0 0.0
      %3453 = vmatprep.subr.mxu0 0.0
      %3454 = vmatpush1.msra.mxu0 0.0
      %3455 = vmatprep.subr.mxu0 0.0
      %3456 = vmatpush1.msra.mxu0 0.0
      %3457 = vmatprep.subr.mxu0 0.0
      %3458 = vmatpush1.msra.mxu0 0.0
      %3459 = vmatprep.subr.mxu0 0.0
      %3460 = vmatpush1.msra.mxu0 0.0
      %3461 = vmatprep.subr.mxu0 0.0
      %3462 = vmatpush1.msra.mxu0 0.0
      %3463 = vmatprep.subr.mxu0 0.0
      %3464 = vmatpush1.msra.mxu0 0.0
      %3465 = vmatprep.subr.mxu0 0.0
      %3466 = vmatpush1.msra.mxu0 0.0
      %3467 = vmatprep.subr.mxu0 0.0
      %3468 = vmatpush1.msra.mxu0 0.0
      %3469 = vmatprep.subr.mxu0 0.0
      %3470 = vmatpush1.msra.mxu0 0.0
      %3471 = vmatprep.subr.mxu0 0.0
      %3472 = vmatpush1.msra.mxu0 0.0
      %3473 = vmatprep.subr.mxu0 0.0
      %3474 = vmatpush1.msra.mxu0 0.0
      %3475 = vmatprep.subr.mxu0 0.0
      %3476 = vmatpush1.msra.mxu0 0.0
      %3477 = vmatprep.subr.mxu0 0.0
      %3478 = vmatpush1.msra.mxu0 0.0
      %3479 = vmatprep.subr.mxu0 0.0
      %3480 = vmatpush1.msra.mxu0 0.0
      %3481 = vmatprep.subr.mxu0 0.0
      %3482 = vmatpush1.msra.mxu0 0.0
      %3483 = vmatprep.subr.mxu0 0.0
      %3484 = vmatpush1.msra.mxu0 0.0
      %3485 = vmatprep.subr.mxu0 0.0
      %3486 = vmatpush1.msra.mxu0 0.0
      %3487 = vmatprep.subr.mxu0 0.0
      %3488 = vmatpush1.msra.mxu0 0.0
      %3489 = vmatprep.subr.mxu0 0.0
      %3490 = vmatpush1.msra.mxu0 0.0
      %3491 = vmatprep.mubr.f32.mxu0 0.0
      %3492 = vmatmul.mubr.f32.gmra.mrb[0].mxu0 %v3425
      %v3493 = vpop.f32.mrb[0].mxu0
      %v3494 = vadd.f32 0.0, %v3493
      %v3495 = vpop.f32.mrb[0].mxu0
      %3496 = vdwg.mxu0
      %v3498 = vsel %vm2747, %v3105, 0
      %3500 = vmatprep.subr.mxu0 0.0
      %3501 = vmatpush1.msra.mxu0 %v287
      %3502 = vmatprep.subr.mxu0 0.0
      %3503 = vmatpush1.msra.mxu0 0.0
      %3504 = vmatprep.subr.mxu0 0.0
      %3505 = vmatpush1.msra.mxu0 0.0
      %3506 = vmatprep.subr.mxu0 0.0
      %3507 = vmatpush1.msra.mxu0 0.0
      %3508 = vmatprep.subr.mxu0 0.0
      %3509 = vmatpush1.msra.mxu0 0.0
      %3510 = vmatprep.subr.mxu0 0.0
      %3511 = vmatpush1.msra.mxu0 0.0
      %3512 = vmatprep.subr.mxu0 0.0
      %3513 = vmatpush1.msra.mxu0 0.0
      %3514 = vmatprep.subr.mxu0 0.0
      %3515 = vmatpush1.msra.mxu0 0.0
      %3516 = vmatprep.subr.mxu0 0.0
      %3517 = vmatpush1.msra.mxu0 0.0
      %3518 = vmatprep.subr.mxu0 0.0
      %3519 = vmatpush1.msra.mxu0 0.0
      %3520 = vmatprep.subr.mxu0 0.0
      %3521 = vmatpush1.msra.mxu0 0.0
      %3522 = vmatprep.subr.mxu0 0.0
      %3523 = vmatpush1.msra.mxu0 0.0
      %3524 = vmatprep.subr.mxu0 0.0
      %3525 = vmatpush1.msra.mxu0 0.0
      %3526 = vmatprep.subr.mxu0 0.0
      %3527 = vmatpush1.msra.mxu0 0.0
      %3528 = vmatprep.subr.mxu0 0.0
      %3529 = vmatpush1.msra.mxu0 0.0
      %3530 = vmatprep.subr.mxu0 0.0
      %3531 = vmatpush1.msra.mxu0 0.0
      %3532 = vmatprep.subr.mxu0 0.0
      %3533 = vmatpush1.msra.mxu0 0.0
      %3534 = vmatprep.subr.mxu0 0.0
      %3535 = vmatpush1.msra.mxu0 0.0
      %3536 = vmatprep.subr.mxu0 0.0
      %3537 = vmatpush1.msra.mxu0 0.0
      %3538 = vmatprep.subr.mxu0 0.0
      %3539 = vmatpush1.msra.mxu0 0.0
      %3540 = vmatprep.subr.mxu0 0.0
      %3541 = vmatpush1.msra.mxu0 0.0
      %3542 = vmatprep.subr.mxu0 0.0
      %3543 = vmatpush1.msra.mxu0 0.0
      %3544 = vmatprep.subr.mxu0 0.0
      %3545 = vmatpush1.msra.mxu0 0.0
      %3546 = vmatprep.subr.mxu0 0.0
      %3547 = vmatpush1.msra.mxu0 0.0
      %3548 = vmatprep.subr.mxu0 0.0
      %3549 = vmatpush1.msra.mxu0 0.0
      %3550 = vmatprep.subr.mxu0 0.0
      %3551 = vmatpush1.msra.mxu0 0.0
      %3552 = vmatprep.subr.mxu0 0.0
      %3553 = vmatpush1.msra.mxu0 0.0
      %3554 = vmatprep.subr.mxu0 0.0
      %3555 = vmatpush1.msra.mxu0 0.0
      %3556 = vmatprep.subr.mxu0 0.0
      %3557 = vmatpush1.msra.mxu0 0.0
      %3558 = vmatprep.subr.mxu0 0.0
      %3559 = vmatpush1.msra.mxu0 0.0
      %3560 = vmatprep.subr.mxu0 0.0
      %3561 = vmatpush1.msra.mxu0 0.0
      %3562 = vmatprep.subr.mxu0 0.0
      %3563 = vmatpush1.msra.mxu0 0.0
      %3564 = vmatprep.mubr.f32.mxu0 0.0
      %3565 = vmatmul.mubr.f32.gmra.mrb[0].mxu0 %v3498
      %v3566 = vpop.f32.mrb[0].mxu0
      %v3567 = vadd.f32 0.0, %v3566
      %v3568 = vpop.f32.mrb[0].mxu0
      %3569 = vdwg.mxu0
      %v3571 = vsel %vm2747, %v3106, 0
      %3573 = vmatprep.subr.mxu0 0.0
      %3574 = vmatpush1.msra.mxu0 %v288
      %3575 = vmatprep.subr.mxu0 0.0
      %3576 = vmatpush1.msra.mxu0 0.0
      %3577 = vmatprep.subr.mxu0 0.0
      %3578 = vmatpush1.msra.mxu0 0.0
      %3579 = vmatprep.subr.mxu0 0.0
      %3580 = vmatpush1.msra.mxu0 0.0
      %3581 = vmatprep.subr.mxu0 0.0
      %3582 = vmatpush1.msra.mxu0 0.0
      %3583 = vmatprep.subr.mxu0 0.0
      %3584 = vmatpush1.msra.mxu0 0.0
      %3585 = vmatprep.subr.mxu0 0.0
      %3586 = vmatpush1.msra.mxu0 0.0
      %3587 = vmatprep.subr.mxu0 0.0
      %3588 = vmatpush1.msra.mxu0 0.0
      %3589 = vmatprep.subr.mxu0 0.0
      %3590 = vmatpush1.msra.mxu0 0.0
      %3591 = vmatprep.subr.mxu0 0.0
      %3592 = vmatpush1.msra.mxu0 0.0
      %3593 = vmatprep.subr.mxu0 0.0
      %3594 = vmatpush1.msra.mxu0 0.0
      %3595 = vmatprep.subr.mxu0 0.0
      %3596 = vmatpush1.msra.mxu0 0.0
      %3597 = vmatprep.subr.mxu0 0.0
      %3598 = vmatpush1.msra.mxu0 0.0
      %3599 = vmatprep.subr.mxu0 0.0
      %3600 = vmatpush1.msra.mxu0 0.0
      %3601 = vmatprep.subr.mxu0 0.0
      %3602 = vmatpush1.msra.mxu0 0.0
      %3603 = vmatprep.subr.mxu0 0.0
      %3604 = vmatpush1.msra.mxu0 0.0
      %3605 = vmatprep.subr.mxu0 0.0
      %3606 = vmatpush1.msra.mxu0 0.0
      %3607 = vmatprep.subr.mxu0 0.0
      %3608 = vmatpush1.msra.mxu0 0.0
      %3609 = vmatprep.subr.mxu0 0.0
      %3610 = vmatpush1.msra.mxu0 0.0
      %3611 = vmatprep.subr.mxu0 0.0
      %3612 = vmatpush1.msra.mxu0 0.0
      %3613 = vmatprep.subr.mxu0 0.0
      %3614 = vmatpush1.msra.mxu0 0.0
      %3615 = vmatprep.subr.mxu0 0.0
      %3616 = vmatpush1.msra.mxu0 0.0
      %3617 = vmatprep.subr.mxu0 0.0
      %3618 = vmatpush1.msra.mxu0 0.0
      %3619 = vmatprep.subr.mxu0 0.0
      %3620 = vmatpush1.msra.mxu0 0.0
      %3621 = vmatprep.subr.mxu0 0.0
      %3622 = vmatpush1.msra.mxu0 0.0
      %3623 = vmatprep.subr.mxu0 0.0
      %3624 = vmatpush1.msra.mxu0 0.0
      %3625 = vmatprep.subr.mxu0 0.0
      %3626 = vmatpush1.msra.mxu0 0.0
      %3627 = vmatprep.subr.mxu0 0.0
      %3628 = vmatpush1.msra.mxu0 0.0
      %3629 = vmatprep.subr.mxu0 0.0
      %3630 = vmatpush1.msra.mxu0 0.0
      %3631 = vmatprep.subr.mxu0 0.0
      %3632 = vmatpush1.msra.mxu0 0.0
      %3633 = vmatprep.subr.mxu0 0.0
      %3634 = vmatpush1.msra.mxu0 0.0
      %3635 = vmatprep.subr.mxu0 0.0
      %3636 = vmatpush1.msra.mxu0 0.0
      %3637 = vmatprep.mubr.f32.mxu0 0.0
      %3638 = vmatmul.mubr.f32.gmra.mrb[0].mxu0 %v3571
      %v3639 = vpop.f32.mrb[0].mxu0
      %v3640 = vadd.f32 0.0, %v3639
      %v3641 = vpop.f32.mrb[0].mxu0
      %3642 = vdwg.mxu0
      %v3644 = vsel %vm2747, %v3107, 0
      %3646 = vmatprep.subr.mxu0 0.0
      %3647 = vmatpush1.msra.mxu0 %v289
      %3648 = vmatprep.subr.mxu0 0.0
      %3649 = vmatpush1.msra.mxu0 0.0
      %3650 = vmatprep.subr.mxu0 0.0
      %3651 = vmatpush1.msra.mxu0 0.0
      %3652 = vmatprep.subr.mxu0 0.0
      %3653 = vmatpush1.msra.mxu0 0.0
      %3654 = vmatprep.subr.mxu0 0.0
      %3655 = vmatpush1.msra.mxu0 0.0
      %3656 = vmatprep.subr.mxu0 0.0
      %3657 = vmatpush1.msra.mxu0 0.0
      %3658 = vmatprep.subr.mxu0 0.0
      %3659 = vmatpush1.msra.mxu0 0.0
      %3660 = vmatprep.subr.mxu0 0.0
      %3661 = vmatpush1.msra.mxu0 0.0
      %3662 = vmatprep.subr.mxu0 0.0
      %3663 = vmatpush1.msra.mxu0 0.0
      %3664 = vmatprep.subr.mxu0 0.0
      %3665 = vmatpush1.msra.mxu0 0.0
      %3666 = vmatprep.subr.mxu0 0.0
      %3667 = vmatpush1.msra.mxu0 0.0
      %3668 = vmatprep.subr.mxu0 0.0
      %3669 = vmatpush1.msra.mxu0 0.0
      %3670 = vmatprep.subr.mxu0 0.0
      %3671 = vmatpush1.msra.mxu0 0.0
      %3672 = vmatprep.subr.mxu0 0.0
      %3673 = vmatpush1.msra.mxu0 0.0
      %3674 = vmatprep.subr.mxu0 0.0
      %3675 = vmatpush1.msra.mxu0 0.0
      %3676 = vmatprep.subr.mxu0 0.0
      %3677 = vmatpush1.msra.mxu0 0.0
      %3678 = vmatprep.subr.mxu0 0.0
      %3679 = vmatpush1.msra.mxu0 0.0
      %3680 = vmatprep.subr.mxu0 0.0
      %3681 = vmatpush1.msra.mxu0 0.0
      %3682 = vmatprep.subr.mxu0 0.0
      %3683 = vmatpush1.msra.mxu0 0.0
      %3684 = vmatprep.subr.mxu0 0.0
      %3685 = vmatpush1.msra.mxu0 0.0
      %3686 = vmatprep.subr.mxu0 0.0
      %3687 = vmatpush1.msra.mxu0 0.0
      %3688 = vmatprep.subr.mxu0 0.0
      %3689 = vmatpush1.msra.mxu0 0.0
      %3690 = vmatprep.subr.mxu0 0.0
      %3691 = vmatpush1.msra.mxu0 0.0
      %3692 = vmatprep.subr.mxu0 0.0
      %3693 = vmatpush1.msra.mxu0 0.0
      %3694 = vmatprep.subr.mxu0 0.0
      %3695 = vmatpush1.msra.mxu0 0.0
      %3696 = vmatprep.subr.mxu0 0.0
      %3697 = vmatpush1.msra.mxu0 0.0
      %3698 = vmatprep.subr.mxu0 0.0
      %3699 = vmatpush1.msra.mxu0 0.0
      %3700 = vmatprep.subr.mxu0 0.0
      %3701 = vmatpush1.msra.mxu0 0.0
      %3702 = vmatprep.subr.mxu0 0.0
      %3703 = vmatpush1.msra.mxu0 0.0
      %3704 = vmatprep.subr.mxu0 0.0
      %3705 = vmatpush1.msra.mxu0 0.0
      %3706 = vmatprep.subr.mxu0 0.0
      %3707 = vmatpush1.msra.mxu0 0.0
      %3708 = vmatprep.subr.mxu0 0.0
      %3709 = vmatpush1.msra.mxu0 0.0
      %3710 = vmatprep.mubr.f32.mxu0 0.0
      %3711 = vmatmul.mubr.f32.gmra.mrb[0].mxu0 %v3644
      %v3712 = vpop.f32.mrb[0].mxu0
      %v3713 = vadd.f32 0.0, %v3712
      %v3714 = vpop.f32.mrb[0].mxu0
      %3715 = vdwg.mxu0
      %v3717 = vsel %vm2747, %v3108, 0
      %3719 = vmatprep.subr.mxu0 0.0
      %3720 = vmatpush1.msra.mxu0 %v290
      %3721 = vmatprep.subr.mxu0 0.0
      %3722 = vmatpush1.msra.mxu0 0.0
      %3723 = vmatprep.subr.mxu0 0.0
      %3724 = vmatpush1.msra.mxu0 0.0
      %3725 = vmatprep.subr.mxu0 0.0
      %3726 = vmatpush1.msra.mxu0 0.0
      %3727 = vmatprep.subr.mxu0 0.0
      %3728 = vmatpush1.msra.mxu0 0.0
      %3729 = vmatprep.subr.mxu0 0.0
      %3730 = vmatpush1.msra.mxu0 0.0
      %3731 = vmatprep.subr.mxu0 0.0
      %3732 = vmatpush1.msra.mxu0 0.0
      %3733 = vmatprep.subr.mxu0 0.0
      %3734 = vmatpush1.msra.mxu0 0.0
      %3735 = vmatprep.subr.mxu0 0.0
      %3736 = vmatpush1.msra.mxu0 0.0
      %3737 = vmatprep.subr.mxu0 0.0
      %3738 = vmatpush1.msra.mxu0 0.0
      %3739 = vmatprep.subr.mxu0 0.0
      %3740 = vmatpush1.msra.mxu0 0.0
      %3741 = vmatprep.subr.mxu0 0.0
      %3742 = vmatpush1.msra.mxu0 0.0
      %3743 = vmatprep.subr.mxu0 0.0
      %3744 = vmatpush1.msra.mxu0 0.0
      %3745 = vmatprep.subr.mxu0 0.0
      %3746 = vmatpush1.msra.mxu0 0.0
      %3747 = vmatprep.subr.mxu0 0.0
      %3748 = vmatpush1.msra.mxu0 0.0
      %3749 = vmatprep.subr.mxu0 0.0
      %3750 = vmatpush1.msra.mxu0 0.0
      %3751 = vmatprep.subr.mxu0 0.0
      %3752 = vmatpush1.msra.mxu0 0.0
      %3753 = vmatprep.subr.mxu0 0.0
      %3754 = vmatpush1.msra.mxu0 0.0
      %3755 = vmatprep.subr.mxu0 0.0
      %3756 = vmatpush1.msra.mxu0 0.0
      %3757 = vmatprep.subr.mxu0 0.0
      %3758 = vmatpush1.msra.mxu0 0.0
      %3759 = vmatprep.subr.mxu0 0.0
      %3760 = vmatpush1.msra.mxu0 0.0
      %3761 = vmatprep.subr.mxu0 0.0
      %3762 = vmatpush1.msra.mxu0 0.0
      %3763 = vmatprep.subr.mxu0 0.0
      %3764 = vmatpush1.msra.mxu0 0.0
      %3765 = vmatprep.subr.mxu0 0.0
      %3766 = vmatpush1.msra.mxu0 0.0
      %3767 = vmatprep.subr.mxu0 0.0
      %3768 = vmatpush1.msra.mxu0 0.0
      %3769 = vmatprep.subr.mxu0 0.0
      %3770 = vmatpush1.msra.mxu0 0.0
      %3771 = vmatprep.subr.mxu0 0.0
      %3772 = vmatpush1.msra.mxu0 0.0
      %3773 = vmatprep.subr.mxu0 0.0
      %3774 = vmatpush1.msra.mxu0 0.0
      %3775 = vmatprep.subr.mxu0 0.0
      %3776 = vmatpush1.msra.mxu0 0.0
      %3777 = vmatprep.subr.mxu0 0.0
      %3778 = vmatpush1.msra.mxu0 0.0
      %3779 = vmatprep.subr.mxu0 0.0
      %3780 = vmatpush1.msra.mxu0 0.0
      %3781 = vmatprep.subr.mxu0 0.0
      %3782 = vmatpush1.msra.mxu0 0.0
      %3783 = vmatprep.mubr.f32.mxu0 0.0
      %3784 = vmatmul.mubr.f32.gmra.mrb[0].mxu0 %v3717
      %v3785 = vpop.f32.mrb[0].mxu0
      %v3786 = vadd.f32 0.0, %v3785
      %v3787 = vpop.f32.mrb[0].mxu0
      %3788 = vdwg.mxu0
      %v3790 = vsel %vm2747, %v3109, 0
      %3792 = vmatprep.subr.mxu0 0.0
      %3793 = vmatpush1.msra.mxu0 %v291
      %3794 = vmatprep.subr.mxu0 0.0
      %3795 = vmatpush1.msra.mxu0 0.0
      %3796 = vmatprep.subr.mxu0 0.0
      %3797 = vmatpush1.msra.mxu0 0.0
      %3798 = vmatprep.subr.mxu0 0.0
      %3799 = vmatpush1.msra.mxu0 0.0
      %3800 = vmatprep.subr.mxu0 0.0
      %3801 = vmatpush1.msra.mxu0 0.0
      %3802 = vmatprep.subr.mxu0 0.0
      %3803 = vmatpush1.msra.mxu0 0.0
      %3804 = vmatprep.subr.mxu0 0.0
      %3805 = vmatpush1.msra.mxu0 0.0
      %3806 = vmatprep.subr.mxu0 0.0
      %3807 = vmatpush1.msra.mxu0 0.0
      %3808 = vmatprep.subr.mxu0 0.0
      %3809 = vmatpush1.msra.mxu0 0.0
      %3810 = vmatprep.subr.mxu0 0.0
      %3811 = vmatpush1.msra.mxu0 0.0
      %3812 = vmatprep.subr.mxu0 0.0
      %3813 = vmatpush1.msra.mxu0 0.0
      %3814 = vmatprep.subr.mxu0 0.0
      %3815 = vmatpush1.msra.mxu0 0.0
      %3816 = vmatprep.subr.mxu0 0.0
      %3817 = vmatpush1.msra.mxu0 0.0
      %3818 = vmatprep.subr.mxu0 0.0
      %3819 = vmatpush1.msra.mxu0 0.0
      %3820 = vmatprep.subr.mxu0 0.0
      %3821 = vmatpush1.msra.mxu0 0.0
      %3822 = vmatprep.subr.mxu0 0.0
      %3823 = vmatpush1.msra.mxu0 0.0
      %3824 = vmatprep.subr.mxu0 0.0
      %3825 = vmatpush1.msra.mxu0 0.0
      %3826 = vmatprep.subr.mxu0 0.0
      %3827 = vmatpush1.msra.mxu0 0.0
      %3828 = vmatprep.subr.mxu0 0.0
      %3829 = vmatpush1.msra.mxu0 0.0
      %3830 = vmatprep.subr.mxu0 0.0
      %3831 = vmatpush1.msra.mxu0 0.0
      %3832 = vmatprep.subr.mxu0 0.0
      %3833 = vmatpush1.msra.mxu0 0.0
      %3834 = vmatprep.subr.mxu0 0.0
      %3835 = vmatpush1.msra.mxu0 0.0
      %3836 = vmatprep.subr.mxu0 0.0
      %3837 = vmatpush1.msra.mxu0 0.0
      %3838 = vmatprep.subr.mxu0 0.0
      %3839 = vmatpush1.msra.mxu0 0.0
      %3840 = vmatprep.subr.mxu0 0.0
      %3841 = vmatpush1.msra.mxu0 0.0
      %3842 = vmatprep.subr.mxu0 0.0
      %3843 = vmatpush1.msra.mxu0 0.0
      %3844 = vmatprep.subr.mxu0 0.0
      %3845 = vmatpush1.msra.mxu0 0.0
      %3846 = vmatprep.subr.mxu0 0.0
      %3847 = vmatpush1.msra.mxu0 0.0
      %3848 = vmatprep.subr.mxu0 0.0
      %3849 = vmatpush1.msra.mxu0 0.0
      %3850 = vmatprep.subr.mxu0 0.0
      %3851 = vmatpush1.msra.mxu0 0.0
      %3852 = vmatprep.subr.mxu0 0.0
      %3853 = vmatpush1.msra.mxu0 0.0
      %3854 = vmatprep.subr.mxu0 0.0
      %3855 = vmatpush1.msra.mxu0 0.0
      %3856 = vmatprep.mubr.f32.mxu0 0.0
      %3857 = vmatmul.mubr.f32.gmra.mrb[0].mxu0 %v3790
      %v3858 = vpop.f32.mrb[0].mxu0
      %v3859 = vadd.f32 0.0, %v3858
      %v3860 = vpop.f32.mrb[0].mxu0
      %3861 = vdwg.mxu0
      %v3863 = vsel %vm2747, %v3110, 0
      %3865 = vmatprep.subr.mxu0 0.0
      %3866 = vmatpush1.msra.mxu0 %v292
      %3867 = vmatprep.subr.mxu0 0.0
      %3868 = vmatpush1.msra.mxu0 0.0
      %3869 = vmatprep.subr.mxu0 0.0
      %3870 = vmatpush1.msra.mxu0 0.0
      %3871 = vmatprep.subr.mxu0 0.0
      %3872 = vmatpush1.msra.mxu0 0.0
      %3873 = vmatprep.subr.mxu0 0.0
      %3874 = vmatpush1.msra.mxu0 0.0
      %3875 = vmatprep.subr.mxu0 0.0
      %3876 = vmatpush1.msra.mxu0 0.0
      %3877 = vmatprep.subr.mxu0 0.0
      %3878 = vmatpush1.msra.mxu0 0.0
      %3879 = vmatprep.subr.mxu0 0.0
      %3880 = vmatpush1.msra.mxu0 0.0
      %3881 = vmatprep.subr.mxu0 0.0
      %3882 = vmatpush1.msra.mxu0 0.0
      %3883 = vmatprep.subr.mxu0 0.0
      %3884 = vmatpush1.msra.mxu0 0.0
      %3885 = vmatprep.subr.mxu0 0.0
      %3886 = vmatpush1.msra.mxu0 0.0
      %3887 = vmatprep.subr.mxu0 0.0
      %3888 = vmatpush1.msra.mxu0 0.0
      %3889 = vmatprep.subr.mxu0 0.0
      %3890 = vmatpush1.msra.mxu0 0.0
      %3891 = vmatprep.subr.mxu0 0.0
      %3892 = vmatpush1.msra.mxu0 0.0
      %3893 = vmatprep.subr.mxu0 0.0
      %3894 = vmatpush1.msra.mxu0 0.0
      %3895 = vmatprep.subr.mxu0 0.0
      %3896 = vmatpush1.msra.mxu0 0.0
      %3897 = vmatprep.subr.mxu0 0.0
      %3898 = vmatpush1.msra.mxu0 0.0
      %3899 = vmatprep.subr.mxu0 0.0
      %3900 = vmatpush1.msra.mxu0 0.0
      %3901 = vmatprep.subr.mxu0 0.0
      %3902 = vmatpush1.msra.mxu0 0.0
      %3903 = vmatprep.subr.mxu0 0.0
      %3904 = vmatpush1.msra.mxu0 0.0
      %3905 = vmatprep.subr.mxu0 0.0
      %3906 = vmatpush1.msra.mxu0 0.0
      %3907 = vmatprep.subr.mxu0 0.0
      %3908 = vmatpush1.msra.mxu0 0.0
      %3909 = vmatprep.subr.mxu0 0.0
      %3910 = vmatpush1.msra.mxu0 0.0
      %3911 = vmatprep.subr.mxu0 0.0
      %3912 = vmatpush1.msra.mxu0 0.0
      %3913 = vmatprep.subr.mxu0 0.0
      %3914 = vmatpush1.msra.mxu0 0.0
      %3915 = vmatprep.subr.mxu0 0.0
      %3916 = vmatpush1.msra.mxu0 0.0
      %3917 = vmatprep.subr.mxu0 0.0
      %3918 = vmatpush1.msra.mxu0 0.0
      %3919 = vmatprep.subr.mxu0 0.0
      %3920 = vmatpush1.msra.mxu0 0.0
      %3921 = vmatprep.subr.mxu0 0.0
      %3922 = vmatpush1.msra.mxu0 0.0
      %3923 = vmatprep.subr.mxu0 0.0
      %3924 = vmatpush1.msra.mxu0 0.0
      %3925 = vmatprep.subr.mxu0 0.0
      %3926 = vmatpush1.msra.mxu0 0.0
      %3927 = vmatprep.subr.mxu0 0.0
      %3928 = vmatpush1.msra.mxu0 0.0
      %3929 = vmatprep.mubr.f32.mxu0 0.0
      %3930 = vmatmul.mubr.f32.gmra.mrb[0].mxu0 %v3863
      %v3931 = vpop.f32.mrb[0].mxu0
      %v3932 = vadd.f32 0.0, %v3931
      %v3933 = vpop.f32.mrb[0].mxu0
      %3934 = vdwg.mxu0
      %v3936 = vsel %vm2747, %v3111, 0
      %3938 = vmatprep.subr.mxu0 0.0
      %3939 = vmatpush1.msra.mxu0 %v293
      %3940 = vmatprep.subr.mxu0 0.0
      %3941 = vmatpush1.msra.mxu0 0.0
      %3942 = vmatprep.subr.mxu0 0.0
      %3943 = vmatpush1.msra.mxu0 0.0
      %3944 = vmatprep.subr.mxu0 0.0
      %3945 = vmatpush1.msra.mxu0 0.0
      %3946 = vmatprep.subr.mxu0 0.0
      %3947 = vmatpush1.msra.mxu0 0.0
      %3948 = vmatprep.subr.mxu0 0.0
      %3949 = vmatpush1.msra.mxu0 0.0
      %3950 = vmatprep.subr.mxu0 0.0
      %3951 = vmatpush1.msra.mxu0 0.0
      %3952 = vmatprep.subr.mxu0 0.0
      %3953 = vmatpush1.msra.mxu0 0.0
      %3954 = vmatprep.subr.mxu0 0.0
      %3955 = vmatpush1.msra.mxu0 0.0
      %3956 = vmatprep.subr.mxu0 0.0
      %3957 = vmatpush1.msra.mxu0 0.0
      %3958 = vmatprep.subr.mxu0 0.0
      %3959 = vmatpush1.msra.mxu0 0.0
      %3960 = vmatprep.subr.mxu0 0.0
      %3961 = vmatpush1.msra.mxu0 0.0
      %3962 = vmatprep.subr.mxu0 0.0
      %3963 = vmatpush1.msra.mxu0 0.0
      %3964 = vmatprep.subr.mxu0 0.0
      %3965 = vmatpush1.msra.mxu0 0.0
      %3966 = vmatprep.subr.mxu0 0.0
      %3967 = vmatpush1.msra.mxu0 0.0
      %3968 = vmatprep.subr.mxu0 0.0
      %3969 = vmatpush1.msra.mxu0 0.0
      %3970 = vmatprep.subr.mxu0 0.0
      %3971 = vmatpush1.msra.mxu0 0.0
      %3972 = vmatprep.subr.mxu0 0.0
      %3973 = vmatpush1.msra.mxu0 0.0
      %3974 = vmatprep.subr.mxu0 0.0
      %3975 = vmatpush1.msra.mxu0 0.0
      %3976 = vmatprep.subr.mxu0 0.0
      %3977 = vmatpush1.msra.mxu0 0.0
      %3978 = vmatprep.subr.mxu0 0.0
      %3979 = vmatpush1.msra.mxu0 0.0
      %3980 = vmatprep.subr.mxu0 0.0
      %3981 = vmatpush1.msra.mxu0 0.0
      %3982 = vmatprep.subr.mxu0 0.0
      %3983 = vmatpush1.msra.mxu0 0.0
      %3984 = vmatprep.subr.mxu0 0.0
      %3985 = vmatpush1.msra.mxu0 0.0
      %3986 = vmatprep.subr.mxu0 0.0
      %3987 = vmatpush1.msra.mxu0 0.0
      %3988 = vmatprep.subr.mxu0 0.0
      %3989 = vmatpush1.msra.mxu0 0.0
      %3990 = vmatprep.subr.mxu0 0.0
      %3991 = vmatpush1.msra.mxu0 0.0
      %3992 = vmatprep.subr.mxu0 0.0
      %3993 = vmatpush1.msra.mxu0 0.0
      %3994 = vmatprep.subr.mxu0 0.0
      %3995 = vmatpush1.msra.mxu0 0.0
      %3996 = vmatprep.subr.mxu0 0.0
      %3997 = vmatpush1.msra.mxu0 0.0
      %3998 = vmatprep.subr.mxu0 0.0
      %3999 = vmatpush1.msra.mxu0 0.0
      %4000 = vmatprep.subr.mxu0 0.0
      %4001 = vmatpush1.msra.mxu0 0.0
      %4002 = vmatprep.mubr.f32.mxu0 0.0
      %4003 = vmatmul.mubr.f32.gmra.mrb[0].mxu0 %v3936
      %v4004 = vpop.f32.mrb[0].mxu0
      %v4005 = vadd.f32 0.0, %v4004
      %v4006 = vpop.f32.mrb[0].mxu0
      %4007 = vdwg.mxu0
      %v4009 = vsel %vm2747, %v3112, 0
      %4011 = vmatprep.subr.mxu0 0.0
      %4012 = vmatpush1.msra.mxu0 %v294
      %4013 = vmatprep.subr.mxu0 0.0
      %4014 = vmatpush1.msra.mxu0 0.0
      %4015 = vmatprep.subr.mxu0 0.0
      %4016 = vmatpush1.msra.mxu0 0.0
      %4017 = vmatprep.subr.mxu0 0.0
      %4018 = vmatpush1.msra.mxu0 0.0
      %4019 = vmatprep.subr.mxu0 0.0
      %4020 = vmatpush1.msra.mxu0 0.0
      %4021 = vmatprep.subr.mxu0 0.0
      %4022 = vmatpush1.msra.mxu0 0.0
      %4023 = vmatprep.subr.mxu0 0.0
      %4024 = vmatpush1.msra.mxu0 0.0
      %4025 = vmatprep.subr.mxu0 0.0
      %4026 = vmatpush1.msra.mxu0 0.0
      %4027 = vmatprep.subr.mxu0 0.0
      %4028 = vmatpush1.msra.mxu0 0.0
      %4029 = vmatprep.subr.mxu0 0.0
      %4030 = vmatpush1.msra.mxu0 0.0
      %4031 = vmatprep.subr.mxu0 0.0
      %4032 = vmatpush1.msra.mxu0 0.0
      %4033 = vmatprep.subr.mxu0 0.0
      %4034 = vmatpush1.msra.mxu0 0.0
      %4035 = vmatprep.subr.mxu0 0.0
      %4036 = vmatpush1.msra.mxu0 0.0
      %4037 = vmatprep.subr.mxu0 0.0
      %4038 = vmatpush1.msra.mxu0 0.0
      %4039 = vmatprep.subr.mxu0 0.0
      %4040 = vmatpush1.msra.mxu0 0.0
      %4041 = vmatprep.subr.mxu0 0.0
      %4042 = vmatpush1.msra.mxu0 0.0
      %4043 = vmatprep.subr.mxu0 0.0
      %4044 = vmatpush1.msra.mxu0 0.0
      %4045 = vmatprep.subr.mxu0 0.0
      %4046 = vmatpush1.msra.mxu0 0.0
      %4047 = vmatprep.subr.mxu0 0.0
      %4048 = vmatpush1.msra.mxu0 0.0
      %4049 = vmatprep.subr.mxu0 0.0
      %4050 = vmatpush1.msra.mxu0 0.0
      %4051 = vmatprep.subr.mxu0 0.0
      %4052 = vmatpush1.msra.mxu0 0.0
      %4053 = vmatprep.subr.mxu0 0.0
      %4054 = vmatpush1.msra.mxu0 0.0
      %4055 = vmatprep.subr.mxu0 0.0
      %4056 = vmatpush1.msra.mxu0 0.0
      %4057 = vmatprep.subr.mxu0 0.0
      %4058 = vmatpush1.msra.mxu0 0.0
      %4059 = vmatprep.subr.mxu0 0.0
      %4060 = vmatpush1.msra.mxu0 0.0
      %4061 = vmatprep.subr.mxu0 0.0
      %4062 = vmatpush1.msra.mxu0 0.0
      %4063 = vmatprep.subr.mxu0 0.0
      %4064 = vmatpush1.msra.mxu0 0.0
      %4065 = vmatprep.subr.mxu0 0.0
      %4066 = vmatpush1.msra.mxu0 0.0
      %4067 = vmatprep.subr.mxu0 0.0
      %4068 = vmatpush1.msra.mxu0 0.0
      %4069 = vmatprep.subr.mxu0 0.0
      %4070 = vmatpush1.msra.mxu0 0.0
      %4071 = vmatprep.subr.mxu0 0.0
      %4072 = vmatpush1.msra.mxu0 0.0
      %4073 = vmatprep.subr.mxu0 0.0
      %4074 = vmatpush1.msra.mxu0 0.0
      %4075 = vmatprep.mubr.f32.mxu0 0.0
      %4076 = vmatmul.mubr.f32.gmra.mrb[0].mxu0 %v4009
      %v4077 = vpop.f32.mrb[0].mxu0
      %v4078 = vadd.f32 0.0, %v4077
      %v4079 = vpop.f32.mrb[0].mxu0
      %4080 = vdwg.mxu0
      %v4082 = vsel %vm2747, %v3113, 0
      %4084 = vmatprep.subr.mxu0 0.0
      %4085 = vmatpush1.msra.mxu0 %v295
      %4086 = vmatprep.subr.mxu0 0.0
      %4087 = vmatpush1.msra.mxu0 0.0
      %4088 = vmatprep.subr.mxu0 0.0
      %4089 = vmatpush1.msra.mxu0 0.0
      %4090 = vmatprep.subr.mxu0 0.0
      %4091 = vmatpush1.msra.mxu0 0.0
      %4092 = vmatprep.subr.mxu0 0.0
      %4093 = vmatpush1.msra.mxu0 0.0
      %4094 = vmatprep.subr.mxu0 0.0
      %4095 = vmatpush1.msra.mxu0 0.0
      %4096 = vmatprep.subr.mxu0 0.0
      %4097 = vmatpush1.msra.mxu0 0.0
      %4098 = vmatprep.subr.mxu0 0.0
      %4099 = vmatpush1.msra.mxu0 0.0
      %4100 = vmatprep.subr.mxu0 0.0
      %4101 = vmatpush1.msra.mxu0 0.0
      %4102 = vmatprep.subr.mxu0 0.0
      %4103 = vmatpush1.msra.mxu0 0.0
      %4104 = vmatprep.subr.mxu0 0.0
      %4105 = vmatpush1.msra.mxu0 0.0
      %4106 = vmatprep.subr.mxu0 0.0
      %4107 = vmatpush1.msra.mxu0 0.0
      %4108 = vmatprep.subr.mxu0 0.0
      %4109 = vmatpush1.msra.mxu0 0.0
      %4110 = vmatprep.subr.mxu0 0.0
      %4111 = vmatpush1.msra.mxu0 0.0
      %4112 = vmatprep.subr.mxu0 0.0
      %4113 = vmatpush1.msra.mxu0 0.0
      %4114 = vmatprep.subr.mxu0 0.0
      %4115 = vmatpush1.msra.mxu0 0.0
      %4116 = vmatprep.subr.mxu0 0.0
      %4117 = vmatpush1.msra.mxu0 0.0
      %4118 = vmatprep.subr.mxu0 0.0
      %4119 = vmatpush1.msra.mxu0 0.0
      %4120 = vmatprep.subr.mxu0 0.0
      %4121 = vmatpush1.msra.mxu0 0.0
      %4122 = vmatprep.subr.mxu0 0.0
      %4123 = vmatpush1.msra.mxu0 0.0
      %4124 = vmatprep.subr.mxu0 0.0
      %4125 = vmatpush1.msra.mxu0 0.0
      %4126 = vmatprep.subr.mxu0 0.0
      %4127 = vmatpush1.msra.mxu0 0.0
      %4128 = vmatprep.subr.mxu0 0.0
      %4129 = vmatpush1.msra.mxu0 0.0
      %4130 = vmatprep.subr.mxu0 0.0
      %4131 = vmatpush1.msra.mxu0 0.0
      %4132 = vmatprep.subr.mxu0 0.0
      %4133 = vmatpush1.msra.mxu0 0.0
      %4134 = vmatprep.subr.mxu0 0.0
      %4135 = vmatpush1.msra.mxu0 0.0
      %4136 = vmatprep.subr.mxu0 0.0
      %4137 = vmatpush1.msra.mxu0 0.0
      %4138 = vmatprep.subr.mxu0 0.0
      %4139 = vmatpush1.msra.mxu0 0.0
      %4140 = vmatprep.subr.mxu0 0.0
      %4141 = vmatpush1.msra.mxu0 0.0
      %4142 = vmatprep.subr.mxu0 0.0
      %4143 = vmatpush1.msra.mxu0 0.0
      %4144 = vmatprep.subr.mxu0 0.0
      %4145 = vmatpush1.msra.mxu0 0.0
      %4146 = vmatprep.subr.mxu0 0.0
      %4147 = vmatpush1.msra.mxu0 0.0
      %4148 = vmatprep.mubr.f32.mxu0 0.0
      %4149 = vmatmul.mubr.f32.gmra.mrb[0].mxu0 %v4082
      %v4150 = vpop.f32.mrb[0].mxu0
      %v4151 = vadd.f32 0.0, %v4150
      %v4152 = vpop.f32.mrb[0].mxu0
      %4153 = vdwg.mxu0
      %v4155 = vsel %vm2747, %v3114, 0
      %4157 = vmatprep.subr.mxu0 0.0
      %4158 = vmatpush1.msra.mxu0 %v296
      %4159 = vmatprep.subr.mxu0 0.0
      %4160 = vmatpush1.msra.mxu0 0.0
      %4161 = vmatprep.subr.mxu0 0.0
      %4162 = vmatpush1.msra.mxu0 0.0
      %4163 = vmatprep.subr.mxu0 0.0
      %4164 = vmatpush1.msra.mxu0 0.0
      %4165 = vmatprep.subr.mxu0 0.0
      %4166 = vmatpush1.msra.mxu0 0.0
      %4167 = vmatprep.subr.mxu0 0.0
      %4168 = vmatpush1.msra.mxu0 0.0
      %4169 = vmatprep.subr.mxu0 0.0
      %4170 = vmatpush1.msra.mxu0 0.0
      %4171 = vmatprep.subr.mxu0 0.0
      %4172 = vmatpush1.msra.mxu0 0.0
      %4173 = vmatprep.subr.mxu0 0.0
      %4174 = vmatpush1.msra.mxu0 0.0
      %4175 = vmatprep.subr.mxu0 0.0
      %4176 = vmatpush1.msra.mxu0 0.0
      %4177 = vmatprep.subr.mxu0 0.0
      %4178 = vmatpush1.msra.mxu0 0.0
      %4179 = vmatprep.subr.mxu0 0.0
      %4180 = vmatpush1.msra.mxu0 0.0
      %4181 = vmatprep.subr.mxu0 0.0
      %4182 = vmatpush1.msra.mxu0 0.0
      %4183 = vmatprep.subr.mxu0 0.0
      %4184 = vmatpush1.msra.mxu0 0.0
      %4185 = vmatprep.subr.mxu0 0.0
      %4186 = vmatpush1.msra.mxu0 0.0
      %4187 = vmatprep.subr.mxu0 0.0
      %4188 = vmatpush1.msra.mxu0 0.0
      %4189 = vmatprep.subr.mxu0 0.0
      %4190 = vmatpush1.msra.mxu0 0.0
      %4191 = vmatprep.subr.mxu0 0.0
      %4192 = vmatpush1.msra.mxu0 0.0
      %4193 = vmatprep.subr.mxu0 0.0
      %4194 = vmatpush1.msra.mxu0 0.0
      %4195 = vmatprep.subr.mxu0 0.0
      %4196 = vmatpush1.msra.mxu0 0.0
      %4197 = vmatprep.subr.mxu0 0.0
      %4198 = vmatpush1.msra.mxu0 0.0
      %4199 = vmatprep.subr.mxu0 0.0
      %4200 = vmatpush1.msra.mxu0 0.0
      %4201 = vmatprep.subr.mxu0 0.0
      %4202 = vmatpush1.msra.mxu0 0.0
      %4203 = vmatprep.subr.mxu0 0.0
      %4204 = vmatpush1.msra.mxu0 0.0
      %4205 = vmatprep.subr.mxu0 0.0
      %4206 = vmatpush1.msra.mxu0 0.0
      %4207 = vmatprep.subr.mxu0 0.0
      %4208 = vmatpush1.msra.mxu0 0.0
      %4209 = vmatprep.subr.mxu0 0.0
      %4210 = vmatpush1.msra.mxu0 0.0
      %4211 = vmatprep.subr.mxu0 0.0
      %4212 = vmatpush1.msra.mxu0 0.0
      %4213 = vmatprep.subr.mxu0 0.0
      %4214 = vmatpush1.msra.mxu0 0.0
      %4215 = vmatprep.subr.mxu0 0.0
      %4216 = vmatpush1.msra.mxu0 0.0
      %4217 = vmatprep.subr.mxu0 0.0
      %4218 = vmatpush1.msra.mxu0 0.0
      %4219 = vmatprep.subr.mxu0 0.0
      %4220 = vmatpush1.msra.mxu0 0.0
      %4221 = vmatprep.mubr.f32.mxu0 0.0
      %4222 = vmatmul.mubr.f32.gmra.mrb[0].mxu0 %v4155
      %v4223 = vpop.f32.mrb[0].mxu0
      %v4224 = vadd.f32 0.0, %v4223
      %v4225 = vpop.f32.mrb[0].mxu0
      %4226 = vdwg.mxu0
      %v4228 = vsel %vm2747, %v3115, 0
      %4230 = vmatprep.subr.mxu0 0.0
      %4231 = vmatpush1.msra.mxu0 %v297
      %4232 = vmatprep.subr.mxu0 0.0
      %4233 = vmatpush1.msra.mxu0 0.0
      %4234 = vmatprep.subr.mxu0 0.0
      %4235 = vmatpush1.msra.mxu0 0.0
      %4236 = vmatprep.subr.mxu0 0.0
      %4237 = vmatpush1.msra.mxu0 0.0
      %4238 = vmatprep.subr.mxu0 0.0
      %4239 = vmatpush1.msra.mxu0 0.0
      %4240 = vmatprep.subr.mxu0 0.0
      %4241 = vmatpush1.msra.mxu0 0.0
      %4242 = vmatprep.subr.mxu0 0.0
      %4243 = vmatpush1.msra.mxu0 0.0
      %4244 = vmatprep.subr.mxu0 0.0
      %4245 = vmatpush1.msra.mxu0 0.0
      %4246 = vmatprep.subr.mxu0 0.0
      %4247 = vmatpush1.msra.mxu0 0.0
      %4248 = vmatprep.subr.mxu0 0.0
      %4249 = vmatpush1.msra.mxu0 0.0
      %4250 = vmatprep.subr.mxu0 0.0
      %4251 = vmatpush1.msra.mxu0 0.0
      %4252 = vmatprep.subr.mxu0 0.0
      %4253 = vmatpush1.msra.mxu0 0.0
      %4254 = vmatprep.subr.mxu0 0.0
      %4255 = vmatpush1.msra.mxu0 0.0
      %4256 = vmatprep.subr.mxu0 0.0
      %4257 = vmatpush1.msra.mxu0 0.0
      %4258 = vmatprep.subr.mxu0 0.0
      %4259 = vmatpush1.msra.mxu0 0.0
      %4260 = vmatprep.subr.mxu0 0.0
      %4261 = vmatpush1.msra.mxu0 0.0
      %4262 = vmatprep.subr.mxu0 0.0
      %4263 = vmatpush1.msra.mxu0 0.0
      %4264 = vmatprep.subr.mxu0 0.0
      %4265 = vmatpush1.msra.mxu0 0.0
      %4266 = vmatprep.subr.mxu0 0.0
      %4267 = vmatpush1.msra.mxu0 0.0
      %4268 = vmatprep.subr.mxu0 0.0
      %4269 = vmatpush1.msra.mxu0 0.0
      %4270 = vmatprep.subr.mxu0 0.0
      %4271 = vmatpush1.msra.mxu0 0.0
      %4272 = vmatprep.subr.mxu0 0.0
      %4273 = vmatpush1.msra.mxu0 0.0
      %4274 = vmatprep.subr.mxu0 0.0
      %4275 = vmatpush1.msra.mxu0 0.0
      %4276 = vmatprep.subr.mxu0 0.0
      %4277 = vmatpush1.msra.mxu0 0.0
      %4278 = vmatprep.subr.mxu0 0.0
      %4279 = vmatpush1.msra.mxu0 0.0
      %4280 = vmatprep.subr.mxu0 0.0
      %4281 = vmatpush1.msra.mxu0 0.0
      %4282 = vmatprep.subr.mxu0 0.0
      %4283 = vmatpush1.msra.mxu0 0.0
      %4284 = vmatprep.subr.mxu0 0.0
      %4285 = vmatpush1.msra.mxu0 0.0
      %4286 = vmatprep.subr.mxu0 0.0
      %4287 = vmatpush1.msra.mxu0 0.0
      %4288 = vmatprep.subr.mxu0 0.0
      %4289 = vmatpush1.msra.mxu0 0.0
      %4290 = vmatprep.subr.mxu0 0.0
      %4291 = vmatpush1.msra.mxu0 0.0
      %4292 = vmatprep.subr.mxu0 0.0
      %4293 = vmatpush1.msra.mxu0 0.0
      %4294 = vmatprep.mubr.f32.mxu0 0.0
      %4295 = vmatmul.mubr.f32.gmra.mrb[0].mxu0 %v4228
      %v4296 = vpop.f32.mrb[0].mxu0
      %v4297 = vadd.f32 0.0, %v4296
      %v4298 = vpop.f32.mrb[0].mxu0
      %4299 = vdwg.mxu0
      %v4301 = vsel %vm2747, %v3116, 0
      %4303 = vmatprep.subr.mxu0 0.0
      %4304 = vmatpush1.msra.mxu0 %v298
      %4305 = vmatprep.subr.mxu0 0.0
      %4306 = vmatpush1.msra.mxu0 0.0
      %4307 = vmatprep.subr.mxu0 0.0
      %4308 = vmatpush1.msra.mxu0 0.0
      %4309 = vmatprep.subr.mxu0 0.0
      %4310 = vmatpush1.msra.mxu0 0.0
      %4311 = vmatprep.subr.mxu0 0.0
      %4312 = vmatpush1.msra.mxu0 0.0
      %4313 = vmatprep.subr.mxu0 0.0
      %4314 = vmatpush1.msra.mxu0 0.0
      %4315 = vmatprep.subr.mxu0 0.0
      %4316 = vmatpush1.msra.mxu0 0.0
      %4317 = vmatprep.subr.mxu0 0.0
      %4318 = vmatpush1.msra.mxu0 0.0
      %4319 = vmatprep.subr.mxu0 0.0
      %4320 = vmatpush1.msra.mxu0 0.0
      %4321 = vmatprep.subr.mxu0 0.0
      %4322 = vmatpush1.msra.mxu0 0.0
      %4323 = vmatprep.subr.mxu0 0.0
      %4324 = vmatpush1.msra.mxu0 0.0
      %4325 = vmatprep.subr.mxu0 0.0
      %4326 = vmatpush1.msra.mxu0 0.0
      %4327 = vmatprep.subr.mxu0 0.0
      %4328 = vmatpush1.msra.mxu0 0.0
      %4329 = vmatprep.subr.mxu0 0.0
      %4330 = vmatpush1.msra.mxu0 0.0
      %4331 = vmatprep.subr.mxu0 0.0
      %4332 = vmatpush1.msra.mxu0 0.0
      %4333 = vmatprep.subr.mxu0 0.0
      %4334 = vmatpush1.msra.mxu0 0.0
      %4335 = vmatprep.subr.mxu0 0.0
      %4336 = vmatpush1.msra.mxu0 0.0
      %4337 = vmatprep.subr.mxu0 0.0
      %4338 = vmatpush1.msra.mxu0 0.0
      %4339 = vmatprep.subr.mxu0 0.0
      %4340 = vmatpush1.msra.mxu0 0.0
      %4341 = vmatprep.subr.mxu0 0.0
      %4342 = vmatpush1.msra.mxu0 0.0
      %4343 = vmatprep.subr.mxu0 0.0
      %4344 = vmatpush1.msra.mxu0 0.0
      %4345 = vmatprep.subr.mxu0 0.0
      %4346 = vmatpush1.msra.mxu0 0.0
      %4347 = vmatprep.subr.mxu0 0.0
      %4348 = vmatpush1.msra.mxu0 0.0
      %4349 = vmatprep.subr.mxu0 0.0
      %4350 = vmatpush1.msra.mxu0 0.0
      %4351 = vmatprep.subr.mxu0 0.0
      %4352 = vmatpush1.msra.mxu0 0.0
      %4353 = vmatprep.subr.mxu0 0.0
      %4354 = vmatpush1.msra.mxu0 0.0
      %4355 = vmatprep.subr.mxu0 0.0
      %4356 = vmatpush1.msra.mxu0 0.0
      %4357 = vmatprep.subr.mxu0 0.0
      %4358 = vmatpush1.msra.mxu0 0.0
      %4359 = vmatprep.subr.mxu0 0.0
      %4360 = vmatpush1.msra.mxu0 0.0
      %4361 = vmatprep.subr.mxu0 0.0
      %4362 = vmatpush1.msra.mxu0 0.0
      %4363 = vmatprep.subr.mxu0 0.0
      %4364 = vmatpush1.msra.mxu0 0.0
      %4365 = vmatprep.subr.mxu0 0.0
      %4366 = vmatpush1.msra.mxu0 0.0
      %4367 = vmatprep.mubr.f32.mxu0 0.0
      %4368 = vmatmul.mubr.f32.gmra.mrb[0].mxu0 %v4301
      %v4369 = vpop.f32.mrb[0].mxu0
      %v4370 = vadd.f32 0.0, %v4369
      %v4371 = vpop.f32.mrb[0].mxu0
      %4372 = vdwg.mxu0
      %v4374 = vsel %vm2747, %v3117, 0
      %4376 = vmatprep.subr.mxu0 0.0
      %4377 = vmatpush1.msra.mxu0 %v299
      %4378 = vmatprep.subr.mxu0 0.0
      %4379 = vmatpush1.msra.mxu0 0.0
      %4380 = vmatprep.subr.mxu0 0.0
      %4381 = vmatpush1.msra.mxu0 0.0
      %4382 = vmatprep.subr.mxu0 0.0
      %4383 = vmatpush1.msra.mxu0 0.0
      %4384 = vmatprep.subr.mxu0 0.0
      %4385 = vmatpush1.msra.mxu0 0.0
      %4386 = vmatprep.subr.mxu0 0.0
      %4387 = vmatpush1.msra.mxu0 0.0
      %4388 = vmatprep.subr.mxu0 0.0
      %4389 = vmatpush1.msra.mxu0 0.0
      %4390 = vmatprep.subr.mxu0 0.0
      %4391 = vmatpush1.msra.mxu0 0.0
      %4392 = vmatprep.subr.mxu0 0.0
      %4393 = vmatpush1.msra.mxu0 0.0
      %4394 = vmatprep.subr.mxu0 0.0
      %4395 = vmatpush1.msra.mxu0 0.0
      %4396 = vmatprep.subr.mxu0 0.0
      %4397 = vmatpush1.msra.mxu0 0.0
      %4398 = vmatprep.subr.mxu0 0.0
      %4399 = vmatpush1.msra.mxu0 0.0
      %4400 = vmatprep.subr.mxu0 0.0
      %4401 = vmatpush1.msra.mxu0 0.0
      %4402 = vmatprep.subr.mxu0 0.0
      %4403 = vmatpush1.msra.mxu0 0.0
      %4404 = vmatprep.subr.mxu0 0.0
      %4405 = vmatpush1.msra.mxu0 0.0
      %4406 = vmatprep.subr.mxu0 0.0
      %4407 = vmatpush1.msra.mxu0 0.0
      %4408 = vmatprep.subr.mxu0 0.0
      %4409 = vmatpush1.msra.mxu0 0.0
      %4410 = vmatprep.subr.mxu0 0.0
      %4411 = vmatpush1.msra.mxu0 0.0
      %4412 = vmatprep.subr.mxu0 0.0
      %4413 = vmatpush1.msra.mxu0 0.0
      %4414 = vmatprep.subr.mxu0 0.0
      %4415 = vmatpush1.msra.mxu0 0.0
      %4416 = vmatprep.subr.mxu0 0.0
      %4417 = vmatpush1.msra.mxu0 0.0
      %4418 = vmatprep.subr.mxu0 0.0
      %4419 = vmatpush1.msra.mxu0 0.0
      %4420 = vmatprep.subr.mxu0 0.0
      %4421 = vmatpush1.msra.mxu0 0.0
      %4422 = vmatprep.subr.mxu0 0.0
      %4423 = vmatpush1.msra.mxu0 0.0
      %4424 = vmatprep.subr.mxu0 0.0
      %4425 = vmatpush1.msra.mxu0 0.0
      %4426 = vmatprep.subr.mxu0 0.0
      %4427 = vmatpush1.msra.mxu0 0.0
      %4428 = vmatprep.subr.mxu0 0.0
      %4429 = vmatpush1.msra.mxu0 0.0
      %4430 = vmatprep.subr.mxu0 0.0
      %4431 = vmatpush1.msra.mxu0 0.0
      %4432 = vmatprep.subr.mxu0 0.0
      %4433 = vmatpush1.msra.mxu0 0.0
      %4434 = vmatprep.subr.mxu0 0.0
      %4435 = vmatpush1.msra.mxu0 0.0
      %4436 = vmatprep.subr.mxu0 0.0
      %4437 = vmatpush1.msra.mxu0 0.0
      %4438 = vmatprep.subr.mxu0 0.0
      %4439 = vmatpush1.msra.mxu0 0.0
      %4440 = vmatprep.mubr.f32.mxu0 0.0
      %4441 = vmatmul.mubr.f32.gmra.mrb[0].mxu0 %v4374
      %v4442 = vpop.f32.mrb[0].mxu0
      %v4443 = vadd.f32 0.0, %v4442
      %v4444 = vpop.f32.mrb[0].mxu0
      %4445 = vdwg.mxu0
      %v4447 = vsel %vm2747, %v3118, 0
      %4449 = vmatprep.subr.mxu0 0.0
      %4450 = vmatpush1.msra.mxu0 %v300
      %4451 = vmatprep.subr.mxu0 0.0
      %4452 = vmatpush1.msra.mxu0 0.0
      %4453 = vmatprep.subr.mxu0 0.0
      %4454 = vmatpush1.msra.mxu0 0.0
      %4455 = vmatprep.subr.mxu0 0.0
      %4456 = vmatpush1.msra.mxu0 0.0
      %4457 = vmatprep.subr.mxu0 0.0
      %4458 = vmatpush1.msra.mxu0 0.0
      %4459 = vmatprep.subr.mxu0 0.0
      %4460 = vmatpush1.msra.mxu0 0.0
      %4461 = vmatprep.subr.mxu0 0.0
      %4462 = vmatpush1.msra.mxu0 0.0
      %4463 = vmatprep.subr.mxu0 0.0
      %4464 = vmatpush1.msra.mxu0 0.0
      %4465 = vmatprep.subr.mxu0 0.0
      %4466 = vmatpush1.msra.mxu0 0.0
      %4467 = vmatprep.subr.mxu0 0.0
      %4468 = vmatpush1.msra.mxu0 0.0
      %4469 = vmatprep.subr.mxu0 0.0
      %4470 = vmatpush1.msra.mxu0 0.0
      %4471 = vmatprep.subr.mxu0 0.0
      %4472 = vmatpush1.msra.mxu0 0.0
      %4473 = vmatprep.subr.mxu0 0.0
      %4474 = vmatpush1.msra.mxu0 0.0
      %4475 = vmatprep.subr.mxu0 0.0
      %4476 = vmatpush1.msra.mxu0 0.0
      %4477 = vmatprep.subr.mxu0 0.0
      %4478 = vmatpush1.msra.mxu0 0.0
      %4479 = vmatprep.subr.mxu0 0.0
      %4480 = vmatpush1.msra.mxu0 0.0
      %4481 = vmatprep.subr.mxu0 0.0
      %4482 = vmatpush1.msra.mxu0 0.0
      %4483 = vmatprep.subr.mxu0 0.0
      %4484 = vmatpush1.msra.mxu0 0.0
      %4485 = vmatprep.subr.mxu0 0.0
      %4486 = vmatpush1.msra.mxu0 0.0
      %4487 = vmatprep.subr.mxu0 0.0
      %4488 = vmatpush1.msra.mxu0 0.0
      %4489 = vmatprep.subr.mxu0 0.0
      %4490 = vmatpush1.msra.mxu0 0.0
      %4491 = vmatprep.subr.mxu0 0.0
      %4492 = vmatpush1.msra.mxu0 0.0
      %4493 = vmatprep.subr.mxu0 0.0
      %4494 = vmatpush1.msra.mxu0 0.0
      %4495 = vmatprep.subr.mxu0 0.0
      %4496 = vmatpush1.msra.mxu0 0.0
      %4497 = vmatprep.subr.mxu0 0.0
      %4498 = vmatpush1.msra.mxu0 0.0
      %4499 = vmatprep.subr.mxu0 0.0
      %4500 = vmatpush1.msra.mxu0 0.0
      %4501 = vmatprep.subr.mxu0 0.0
      %4502 = vmatpush1.msra.mxu0 0.0
      %4503 = vmatprep.subr.mxu0 0.0
      %4504 = vmatpush1.msra.mxu0 0.0
      %4505 = vmatprep.subr.mxu0 0.0
      %4506 = vmatpush1.msra.mxu0 0.0
      %4507 = vmatprep.subr.mxu0 0.0
      %4508 = vmatpush1.msra.mxu0 0.0
      %4509 = vmatprep.subr.mxu0 0.0
      %4510 = vmatpush1.msra.mxu0 0.0
      %4511 = vmatprep.subr.mxu0 0.0
      %4512 = vmatpush1.msra.mxu0 0.0
      %4513 = vmatprep.mubr.f32.mxu0 0.0
      %4514 = vmatmul.mubr.f32.gmra.mrb[0].mxu0 %v4447
      %v4515 = vpop.f32.mrb[0].mxu0
      %v4516 = vadd.f32 0.0, %v4515
      %v4517 = vpop.f32.mrb[0].mxu0
      %4518 = vdwg.mxu0
      %v4520 = vsel %vm2747, %v3119, 0
      %4522 = vmatprep.subr.mxu0 0.0
      %4523 = vmatpush1.msra.mxu0 %v301
      %4524 = vmatprep.subr.mxu0 0.0
      %4525 = vmatpush1.msra.mxu0 0.0
      %4526 = vmatprep.subr.mxu0 0.0
      %4527 = vmatpush1.msra.mxu0 0.0
      %4528 = vmatprep.subr.mxu0 0.0
      %4529 = vmatpush1.msra.mxu0 0.0
      %4530 = vmatprep.subr.mxu0 0.0
      %4531 = vmatpush1.msra.mxu0 0.0
      %4532 = vmatprep.subr.mxu0 0.0
      %4533 = vmatpush1.msra.mxu0 0.0
      %4534 = vmatprep.subr.mxu0 0.0
      %4535 = vmatpush1.msra.mxu0 0.0
      %4536 = vmatprep.subr.mxu0 0.0
      %4537 = vmatpush1.msra.mxu0 0.0
      %4538 = vmatprep.subr.mxu0 0.0
      %4539 = vmatpush1.msra.mxu0 0.0
      %4540 = vmatprep.subr.mxu0 0.0
      %4541 = vmatpush1.msra.mxu0 0.0
      %4542 = vmatprep.subr.mxu0 0.0
      %4543 = vmatpush1.msra.mxu0 0.0
      %4544 = vmatprep.subr.mxu0 0.0
      %4545 = vmatpush1.msra.mxu0 0.0
      %4546 = vmatprep.subr.mxu0 0.0
      %4547 = vmatpush1.msra.mxu0 0.0
      %4548 = vmatprep.subr.mxu0 0.0
      %4549 = vmatpush1.msra.mxu0 0.0
      %4550 = vmatprep.subr.mxu0 0.0
      %4551 = vmatpush1.msra.mxu0 0.0
      %4552 = vmatprep.subr.mxu0 0.0
      %4553 = vmatpush1.msra.mxu0 0.0
      %4554 = vmatprep.subr.mxu0 0.0
      %4555 = vmatpush1.msra.mxu0 0.0
      %4556 = vmatprep.subr.mxu0 0.0
      %4557 = vmatpush1.msra.mxu0 0.0
      %4558 = vmatprep.subr.mxu0 0.0
      %4559 = vmatpush1.msra.mxu0 0.0
      %4560 = vmatprep.subr.mxu0 0.0
      %4561 = vmatpush1.msra.mxu0 0.0
      %4562 = vmatprep.subr.mxu0 0.0
      %4563 = vmatpush1.msra.mxu0 0.0
      %4564 = vmatprep.subr.mxu0 0.0
      %4565 = vmatpush1.msra.mxu0 0.0
      %4566 = vmatprep.subr.mxu0 0.0
      %4567 = vmatpush1.msra.mxu0 0.0
      %4568 = vmatprep.subr.mxu0 0.0
      %4569 = vmatpush1.msra.mxu0 0.0
      %4570 = vmatprep.subr.mxu0 0.0
      %4571 = vmatpush1.msra.mxu0 0.0
      %4572 = vmatprep.subr.mxu0 0.0
      %4573 = vmatpush1.msra.mxu0 0.0
      %4574 = vmatprep.subr.mxu0 0.0
      %4575 = vmatpush1.msra.mxu0 0.0
      %4576 = vmatprep.subr.mxu0 0.0
      %4577 = vmatpush1.msra.mxu0 0.0
      %4578 = vmatprep.subr.mxu0 0.0
      %4579 = vmatpush1.msra.mxu0 0.0
      %4580 = vmatprep.subr.mxu0 0.0
      %4581 = vmatpush1.msra.mxu0 0.0
      %4582 = vmatprep.subr.mxu0 0.0
      %4583 = vmatpush1.msra.mxu0 0.0
      %4584 = vmatprep.subr.mxu0 0.0
      %4585 = vmatpush1.msra.mxu0 0.0
      %4586 = vmatprep.mubr.f32.mxu0 0.0
      %4587 = vmatmul.mubr.f32.gmra.mrb[0].mxu0 %v4520
      %v4588 = vpop.f32.mrb[0].mxu0
      %v4589 = vadd.f32 0.0, %v4588
      %v4590 = vpop.f32.mrb[0].mxu0
      %4591 = vdwg.mxu0
      %v4593 = vsel %vm2747, %v3120, 0
      %4595 = vmatprep.subr.mxu0 0.0
      %4596 = vmatpush1.msra.mxu0 %v302
      %4597 = vmatprep.subr.mxu0 0.0
      %4598 = vmatpush1.msra.mxu0 0.0
      %4599 = vmatprep.subr.mxu0 0.0
      %4600 = vmatpush1.msra.mxu0 0.0
      %4601 = vmatprep.subr.mxu0 0.0
      %4602 = vmatpush1.msra.mxu0 0.0
      %4603 = vmatprep.subr.mxu0 0.0
      %4604 = vmatpush1.msra.mxu0 0.0
      %4605 = vmatprep.subr.mxu0 0.0
      %4606 = vmatpush1.msra.mxu0 0.0
      %4607 = vmatprep.subr.mxu0 0.0
      %4608 = vmatpush1.msra.mxu0 0.0
      %4609 = vmatprep.subr.mxu0 0.0
      %4610 = vmatpush1.msra.mxu0 0.0
      %4611 = vmatprep.subr.mxu0 0.0
      %4612 = vmatpush1.msra.mxu0 0.0
      %4613 = vmatprep.subr.mxu0 0.0
      %4614 = vmatpush1.msra.mxu0 0.0
      %4615 = vmatprep.subr.mxu0 0.0
      %4616 = vmatpush1.msra.mxu0 0.0
      %4617 = vmatprep.subr.mxu0 0.0
      %4618 = vmatpush1.msra.mxu0 0.0
      %4619 = vmatprep.subr.mxu0 0.0
      %4620 = vmatpush1.msra.mxu0 0.0
      %4621 = vmatprep.subr.mxu0 0.0
      %4622 = vmatpush1.msra.mxu0 0.0
      %4623 = vmatprep.subr.mxu0 0.0
      %4624 = vmatpush1.msra.mxu0 0.0
      %4625 = vmatprep.subr.mxu0 0.0
      %4626 = vmatpush1.msra.mxu0 0.0
      %4627 = vmatprep.subr.mxu0 0.0
      %4628 = vmatpush1.msra.mxu0 0.0
      %4629 = vmatprep.subr.mxu0 0.0
      %4630 = vmatpush1.msra.mxu0 0.0
      %4631 = vmatprep.subr.mxu0 0.0
      %4632 = vmatpush1.msra.mxu0 0.0
      %4633 = vmatprep.subr.mxu0 0.0
      %4634 = vmatpush1.msra.mxu0 0.0
      %4635 = vmatprep.subr.mxu0 0.0
      %4636 = vmatpush1.msra.mxu0 0.0
      %4637 = vmatprep.subr.mxu0 0.0
      %4638 = vmatpush1.msra.mxu0 0.0
      %4639 = vmatprep.subr.mxu0 0.0
      %4640 = vmatpush1.msra.mxu0 0.0
      %4641 = vmatprep.subr.mxu0 0.0
      %4642 = vmatpush1.msra.mxu0 0.0
      %4643 = vmatprep.subr.mxu0 0.0
      %4644 = vmatpush1.msra.mxu0 0.0
      %4645 = vmatprep.subr.mxu0 0.0
      %4646 = vmatpush1.msra.mxu0 0.0
      %4647 = vmatprep.subr.mxu0 0.0
      %4648 = vmatpush1.msra.mxu0 0.0
      %4649 = vmatprep.subr.mxu0 0.0
      %4650 = vmatpush1.msra.mxu0 0.0
      %4651 = vmatprep.subr.mxu0 0.0
      %4652 = vmatpush1.msra.mxu0 0.0
      %4653 = vmatprep.subr.mxu0 0.0
      %4654 = vmatpush1.msra.mxu0 0.0
      %4655 = vmatprep.subr.mxu0 0.0
      %4656 = vmatpush1.msra.mxu0 0.0
      %4657 = vmatprep.subr.mxu0 0.0
      %4658 = vmatpush1.msra.mxu0 0.0
      %4659 = vmatprep.mubr.f32.mxu0 0.0
      %4660 = vmatmul.mubr.f32.gmra.mrb[0].mxu0 %v4593
      %v4661 = vpop.f32.mrb[0].mxu0
      %v4662 = vadd.f32 0.0, %v4661
      %v4663 = vpop.f32.mrb[0].mxu0
      %4664 = vdwg.mxu0
      %v4666 = vsel %vm2747, %v3121, 0
      %4668 = vmatprep.subr.mxu0 0.0
      %4669 = vmatpush1.msra.mxu0 %v303
      %4670 = vmatprep.subr.mxu0 0.0
      %4671 = vmatpush1.msra.mxu0 0.0
      %4672 = vmatprep.subr.mxu0 0.0
      %4673 = vmatpush1.msra.mxu0 0.0
      %4674 = vmatprep.subr.mxu0 0.0
      %4675 = vmatpush1.msra.mxu0 0.0
      %4676 = vmatprep.subr.mxu0 0.0
      %4677 = vmatpush1.msra.mxu0 0.0
      %4678 = vmatprep.subr.mxu0 0.0
      %4679 = vmatpush1.msra.mxu0 0.0
      %4680 = vmatprep.subr.mxu0 0.0
      %4681 = vmatpush1.msra.mxu0 0.0
      %4682 = vmatprep.subr.mxu0 0.0
      %4683 = vmatpush1.msra.mxu0 0.0
      %4684 = vmatprep.subr.mxu0 0.0
      %4685 = vmatpush1.msra.mxu0 0.0
      %4686 = vmatprep.subr.mxu0 0.0
      %4687 = vmatpush1.msra.mxu0 0.0
      %4688 = vmatprep.subr.mxu0 0.0
      %4689 = vmatpush1.msra.mxu0 0.0
      %4690 = vmatprep.subr.mxu0 0.0
      %4691 = vmatpush1.msra.mxu0 0.0
      %4692 = vmatprep.subr.mxu0 0.0
      %4693 = vmatpush1.msra.mxu0 0.0
      %4694 = vmatprep.subr.mxu0 0.0
      %4695 = vmatpush1.msra.mxu0 0.0
      %4696 = vmatprep.subr.mxu0 0.0
      %4697 = vmatpush1.msra.mxu0 0.0
      %4698 = vmatprep.subr.mxu0 0.0
      %4699 = vmatpush1.msra.mxu0 0.0
      %4700 = vmatprep.subr.mxu0 0.0
      %4701 = vmatpush1.msra.mxu0 0.0
      %4702 = vmatprep.subr.mxu0 0.0
      %4703 = vmatpush1.msra.mxu0 0.0
      %4704 = vmatprep.subr.mxu0 0.0
      %4705 = vmatpush1.msra.mxu0 0.0
      %4706 = vmatprep.subr.mxu0 0.0
      %4707 = vmatpush1.msra.mxu0 0.0
      %4708 = vmatprep.subr.mxu0 0.0
      %4709 = vmatpush1.msra.mxu0 0.0
      %4710 = vmatprep.subr.mxu0 0.0
      %4711 = vmatpush1.msra.mxu0 0.0
      %4712 = vmatprep.subr.mxu0 0.0
      %4713 = vmatpush1.msra.mxu0 0.0
      %4714 = vmatprep.subr.mxu0 0.0
      %4715 = vmatpush1.msra.mxu0 0.0
      %4716 = vmatprep.subr.mxu0 0.0
      %4717 = vmatpush1.msra.mxu0 0.0
      %4718 = vmatprep.subr.mxu0 0.0
      %4719 = vmatpush1.msra.mxu0 0.0
      %4720 = vmatprep.subr.mxu0 0.0
      %4721 = vmatpush1.msra.mxu0 0.0
      %4722 = vmatprep.subr.mxu0 0.0
      %4723 = vmatpush1.msra.mxu0 0.0
      %4724 = vmatprep.subr.mxu0 0.0
      %4725 = vmatpush1.msra.mxu0 0.0
      %4726 = vmatprep.subr.mxu0 0.0
      %4727 = vmatpush1.msra.mxu0 0.0
      %4728 = vmatprep.subr.mxu0 0.0
      %4729 = vmatpush1.msra.mxu0 0.0
      %4730 = vmatprep.subr.mxu0 0.0
      %4731 = vmatpush1.msra.mxu0 0.0
      %4732 = vmatprep.mubr.f32.mxu0 0.0
      %4733 = vmatmul.mubr.f32.gmra.mrb[0].mxu0 %v4666
      %v4734 = vpop.f32.mrb[0].mxu0
      %v4735 = vadd.f32 0.0, %v4734
      %v4736 = vpop.f32.mrb[0].mxu0
      %4737 = vdwg.mxu0
      %v4739 = vsel %vm2747, %v3122, 0
      %4741 = vmatprep.subr.mxu0 0.0
      %4742 = vmatpush1.msra.mxu0 %v304
      %4743 = vmatprep.subr.mxu0 0.0
      %4744 = vmatpush1.msra.mxu0 0.0
      %4745 = vmatprep.subr.mxu0 0.0
      %4746 = vmatpush1.msra.mxu0 0.0
      %4747 = vmatprep.subr.mxu0 0.0
      %4748 = vmatpush1.msra.mxu0 0.0
      %4749 = vmatprep.subr.mxu0 0.0
      %4750 = vmatpush1.msra.mxu0 0.0
      %4751 = vmatprep.subr.mxu0 0.0
      %4752 = vmatpush1.msra.mxu0 0.0
      %4753 = vmatprep.subr.mxu0 0.0
      %4754 = vmatpush1.msra.mxu0 0.0
      %4755 = vmatprep.subr.mxu0 0.0
      %4756 = vmatpush1.msra.mxu0 0.0
      %4757 = vmatprep.subr.mxu0 0.0
      %4758 = vmatpush1.msra.mxu0 0.0
      %4759 = vmatprep.subr.mxu0 0.0
      %4760 = vmatpush1.msra.mxu0 0.0
      %4761 = vmatprep.subr.mxu0 0.0
      %4762 = vmatpush1.msra.mxu0 0.0
      %4763 = vmatprep.subr.mxu0 0.0
      %4764 = vmatpush1.msra.mxu0 0.0
      %4765 = vmatprep.subr.mxu0 0.0
      %4766 = vmatpush1.msra.mxu0 0.0
      %4767 = vmatprep.subr.mxu0 0.0
      %4768 = vmatpush1.msra.mxu0 0.0
      %4769 = vmatprep.subr.mxu0 0.0
      %4770 = vmatpush1.msra.mxu0 0.0
      %4771 = vmatprep.subr.mxu0 0.0
      %4772 = vmatpush1.msra.mxu0 0.0
      %4773 = vmatprep.subr.mxu0 0.0
      %4774 = vmatpush1.msra.mxu0 0.0
      %4775 = vmatprep.subr.mxu0 0.0
      %4776 = vmatpush1.msra.mxu0 0.0
      %4777 = vmatprep.subr.mxu0 0.0
      %4778 = vmatpush1.msra.mxu0 0.0
      %4779 = vmatprep.subr.mxu0 0.0
      %4780 = vmatpush1.msra.mxu0 0.0
      %4781 = vmatprep.subr.mxu0 0.0
      %4782 = vmatpush1.msra.mxu0 0.0
      %4783 = vmatprep.subr.mxu0 0.0
      %4784 = vmatpush1.msra.mxu0 0.0
      %4785 = vmatprep.subr.mxu0 0.0
      %4786 = vmatpush1.msra.mxu0 0.0
      %4787 = vmatprep.subr.mxu0 0.0
      %4788 = vmatpush1.msra.mxu0 0.0
      %4789 = vmatprep.subr.mxu0 0.0
      %4790 = vmatpush1.msra.mxu0 0.0
      %4791 = vmatprep.subr.mxu0 0.0
      %4792 = vmatpush1.msra.mxu0 0.0
      %4793 = vmatprep.subr.mxu0 0.0
      %4794 = vmatpush1.msra.mxu0 0.0
      %4795 = vmatprep.subr.mxu0 0.0
      %4796 = vmatpush1.msra.mxu0 0.0
      %4797 = vmatprep.subr.mxu0 0.0
      %4798 = vmatpush1.msra.mxu0 0.0
      %4799 = vmatprep.subr.mxu0 0.0
      %4800 = vmatpush1.msra.mxu0 0.0
      %4801 = vmatprep.subr.mxu0 0.0
      %4802 = vmatpush1.msra.mxu0 0.0
      %4803 = vmatprep.subr.mxu0 0.0
      %4804 = vmatpush1.msra.mxu0 0.0
      %4805 = vmatprep.mubr.f32.mxu0 0.0
      %4806 = vmatmul.mubr.f32.gmra.mrb[0].mxu0 %v4739
      %v4807 = vpop.f32.mrb[0].mxu0
      %v4808 = vadd.f32 0.0, %v4807
      %v4809 = vpop.f32.mrb[0].mxu0
      %4810 = vdwg.mxu0
      %v4812 = vsel %vm2747, %v3123, 0
      %4814 = vmatprep.subr.mxu0 0.0
      %4815 = vmatpush1.msra.mxu0 %v305
      %4816 = vmatprep.subr.mxu0 0.0
      %4817 = vmatpush1.msra.mxu0 0.0
      %4818 = vmatprep.subr.mxu0 0.0
      %4819 = vmatpush1.msra.mxu0 0.0
      %4820 = vmatprep.subr.mxu0 0.0
      %4821 = vmatpush1.msra.mxu0 0.0
      %4822 = vmatprep.subr.mxu0 0.0
      %4823 = vmatpush1.msra.mxu0 0.0
      %4824 = vmatprep.subr.mxu0 0.0
      %4825 = vmatpush1.msra.mxu0 0.0
      %4826 = vmatprep.subr.mxu0 0.0
      %4827 = vmatpush1.msra.mxu0 0.0
      %4828 = vmatprep.subr.mxu0 0.0
      %4829 = vmatpush1.msra.mxu0 0.0
      %4830 = vmatprep.subr.mxu0 0.0
      %4831 = vmatpush1.msra.mxu0 0.0
      %4832 = vmatprep.subr.mxu0 0.0
      %4833 = vmatpush1.msra.mxu0 0.0
      %4834 = vmatprep.subr.mxu0 0.0
      %4835 = vmatpush1.msra.mxu0 0.0
      %4836 = vmatprep.subr.mxu0 0.0
      %4837 = vmatpush1.msra.mxu0 0.0
      %4838 = vmatprep.subr.mxu0 0.0
      %4839 = vmatpush1.msra.mxu0 0.0
      %4840 = vmatprep.subr.mxu0 0.0
      %4841 = vmatpush1.msra.mxu0 0.0
      %4842 = vmatprep.subr.mxu0 0.0
      %4843 = vmatpush1.msra.mxu0 0.0
      %4844 = vmatprep.subr.mxu0 0.0
      %4845 = vmatpush1.msra.mxu0 0.0
      %4846 = vmatprep.subr.mxu0 0.0
      %4847 = vmatpush1.msra.mxu0 0.0
      %4848 = vmatprep.subr.mxu0 0.0
      %4849 = vmatpush1.msra.mxu0 0.0
      %4850 = vmatprep.subr.mxu0 0.0
      %4851 = vmatpush1.msra.mxu0 0.0
      %4852 = vmatprep.subr.mxu0 0.0
      %4853 = vmatpush1.msra.mxu0 0.0
      %4854 = vmatprep.subr.mxu0 0.0
      %4855 = vmatpush1.msra.mxu0 0.0
      %4856 = vmatprep.subr.mxu0 0.0
      %4857 = vmatpush1.msra.mxu0 0.0
      %4858 = vmatprep.subr.mxu0 0.0
      %4859 = vmatpush1.msra.mxu0 0.0
      %4860 = vmatprep.subr.mxu0 0.0
      %4861 = vmatpush1.msra.mxu0 0.0
      %4862 = vmatprep.subr.mxu0 0.0
      %4863 = vmatpush1.msra.mxu0 0.0
      %4864 = vmatprep.subr.mxu0 0.0
      %4865 = vmatpush1.msra.mxu0 0.0
      %4866 = vmatprep.subr.mxu0 0.0
      %4867 = vmatpush1.msra.mxu0 0.0
      %4868 = vmatprep.subr.mxu0 0.0
      %4869 = vmatpush1.msra.mxu0 0.0
      %4870 = vmatprep.subr.mxu0 0.0
      %4871 = vmatpush1.msra.mxu0 0.0
      %4872 = vmatprep.subr.mxu0 0.0
      %4873 = vmatpush1.msra.mxu0 0.0
      %4874 = vmatprep.subr.mxu0 0.0
      %4875 = vmatpush1.msra.mxu0 0.0
      %4876 = vmatprep.subr.mxu0 0.0
      %4877 = vmatpush1.msra.mxu0 0.0
      %4878 = vmatprep.mubr.f32.mxu0 0.0
      %4879 = vmatmul.mubr.f32.gmra.mrb[0].mxu0 %v4812
      %v4880 = vpop.f32.mrb[0].mxu0
      %v4881 = vadd.f32 0.0, %v4880
      %v4882 = vpop.f32.mrb[0].mxu0
      %4883 = vdwg.mxu0
      %v4885 = vsel %vm2747, %v3124, 0
      %4887 = vmatprep.subr.mxu0 0.0
      %4888 = vmatpush1.msra.mxu0 %v306
      %4889 = vmatprep.subr.mxu0 0.0
      %4890 = vmatpush1.msra.mxu0 0.0
      %4891 = vmatprep.subr.mxu0 0.0
      %4892 = vmatpush1.msra.mxu0 0.0
      %4893 = vmatprep.subr.mxu0 0.0
      %4894 = vmatpush1.msra.mxu0 0.0
      %4895 = vmatprep.subr.mxu0 0.0
      %4896 = vmatpush1.msra.mxu0 0.0
      %4897 = vmatprep.subr.mxu0 0.0
      %4898 = vmatpush1.msra.mxu0 0.0
      %4899 = vmatprep.subr.mxu0 0.0
      %4900 = vmatpush1.msra.mxu0 0.0
      %4901 = vmatprep.subr.mxu0 0.0
      %4902 = vmatpush1.msra.mxu0 0.0
      %4903 = vmatprep.subr.mxu0 0.0
      %4904 = vmatpush1.msra.mxu0 0.0
      %4905 = vmatprep.subr.mxu0 0.0
      %4906 = vmatpush1.msra.mxu0 0.0
      %4907 = vmatprep.subr.mxu0 0.0
      %4908 = vmatpush1.msra.mxu0 0.0
      %4909 = vmatprep.subr.mxu0 0.0
      %4910 = vmatpush1.msra.mxu0 0.0
      %4911 = vmatprep.subr.mxu0 0.0
      %4912 = vmatpush1.msra.mxu0 0.0
      %4913 = vmatprep.subr.mxu0 0.0
      %4914 = vmatpush1.msra.mxu0 0.0
      %4915 = vmatprep.subr.mxu0 0.0
      %4916 = vmatpush1.msra.mxu0 0.0
      %4917 = vmatprep.subr.mxu0 0.0
      %4918 = vmatpush1.msra.mxu0 0.0
      %4919 = vmatprep.subr.mxu0 0.0
      %4920 = vmatpush1.msra.mxu0 0.0
      %4921 = vmatprep.subr.mxu0 0.0
      %4922 = vmatpush1.msra.mxu0 0.0
      %4923 = vmatprep.subr.mxu0 0.0
      %4924 = vmatpush1.msra.mxu0 0.0
      %4925 = vmatprep.subr.mxu0 0.0
      %4926 = vmatpush1.msra.mxu0 0.0
      %4927 = vmatprep.subr.mxu0 0.0
      %4928 = vmatpush1.msra.mxu0 0.0
      %4929 = vmatprep.subr.mxu0 0.0
      %4930 = vmatpush1.msra.mxu0 0.0
      %4931 = vmatprep.subr.mxu0 0.0
      %4932 = vmatpush1.msra.mxu0 0.0
      %4933 = vmatprep.subr.mxu0 0.0
      %4934 = vmatpush1.msra.mxu0 0.0
      %4935 = vmatprep.subr.mxu0 0.0
      %4936 = vmatpush1.msra.mxu0 0.0
      %4937 = vmatprep.subr.mxu0 0.0
      %4938 = vmatpush1.msra.mxu0 0.0
      %4939 = vmatprep.subr.mxu0 0.0
      %4940 = vmatpush1.msra.mxu0 0.0
      %4941 = vmatprep.subr.mxu0 0.0
      %4942 = vmatpush1.msra.mxu0 0.0
      %4943 = vmatprep.subr.mxu0 0.0
      %4944 = vmatpush1.msra.mxu0 0.0
      %4945 = vmatprep.subr.mxu0 0.0
      %4946 = vmatpush1.msra.mxu0 0.0
      %4947 = vmatprep.subr.mxu0 0.0
      %4948 = vmatpush1.msra.mxu0 0.0
      %4949 = vmatprep.subr.mxu0 0.0
      %4950 = vmatpush1.msra.mxu0 0.0
      %4951 = vmatprep.mubr.f32.mxu0 0.0
      %4952 = vmatmul.mubr.f32.gmra.mrb[0].mxu0 %v4885
      %v4953 = vpop.f32.mrb[0].mxu0
      %v4954 = vadd.f32 0.0, %v4953
      %v4955 = vpop.f32.mrb[0].mxu0
      %4956 = vdwg.mxu0
      %v4958 = vsel %vm2747, %v3125, 0
      %4960 = vmatprep.subr.mxu0 0.0
      %4961 = vmatpush1.msra.mxu0 %v307
      %4962 = vmatprep.subr.mxu0 0.0
      %4963 = vmatpush1.msra.mxu0 0.0
      %4964 = vmatprep.subr.mxu0 0.0
      %4965 = vmatpush1.msra.mxu0 0.0
      %4966 = vmatprep.subr.mxu0 0.0
      %4967 = vmatpush1.msra.mxu0 0.0
      %4968 = vmatprep.subr.mxu0 0.0
      %4969 = vmatpush1.msra.mxu0 0.0
      %4970 = vmatprep.subr.mxu0 0.0
      %4971 = vmatpush1.msra.mxu0 0.0
      %4972 = vmatprep.subr.mxu0 0.0
      %4973 = vmatpush1.msra.mxu0 0.0
      %4974 = vmatprep.subr.mxu0 0.0
      %4975 = vmatpush1.msra.mxu0 0.0
      %4976 = vmatprep.subr.mxu0 0.0
      %4977 = vmatpush1.msra.mxu0 0.0
      %4978 = vmatprep.subr.mxu0 0.0
      %4979 = vmatpush1.msra.mxu0 0.0
      %4980 = vmatprep.subr.mxu0 0.0
      %4981 = vmatpush1.msra.mxu0 0.0
      %4982 = vmatprep.subr.mxu0 0.0
      %4983 = vmatpush1.msra.mxu0 0.0
      %4984 = vmatprep.subr.mxu0 0.0
      %4985 = vmatpush1.msra.mxu0 0.0
      %4986 = vmatprep.subr.mxu0 0.0
      %4987 = vmatpush1.msra.mxu0 0.0
      %4988 = vmatprep.subr.mxu0 0.0
      %4989 = vmatpush1.msra.mxu0 0.0
      %4990 = vmatprep.subr.mxu0 0.0
      %4991 = vmatpush1.msra.mxu0 0.0
      %4992 = vmatprep.subr.mxu0 0.0
      %4993 = vmatpush1.msra.mxu0 0.0
      %4994 = vmatprep.subr.mxu0 0.0
      %4995 = vmatpush1.msra.mxu0 0.0
      %4996 = vmatprep.subr.mxu0 0.0
      %4997 = vmatpush1.msra.mxu0 0.0
      %4998 = vmatprep.subr.mxu0 0.0
      %4999 = vmatpush1.msra.mxu0 0.0
      %5000 = vmatprep.subr.mxu0 0.0
      %5001 = vmatpush1.msra.mxu0 0.0
      %5002 = vmatprep.subr.mxu0 0.0
      %5003 = vmatpush1.msra.mxu0 0.0
      %5004 = vmatprep.subr.mxu0 0.0
      %5005 = vmatpush1.msra.mxu0 0.0
      %5006 = vmatprep.subr.mxu0 0.0
      %5007 = vmatpush1.msra.mxu0 0.0
      %5008 = vmatprep.subr.mxu0 0.0
      %5009 = vmatpush1.msra.mxu0 0.0
      %5010 = vmatprep.subr.mxu0 0.0
      %5011 = vmatpush1.msra.mxu0 0.0
      %5012 = vmatprep.subr.mxu0 0.0
      %5013 = vmatpush1.msra.mxu0 0.0
      %5014 = vmatprep.subr.mxu0 0.0
      %5015 = vmatpush1.msra.mxu0 0.0
      %5016 = vmatprep.subr.mxu0 0.0
      %5017 = vmatpush1.msra.mxu0 0.0
      %5018 = vmatprep.subr.mxu0 0.0
      %5019 = vmatpush1.msra.mxu0 0.0
      %5020 = vmatprep.subr.mxu0 0.0
      %5021 = vmatpush1.msra.mxu0 0.0
      %5022 = vmatprep.subr.mxu0 0.0
      %5023 = vmatpush1.msra.mxu0 0.0
      %5024 = vmatprep.mubr.f32.mxu0 0.0
      %5025 = vmatmul.mubr.f32.gmra.mrb[0].mxu0 %v4958
      %v5026 = vpop.f32.mrb[0].mxu0
      %v5027 = vadd.f32 0.0, %v5026
      %v5028 = vpop.f32.mrb[0].mxu0
      %5029 = vdwg.mxu0
      %v5031 = vsel %vm2747, %v3126, 0
      %5033 = vmatprep.subr.mxu0 0.0
      %5034 = vmatpush1.msra.mxu0 %v308
      %5035 = vmatprep.subr.mxu0 0.0
      %5036 = vmatpush1.msra.mxu0 0.0
      %5037 = vmatprep.subr.mxu0 0.0
      %5038 = vmatpush1.msra.mxu0 0.0
      %5039 = vmatprep.subr.mxu0 0.0
      %5040 = vmatpush1.msra.mxu0 0.0
      %5041 = vmatprep.subr.mxu0 0.0
      %5042 = vmatpush1.msra.mxu0 0.0
      %5043 = vmatprep.subr.mxu0 0.0
      %5044 = vmatpush1.msra.mxu0 0.0
      %5045 = vmatprep.subr.mxu0 0.0
      %5046 = vmatpush1.msra.mxu0 0.0
      %5047 = vmatprep.subr.mxu0 0.0
      %5048 = vmatpush1.msra.mxu0 0.0
      %5049 = vmatprep.subr.mxu0 0.0
      %5050 = vmatpush1.msra.mxu0 0.0
      %5051 = vmatprep.subr.mxu0 0.0
      %5052 = vmatpush1.msra.mxu0 0.0
      %5053 = vmatprep.subr.mxu0 0.0
      %5054 = vmatpush1.msra.mxu0 0.0
      %5055 = vmatprep.subr.mxu0 0.0
      %5056 = vmatpush1.msra.mxu0 0.0
      %5057 = vmatprep.subr.mxu0 0.0
      %5058 = vmatpush1.msra.mxu0 0.0
      %5059 = vmatprep.subr.mxu0 0.0
      %5060 = vmatpush1.msra.mxu0 0.0
      %5061 = vmatprep.subr.mxu0 0.0
      %5062 = vmatpush1.msra.mxu0 0.0
      %5063 = vmatprep.subr.mxu0 0.0
      %5064 = vmatpush1.msra.mxu0 0.0
      %5065 = vmatprep.subr.mxu0 0.0
      %5066 = vmatpush1.msra.mxu0 0.0
      %5067 = vmatprep.subr.mxu0 0.0
      %5068 = vmatpush1.msra.mxu0 0.0
      %5069 = vmatprep.subr.mxu0 0.0
      %5070 = vmatpush1.msra.mxu0 0.0
      %5071 = vmatprep.subr.mxu0 0.0
      %5072 = vmatpush1.msra.mxu0 0.0
      %5073 = vmatprep.subr.mxu0 0.0
      %5074 = vmatpush1.msra.mxu0 0.0
      %5075 = vmatprep.subr.mxu0 0.0
      %5076 = vmatpush1.msra.mxu0 0.0
      %5077 = vmatprep.subr.mxu0 0.0
      %5078 = vmatpush1.msra.mxu0 0.0
      %5079 = vmatprep.subr.mxu0 0.0
      %5080 = vmatpush1.msra.mxu0 0.0
      %5081 = vmatprep.subr.mxu0 0.0
      %5082 = vmatpush1.msra.mxu0 0.0
      %5083 = vmatprep.subr.mxu0 0.0
      %5084 = vmatpush1.msra.mxu0 0.0
      %5085 = vmatprep.subr.mxu0 0.0
      %5086 = vmatpush1.msra.mxu0 0.0
      %5087 = vmatprep.subr.mxu0 0.0
      %5088 = vmatpush1.msra.mxu0 0.0
      %5089 = vmatprep.subr.mxu0 0.0
      %5090 = vmatpush1.msra.mxu0 0.0
      %5091 = vmatprep.subr.mxu0 0.0
      %5092 = vmatpush1.msra.mxu0 0.0
      %5093 = vmatprep.subr.mxu0 0.0
      %5094 = vmatpush1.msra.mxu0 0.0
      %5095 = vmatprep.subr.mxu0 0.0
      %5096 = vmatpush1.msra.mxu0 0.0
      %5097 = vmatprep.mubr.f32.mxu0 0.0
      %5098 = vmatmul.mubr.f32.gmra.mrb[0].mxu0 %v5031
      %v5099 = vpop.f32.mrb[0].mxu0
      %v5100 = vadd.f32 0.0, %v5099
      %v5101 = vpop.f32.mrb[0].mxu0
      %5102 = vdwg.mxu0
      %v5104 = vsel %vm2747, %v3127, 0
      %5106 = vmatprep.subr.mxu0 0.0
      %5107 = vmatpush1.msra.mxu0 %v309
      %5108 = vmatprep.subr.mxu0 0.0
      %5109 = vmatpush1.msra.mxu0 0.0
      %5110 = vmatprep.subr.mxu0 0.0
      %5111 = vmatpush1.msra.mxu0 0.0
      %5112 = vmatprep.subr.mxu0 0.0
      %5113 = vmatpush1.msra.mxu0 0.0
      %5114 = vmatprep.subr.mxu0 0.0
      %5115 = vmatpush1.msra.mxu0 0.0
      %5116 = vmatprep.subr.mxu0 0.0
      %5117 = vmatpush1.msra.mxu0 0.0
      %5118 = vmatprep.subr.mxu0 0.0
      %5119 = vmatpush1.msra.mxu0 0.0
      %5120 = vmatprep.subr.mxu0 0.0
      %5121 = vmatpush1.msra.mxu0 0.0
      %5122 = vmatprep.subr.mxu0 0.0
      %5123 = vmatpush1.msra.mxu0 0.0
      %5124 = vmatprep.subr.mxu0 0.0
      %5125 = vmatpush1.msra.mxu0 0.0
      %5126 = vmatprep.subr.mxu0 0.0
      %5127 = vmatpush1.msra.mxu0 0.0
      %5128 = vmatprep.subr.mxu0 0.0
      %5129 = vmatpush1.msra.mxu0 0.0
      %5130 = vmatprep.subr.mxu0 0.0
      %5131 = vmatpush1.msra.mxu0 0.0
      %5132 = vmatprep.subr.mxu0 0.0
      %5133 = vmatpush1.msra.mxu0 0.0
      %5134 = vmatprep.subr.mxu0 0.0
      %5135 = vmatpush1.msra.mxu0 0.0
      %5136 = vmatprep.subr.mxu0 0.0
      %5137 = vmatpush1.msra.mxu0 0.0
      %5138 = vmatprep.subr.mxu0 0.0
      %5139 = vmatpush1.msra.mxu0 0.0
      %5140 = vmatprep.subr.mxu0 0.0
      %5141 = vmatpush1.msra.mxu0 0.0
      %5142 = vmatprep.subr.mxu0 0.0
      %5143 = vmatpush1.msra.mxu0 0.0
      %5144 = vmatprep.subr.mxu0 0.0
      %5145 = vmatpush1.msra.mxu0 0.0
      %5146 = vmatprep.subr.mxu0 0.0
      %5147 = vmatpush1.msra.mxu0 0.0
      %5148 = vmatprep.subr.mxu0 0.0
      %5149 = vmatpush1.msra.mxu0 0.0
      %5150 = vmatprep.subr.mxu0 0.0
      %5151 = vmatpush1.msra.mxu0 0.0
      %5152 = vmatprep.subr.mxu0 0.0
      %5153 = vmatpush1.msra.mxu0 0.0
      %5154 = vmatprep.subr.mxu0 0.0
      %5155 = vmatpush1.msra.mxu0 0.0
      %5156 = vmatprep.subr.mxu0 0.0
      %5157 = vmatpush1.msra.mxu0 0.0
      %5158 = vmatprep.subr.mxu0 0.0
      %5159 = vmatpush1.msra.mxu0 0.0
      %5160 = vmatprep.subr.mxu0 0.0
      %5161 = vmatpush1.msra.mxu0 0.0
      %5162 = vmatprep.subr.mxu0 0.0
      %5163 = vmatpush1.msra.mxu0 0.0
      %5164 = vmatprep.subr.mxu0 0.0
      %5165 = vmatpush1.msra.mxu0 0.0
      %5166 = vmatprep.subr.mxu0 0.0
      %5167 = vmatpush1.msra.mxu0 0.0
      %5168 = vmatprep.subr.mxu0 0.0
      %5169 = vmatpush1.msra.mxu0 0.0
      %5170 = vmatprep.mubr.f32.mxu0 0.0
      %5171 = vmatmul.mubr.f32.gmra.mrb[0].mxu0 %v5104
      %v5172 = vpop.f32.mrb[0].mxu0
      %v5173 = vadd.f32 0.0, %v5172
      %v5174 = vpop.f32.mrb[0].mxu0
      %5175 = vdwg.mxu0
      %v5177 = vsel %vm2747, %v3128, 0
      %5179 = vmatprep.subr.mxu0 0.0
      %5180 = vmatpush1.msra.mxu0 %v310
      %5181 = vmatprep.subr.mxu0 0.0
      %5182 = vmatpush1.msra.mxu0 0.0
      %5183 = vmatprep.subr.mxu0 0.0
      %5184 = vmatpush1.msra.mxu0 0.0
      %5185 = vmatprep.subr.mxu0 0.0
      %5186 = vmatpush1.msra.mxu0 0.0
      %5187 = vmatprep.subr.mxu0 0.0
      %5188 = vmatpush1.msra.mxu0 0.0
      %5189 = vmatprep.subr.mxu0 0.0
      %5190 = vmatpush1.msra.mxu0 0.0
      %5191 = vmatprep.subr.mxu0 0.0
      %5192 = vmatpush1.msra.mxu0 0.0
      %5193 = vmatprep.subr.mxu0 0.0
      %5194 = vmatpush1.msra.mxu0 0.0
      %5195 = vmatprep.subr.mxu0 0.0
      %5196 = vmatpush1.msra.mxu0 0.0
      %5197 = vmatprep.subr.mxu0 0.0
      %5198 = vmatpush1.msra.mxu0 0.0
      %5199 = vmatprep.subr.mxu0 0.0
      %5200 = vmatpush1.msra.mxu0 0.0
      %5201 = vmatprep.subr.mxu0 0.0
      %5202 = vmatpush1.msra.mxu0 0.0
      %5203 = vmatprep.subr.mxu0 0.0
      %5204 = vmatpush1.msra.mxu0 0.0
      %5205 = vmatprep.subr.mxu0 0.0
      %5206 = vmatpush1.msra.mxu0 0.0
      %5207 = vmatprep.subr.mxu0 0.0
      %5208 = vmatpush1.msra.mxu0 0.0
      %5209 = vmatprep.subr.mxu0 0.0
      %5210 = vmatpush1.msra.mxu0 0.0
      %5211 = vmatprep.subr.mxu0 0.0
      %5212 = vmatpush1.msra.mxu0 0.0
      %5213 = vmatprep.subr.mxu0 0.0
      %5214 = vmatpush1.msra.mxu0 0.0
      %5215 = vmatprep.subr.mxu0 0.0
      %5216 = vmatpush1.msra.mxu0 0.0
      %5217 = vmatprep.subr.mxu0 0.0
      %5218 = vmatpush1.msra.mxu0 0.0
      %5219 = vmatprep.subr.mxu0 0.0
      %5220 = vmatpush1.msra.mxu0 0.0
      %5221 = vmatprep.subr.mxu0 0.0
      %5222 = vmatpush1.msra.mxu0 0.0
      %5223 = vmatprep.subr.mxu0 0.0
      %5224 = vmatpush1.msra.mxu0 0.0
      %5225 = vmatprep.subr.mxu0 0.0
      %5226 = vmatpush1.msra.mxu0 0.0
      %5227 = vmatprep.subr.mxu0 0.0
      %5228 = vmatpush1.msra.mxu0 0.0
      %5229 = vmatprep.subr.mxu0 0.0
      %5230 = vmatpush1.msra.mxu0 0.0
      %5231 = vmatprep.subr.mxu0 0.0
      %5232 = vmatpush1.msra.mxu0 0.0
      %5233 = vmatprep.subr.mxu0 0.0
      %5234 = vmatpush1.msra.mxu0 0.0
      %5235 = vmatprep.subr.mxu0 0.0
      %5236 = vmatpush1.msra.mxu0 0.0
      %5237 = vmatprep.subr.mxu0 0.0
      %5238 = vmatpush1.msra.mxu0 0.0
      %5239 = vmatprep.subr.mxu0 0.0
      %5240 = vmatpush1.msra.mxu0 0.0
      %5241 = vmatprep.subr.mxu0 0.0
      %5242 = vmatpush1.msra.mxu0 0.0
      %5243 = vmatprep.mubr.f32.mxu0 0.0
      %5244 = vmatmul.mubr.f32.gmra.mrb[0].mxu0 %v5177
      %v5245 = vpop.f32.mrb[0].mxu0
      %v5246 = vadd.f32 0.0, %v5245
      %v5247 = vpop.f32.mrb[0].mxu0
      %5248 = vdwg.mxu0
      %v5250 = vsel %vm2747, %v3129, 0
      %5252 = vmatprep.subr.mxu0 0.0
      %5253 = vmatpush1.msra.mxu0 %v311
      %5254 = vmatprep.subr.mxu0 0.0
      %5255 = vmatpush1.msra.mxu0 0.0
      %5256 = vmatprep.subr.mxu0 0.0
      %5257 = vmatpush1.msra.mxu0 0.0
      %5258 = vmatprep.subr.mxu0 0.0
      %5259 = vmatpush1.msra.mxu0 0.0
      %5260 = vmatprep.subr.mxu0 0.0
      %5261 = vmatpush1.msra.mxu0 0.0
      %5262 = vmatprep.subr.mxu0 0.0
      %5263 = vmatpush1.msra.mxu0 0.0
      %5264 = vmatprep.subr.mxu0 0.0
      %5265 = vmatpush1.msra.mxu0 0.0
      %5266 = vmatprep.subr.mxu0 0.0
      %5267 = vmatpush1.msra.mxu0 0.0
      %5268 = vmatprep.subr.mxu0 0.0
      %5269 = vmatpush1.msra.mxu0 0.0
      %5270 = vmatprep.subr.mxu0 0.0
      %5271 = vmatpush1.msra.mxu0 0.0
      %5272 = vmatprep.subr.mxu0 0.0
      %5273 = vmatpush1.msra.mxu0 0.0
      %5274 = vmatprep.subr.mxu0 0.0
      %5275 = vmatpush1.msra.mxu0 0.0
      %5276 = vmatprep.subr.mxu0 0.0
      %5277 = vmatpush1.msra.mxu0 0.0
      %5278 = vmatprep.subr.mxu0 0.0
      %5279 = vmatpush1.msra.mxu0 0.0
      %5280 = vmatprep.subr.mxu0 0.0
      %5281 = vmatpush1.msra.mxu0 0.0
      %5282 = vmatprep.subr.mxu0 0.0
      %5283 = vmatpush1.msra.mxu0 0.0
      %5284 = vmatprep.subr.mxu0 0.0
      %5285 = vmatpush1.msra.mxu0 0.0
      %5286 = vmatprep.subr.mxu0 0.0
      %5287 = vmatpush1.msra.mxu0 0.0
      %5288 = vmatprep.subr.mxu0 0.0
      %5289 = vmatpush1.msra.mxu0 0.0
      %5290 = vmatprep.subr.mxu0 0.0
      %5291 = vmatpush1.msra.mxu0 0.0
      %5292 = vmatprep.subr.mxu0 0.0
      %5293 = vmatpush1.msra.mxu0 0.0
      %5294 = vmatprep.subr.mxu0 0.0
      %5295 = vmatpush1.msra.mxu0 0.0
      %5296 = vmatprep.subr.mxu0 0.0
      %5297 = vmatpush1.msra.mxu0 0.0
      %5298 = vmatprep.subr.mxu0 0.0
      %5299 = vmatpush1.msra.mxu0 0.0
      %5300 = vmatprep.subr.mxu0 0.0
      %5301 = vmatpush1.msra.mxu0 0.0
      %5302 = vmatprep.subr.mxu0 0.0
      %5303 = vmatpush1.msra.mxu0 0.0
      %5304 = vmatprep.subr.mxu0 0.0
      %5305 = vmatpush1.msra.mxu0 0.0
      %5306 = vmatprep.subr.mxu0 0.0
      %5307 = vmatpush1.msra.mxu0 0.0
      %5308 = vmatprep.subr.mxu0 0.0
      %5309 = vmatpush1.msra.mxu0 0.0
      %5310 = vmatprep.subr.mxu0 0.0
      %5311 = vmatpush1.msra.mxu0 0.0
      %5312 = vmatprep.subr.mxu0 0.0
      %5313 = vmatpush1.msra.mxu0 0.0
      %5314 = vmatprep.subr.mxu0 0.0
      %5315 = vmatpush1.msra.mxu0 0.0
      %5316 = vmatprep.mubr.f32.mxu0 0.0
      %5317 = vmatmul.mubr.f32.gmra.mrb[0].mxu0 %v5250
      %v5318 = vpop.f32.mrb[0].mxu0
      %v5319 = vadd.f32 0.0, %v5318
      %v5320 = vpop.f32.mrb[0].mxu0
      %5321 = vdwg.mxu0
      %v5323 = vsel %vm2747, %v3130, 0
      %5325 = vmatprep.subr.mxu0 0.0
      %5326 = vmatpush1.msra.mxu0 %v312
      %5327 = vmatprep.subr.mxu0 0.0
      %5328 = vmatpush1.msra.mxu0 0.0
      %5329 = vmatprep.subr.mxu0 0.0
      %5330 = vmatpush1.msra.mxu0 0.0
      %5331 = vmatprep.subr.mxu0 0.0
      %5332 = vmatpush1.msra.mxu0 0.0
      %5333 = vmatprep.subr.mxu0 0.0
      %5334 = vmatpush1.msra.mxu0 0.0
      %5335 = vmatprep.subr.mxu0 0.0
      %5336 = vmatpush1.msra.mxu0 0.0
      %5337 = vmatprep.subr.mxu0 0.0
      %5338 = vmatpush1.msra.mxu0 0.0
      %5339 = vmatprep.subr.mxu0 0.0
      %5340 = vmatpush1.msra.mxu0 0.0
      %5341 = vmatprep.subr.mxu0 0.0
      %5342 = vmatpush1.msra.mxu0 0.0
      %5343 = vmatprep.subr.mxu0 0.0
      %5344 = vmatpush1.msra.mxu0 0.0
      %5345 = vmatprep.subr.mxu0 0.0
      %5346 = vmatpush1.msra.mxu0 0.0
      %5347 = vmatprep.subr.mxu0 0.0
      %5348 = vmatpush1.msra.mxu0 0.0
      %5349 = vmatprep.subr.mxu0 0.0
      %5350 = vmatpush1.msra.mxu0 0.0
      %5351 = vmatprep.subr.mxu0 0.0
      %5352 = vmatpush1.msra.mxu0 0.0
      %5353 = vmatprep.subr.mxu0 0.0
      %5354 = vmatpush1.msra.mxu0 0.0
      %5355 = vmatprep.subr.mxu0 0.0
      %5356 = vmatpush1.msra.mxu0 0.0
      %5357 = vmatprep.subr.mxu0 0.0
      %5358 = vmatpush1.msra.mxu0 0.0
      %5359 = vmatprep.subr.mxu0 0.0
      %5360 = vmatpush1.msra.mxu0 0.0
      %5361 = vmatprep.subr.mxu0 0.0
      %5362 = vmatpush1.msra.mxu0 0.0
      %5363 = vmatprep.subr.mxu0 0.0
      %5364 = vmatpush1.msra.mxu0 0.0
      %5365 = vmatprep.subr.mxu0 0.0
      %5366 = vmatpush1.msra.mxu0 0.0
      %5367 = vmatprep.subr.mxu0 0.0
      %5368 = vmatpush1.msra.mxu0 0.0
      %5369 = vmatprep.subr.mxu0 0.0
      %5370 = vmatpush1.msra.mxu0 0.0
      %5371 = vmatprep.subr.mxu0 0.0
      %5372 = vmatpush1.msra.mxu0 0.0
      %5373 = vmatprep.subr.mxu0 0.0
      %5374 = vmatpush1.msra.mxu0 0.0
      %5375 = vmatprep.subr.mxu0 0.0
      %5376 = vmatpush1.msra.mxu0 0.0
      %5377 = vmatprep.subr.mxu0 0.0
      %5378 = vmatpush1.msra.mxu0 0.0
      %5379 = vmatprep.subr.mxu0 0.0
      %5380 = vmatpush1.msra.mxu0 0.0
      %5381 = vmatprep.subr.mxu0 0.0
      %5382 = vmatpush1.msra.mxu0 0.0
      %5383 = vmatprep.subr.mxu0 0.0
      %5384 = vmatpush1.msra.mxu0 0.0
      %5385 = vmatprep.subr.mxu0 0.0
      %5386 = vmatpush1.msra.mxu0 0.0
      %5387 = vmatprep.subr.mxu0 0.0
      %5388 = vmatpush1.msra.mxu0 0.0
      %5389 = vmatprep.mubr.f32.mxu0 0.0
      %5390 = vmatmul.mubr.f32.gmra.mrb[0].mxu0 %v5323
      %v5391 = vpop.f32.mrb[0].mxu0
      %v5392 = vadd.f32 0.0, %v5391
      %v5393 = vpop.f32.mrb[0].mxu0
      %5394 = vdwg.mxu0
      %v5396 = vsel %vm2747, %v3131, 0
      %5398 = vmatprep.subr.mxu0 0.0
      %5399 = vmatpush1.msra.mxu0 %v313
      %5400 = vmatprep.subr.mxu0 0.0
      %5401 = vmatpush1.msra.mxu0 0.0
      %5402 = vmatprep.subr.mxu0 0.0
      %5403 = vmatpush1.msra.mxu0 0.0
      %5404 = vmatprep.subr.mxu0 0.0
      %5405 = vmatpush1.msra.mxu0 0.0
      %5406 = vmatprep.subr.mxu0 0.0
      %5407 = vmatpush1.msra.mxu0 0.0
      %5408 = vmatprep.subr.mxu0 0.0
      %5409 = vmatpush1.msra.mxu0 0.0
      %5410 = vmatprep.subr.mxu0 0.0
      %5411 = vmatpush1.msra.mxu0 0.0
      %5412 = vmatprep.subr.mxu0 0.0
      %5413 = vmatpush1.msra.mxu0 0.0
      %5414 = vmatprep.subr.mxu0 0.0
      %5415 = vmatpush1.msra.mxu0 0.0
      %5416 = vmatprep.subr.mxu0 0.0
      %5417 = vmatpush1.msra.mxu0 0.0
      %5418 = vmatprep.subr.mxu0 0.0
      %5419 = vmatpush1.msra.mxu0 0.0
      %5420 = vmatprep.subr.mxu0 0.0
      %5421 = vmatpush1.msra.mxu0 0.0
      %5422 = vmatprep.subr.mxu0 0.0
      %5423 = vmatpush1.msra.mxu0 0.0
      %5424 = vmatprep.subr.mxu0 0.0
      %5425 = vmatpush1.msra.mxu0 0.0
      %5426 = vmatprep.subr.mxu0 0.0
      %5427 = vmatpush1.msra.mxu0 0.0
      %5428 = vmatprep.subr.mxu0 0.0
      %5429 = vmatpush1.msra.mxu0 0.0
      %5430 = vmatprep.subr.mxu0 0.0
      %5431 = vmatpush1.msra.mxu0 0.0
      %5432 = vmatprep.subr.mxu0 0.0
      %5433 = vmatpush1.msra.mxu0 0.0
      %5434 = vmatprep.subr.mxu0 0.0
      %5435 = vmatpush1.msra.mxu0 0.0
      %5436 = vmatprep.subr.mxu0 0.0
      %5437 = vmatpush1.msra.mxu0 0.0
      %5438 = vmatprep.subr.mxu0 0.0
      %5439 = vmatpush1.msra.mxu0 0.0
      %5440 = vmatprep.subr.mxu0 0.0
      %5441 = vmatpush1.msra.mxu0 0.0
      %5442 = vmatprep.subr.mxu0 0.0
      %5443 = vmatpush1.msra.mxu0 0.0
      %5444 = vmatprep.subr.mxu0 0.0
      %5445 = vmatpush1.msra.mxu0 0.0
      %5446 = vmatprep.subr.mxu0 0.0
      %5447 = vmatpush1.msra.mxu0 0.0
      %5448 = vmatprep.subr.mxu0 0.0
      %5449 = vmatpush1.msra.mxu0 0.0
      %5450 = vmatprep.subr.mxu0 0.0
      %5451 = vmatpush1.msra.mxu0 0.0
      %5452 = vmatprep.subr.mxu0 0.0
      %5453 = vmatpush1.msra.mxu0 0.0
      %5454 = vmatprep.subr.mxu0 0.0
      %5455 = vmatpush1.msra.mxu0 0.0
      %5456 = vmatprep.subr.mxu0 0.0
      %5457 = vmatpush1.msra.mxu0 0.0
      %5458 = vmatprep.subr.mxu0 0.0
      %5459 = vmatpush1.msra.mxu0 0.0
      %5460 = vmatprep.subr.mxu0 0.0
      %5461 = vmatpush1.msra.mxu0 0.0
      %5462 = vmatprep.mubr.f32.mxu0 0.0
      %5463 = vmatmul.mubr.f32.gmra.mrb[0].mxu0 %v5396
      %v5464 = vpop.f32.mrb[0].mxu0
      %v5465 = vadd.f32 0.0, %v5464
      %v5466 = vpop.f32.mrb[0].mxu0
      %5467 = vdwg.mxu0
      %5468 = vst.msk [vmem:[%s216] sm:$0xff] %vm314, %v3202
      %5469 = vst.msk [vmem:[%s216 + $0x8] sm:$0xff] %vm314, %v3275
      %5470 = vst.msk [vmem:[%s216 + $0x10] sm:$0xff] %vm314, %v3348
      %5471 = vst.msk [vmem:[%s216 + $0x18] sm:$0xff] %vm314, %v3421
      %5472 = vst.msk [vmem:[%s216 + $0x20] sm:$0xff] %vm314, %v3494
      %5473 = vst.msk [vmem:[%s216 + $0x28] sm:$0xff] %vm314, %v3567
      %5474 = vst.msk [vmem:[%s216 + $0x30] sm:$0xff] %vm314, %v3640
      %5475 = vst.msk [vmem:[%s216 + $0x38] sm:$0xff] %vm314, %v3713
      %5476 = vst.msk [vmem:[%s216 + $0x40] sm:$0xff] %vm314, %v3786
      %5477 = vst.msk [vmem:[%s216 + $0x48] sm:$0xff] %vm314, %v3859
      %5478 = vst.msk [vmem:[%s216 + $0x50] sm:$0xff] %vm314, %v3932
      %5479 = vst.msk [vmem:[%s216 + $0x58] sm:$0xff] %vm314, %v4005
      %5480 = vst.msk [vmem:[%s216 + $0x60] sm:$0xff] %vm314, %v4078
      %5481 = vst.msk [vmem:[%s216 + $0x68] sm:$0xff] %vm314, %v4151
      %5482 = vst.msk [vmem:[%s216 + $0x70] sm:$0xff] %vm314, %v4224
      %5483 = vst.msk [vmem:[%s216 + $0x78] sm:$0xff] %vm314, %v4297
      %5484 = vst.msk [vmem:[%s216 + $0x80] sm:$0xff] %vm314, %v4370
      %5485 = vst.msk [vmem:[%s216 + $0x88] sm:$0xff] %vm314, %v4443
      %5486 = vst.msk [vmem:[%s216 + $0x90] sm:$0xff] %vm314, %v4516
      %5487 = vst.msk [vmem:[%s216 + $0x98] sm:$0xff] %vm314, %v4589
      %5488 = vst.msk [vmem:[%s216 + $0xa0] sm:$0xff] %vm314, %v4662
      %5489 = vst.msk [vmem:[%s216 + $0xa8] sm:$0xff] %vm314, %v4735
      %5490 = vst.msk [vmem:[%s216 + $0xb0] sm:$0xff] %vm314, %v4808
      %5491 = vst.msk [vmem:[%s216 + $0xb8] sm:$0xff] %vm314, %v4881
      %5492 = vst.msk [vmem:[%s216 + $0xc0] sm:$0xff] %vm314, %v4954
      %5493 = vst.msk [vmem:[%s216 + $0xc8] sm:$0xff] %vm314, %v5027
      %5494 = vst.msk [vmem:[%s216 + $0xd0] sm:$0xff] %vm314, %v5100
      %5495 = vst.msk [vmem:[%s216 + $0xd8] sm:$0xff] %vm314, %v5173
      %5496 = vst.msk [vmem:[%s216 + $0xe0] sm:$0xff] %vm314, %v5246
      %5497 = vst.msk [vmem:[%s216 + $0xe8] sm:$0xff] %vm314, %v5319
      %5498 = vst.msk [vmem:[%s216 + $0xf0] sm:$0xff] %vm314, %v5392
      %5499 = vst.msk [vmem:[%s216 + $0xf8] sm:$0xff] %vm314, %v5465
      %s5500 = smul.u32 32, %s14
      %p5501 = scmp.lt.s32.totalorder %s5500, 127
      %s5502 = scalar_select %p5501, %s5500, 127
      %s5503 = smul.addr %s5502, 8
      %s5504 = scalar_lea.vmem %s3, %s5503
      // Predicated region
      $region33: #{tpu_custom_call.1} parent=31 // pred_check
        %p5505 = pneg %p110
      $region34: #{tpu_custom_call.1} parent=31 // pred_check_branch
        %5507 = sbr.rel (%p5505) target = $region36
      $region35: #{tpu_custom_call.1} parent=31 // pred_region
        %s5508 = smul.u32 32, %s14
      $region36: #{tpu_custom_call.1} parent=31 // pred_fallthru
        _
    $region32: #{tpu_custom_call.1} parent=5 // pred_fallthru
      _
    %p5509 = scmp.le.s32.totalorder 2, %s9
    // Predicated region
    $region37: #{tpu_custom_call.1} parent=5 // pred_check
      %p5510 = pneg %p5509
    $region38: #{tpu_custom_call.1} parent=5 // pred_check_branch
      %5512 = sbr.rel (%p5510) target = $region40
    $region39: #{tpu_custom_call.1} parent=5 // pred_region
      %s5513 = ssub.s32 %s9, 2
      // Predicated region
      $region41: #{tpu_custom_call.1} parent=39 // pred_check
        %p5514 = pneg %p116
      $region42: #{tpu_custom_call.1} parent=39 // pred_check_branch
        %5516 = sbr.rel (%p5514) target = $region44
      $region43: #{tpu_custom_call.1} parent=39 // pred_region
        %s5517 = smul.u32 32, %s15
        %p5518 = scmp.lt.s32.totalorder %s5517, 127
        %s5519 = scalar_select %p5518, %s5517, 127
        %s5520 = smul.addr %s5519, 8
        %s5521 = scalar_lea.vmem %s3, %s5520
      $region44: #{tpu_custom_call.1} parent=39 // pred_fallthru
        _
    $region40: #{tpu_custom_call.1} parent=5 // pred_fallthru
      _
  $region6: #{tpu_custom_call.1} parent=0 // loop_footer
    %s13 = sadd.s32 1, %s9
  $region7: #{tpu_custom_call.1} parent=0 // loop_footer_branch
    %8 = sbr.rel target = $region3
  $region8: #{tpu_custom_call.1} parent=0 // loop_exit
    _

</llo_original>
